<compile_context>
chip_gen: v6e
topology: v6e:2x2x1
jax: 0.10.0
libtpu: 0.0.40
codegen_flags: <defaults>
</compile_context>

<pallas_src>
import jax
import jax.numpy as jnp
from jax import lax
from jax.experimental import pallas as pl
from jax.experimental.pallas import tpu as pltpu


def _round_up(x, m):
    return ((x + m - 1) // m) * m


# PyTorch LSTM packs gate rows as (i, f, g, o).  We reorder the gate COLUMN
# blocks to (i, f, o, g) so the three sigmoid gates are contiguous.
_GATE_ORDER = (0, 1, 3, 2)   # destination block k takes source gate _GATE_ORDER[k]


def _pad_gate_weight(w, hp, in_rows=None):
    """w: (4H, IN) PyTorch LSTM weight.

    Returns the transposed, gate-padded matrix of shape (in_rows or IN, 4*hp)
    where destination gate block k (order i,f,o,g) occupies the 128-aligned
    columns [k*hp, k*hp + H); all padding is zeros."""
    four_h, in_dim = w.shape
    h = four_h // 4
    rows = in_dim if in_rows is None else in_rows
    wt = jnp.transpose(w).astype(jnp.float32)          # (IN, 4H)
    out = jnp.zeros((rows, 4 * hp), jnp.float32)
    for k, src in enumerate(_GATE_ORDER):
        out = out.at[:in_dim, k * hp:k * hp + h].set(wt[:, src * h:(src + 1) * h])
    return out


def seq2seq_kernel(x_enc_ref, wih_enc_ref, whh_enc_ref,
                   gx0_dec_ref, whh_dec_ref, wcomb_ref, bcomb_ref,
                   wfc_ref, bfc_ref, out_ref):
    """Single grid-less kernel: encoder recurrence then decoder loop + FC.

    x_enc_ref  : (T_enc, Bp, D) f32   encoder inputs (view-reshaped, batch-padded)
    wih_enc_ref: (D, 4Hp)       f32   gate-padded W_ih_enc^T (VPU outer-product path)
    whh_enc_ref: (Hp, 4Hp)      bf16
    gx0_dec_ref: (Bp, 4Hp)      f32   precomputed source[:, -1, :] @ W_ih_dec^T
    whh_dec_ref: (Hp, 4Hp)      bf16
    wcomb_ref  : (Hp, 4Hp)      bf16  fused  wfc^T @ W_ih_dec^T
    bcomb_ref  : (1, 4Hp)       f32   fused  b_fc  @ W_ih_dec^T
    wfc_ref    : (Hp, ODp)      bf16
    bfc_ref    : (1, ODp)       f32
    out_ref    : (ts_out, Bp, ODp) f32
    """
    hp = whh_enc_ref.shape[0]
    gdim = whh_enc_ref.shape[1]          # 4 * Hp
    bp = gx0_dec_ref.shape[0]
    t_enc, _, d_in = x_enc_ref.shape
    t_dec = out_ref.shape[0]
    odp = out_ref.shape[2]

    # Resident weights hoisted out of the serial loops (bf16 MXU operands).
    whh_enc = whh_enc_ref[...]
    whh_dec = whh_dec_ref[...]
    wcomb = wcomb_ref[...]
    wfc = wfc_ref[...]
    # JAX does not CSE broadcast_in_dim -> hoist all bias / weight-row
    # broadcasts out of the loops.
    bcomb_b = jnp.broadcast_to(bcomb_ref[...], (bp, gdim))
    bfc_b = jnp.broadcast_to(bfc_ref[...], (bp, odp))
    # D==1 (general small D) fast path: per-step input projection is a VPU
    # outer product against the pre-broadcast W_ih row(s) -> no gx_enc slab,
    # no per-step MXU op on the serial chain for the input term.
    wih_rows = [jnp.broadcast_to(wih_enc_ref[dd:dd + 1, :], (bp, gdim))
                for dd in range(d_in)]

    def lstm_activations(gates, c):
        # Gate order (i, f, o, g): ONE sigmoid over the 3 contiguous sigmoid
        # gates (single EUP push), one tanh over the last 128-aligned block.
        sig = jax.nn.sigmoid(gates[:, :3 * hp])
        i_g = sig[:, 0 * hp:1 * hp]
        f_g = sig[:, 1 * hp:2 * hp]
        o_g = sig[:, 2 * hp:3 * hp]
        g_g = jnp.tanh(gates[:, 3 * hp:4 * hp])
        c_new = f_g * c + i_g * g_g
        h_new = o_g * jnp.tanh(c_new)
        return h_new, c_new

    h0 = jnp.zeros((bp, hp), jnp.float32)
    c0 = jnp.zeros((bp, hp), jnp.float32)

    # ---------------------------- encoder recurrence -----------------------
    def enc_body(t, carry):
        h, c = carry
        x_t = x_enc_ref[t]                                   # (Bp, D) f32
        gx = wih_rows[0] * x_t[:, 0:1]                       # VPU outer product
        for dd in range(1, d_in):
            gx = gx + wih_rows[dd] * x_t[:, dd:dd + 1]
        gates = gx + jnp.dot(h.astype(whh_enc.dtype), whh_enc,
                             preferred_element_type=jnp.float32)
        return lstm_activations(gates, c)

    h, c = lax.fori_loop(0, t_enc, enc_body, (h0, c0),
                         unroll=min(8, t_enc))

    # --------------------- decoder autoregressive loop + FC ----------------
    def dec_body(t, carry):
        gx, h, c = carry
        gates = gx + jnp.dot(h.astype(whh_dec.dtype), whh_dec,
                             preferred_element_type=jnp.float32)
        h, c = lstm_activations(gates, c)
        hb = h.astype(wcomb.dtype)
        # Fused FC + input re-projection: next-step gates come straight from h
        # (single matmul on the serial chain).
        gx_next = jnp.dot(hb, wcomb, preferred_element_type=jnp.float32) + bcomb_b
        # y is only needed for the store -> off the recurrence dependence chain.
        y = jnp.dot(hb, wfc, preferred_element_type=jnp.float32) + bfc_b
        out_ref[t] = y.astype(out_ref.dtype)                 # lane-dense store
        return gx_next, h, c

    lax.fori_loop(0, t_dec, dec_body, (gx0_dec_ref[...], h, c),
                  unroll=min(8, t_dec))


def seq2seq_forward(source, w_ih_enc, w_hh_enc, w_ih_dec, w_hh_dec,
                    w_fc, b_fc, ts_out):
    """source: (batch, seq_len, input_dim) float32. Returns (batch, ts_out)."""
    B, T, D = source.shape
    H = w_hh_enc.shape[1]
    OD = w_fc.shape[0]
    assert OD == D, "autoregressive feedback requires output_dim == input_dim"

    Hp = max(_round_up(H, 128), 128)    # lane-aligned gate blocks
    Bp = max(_round_up(B, 8), 8)        # sublane-aligned batch
    ODp = max(_round_up(OD, 128), 128)  # lane-dense output stores
    G = 4 * Hp
    f32 = jnp.float32
    bf16 = jnp.bfloat16

    # Gate-padded, transposed weights (gate order i,f,o,g; zero padding keeps
    # padded hidden lanes / batch rows exactly zero through the recurrence).
    wih_enc_gp = _pad_gate_weight(w_ih_enc, Hp)                # (D,   G) f32 (VPU path)
    whh_enc_gp = _pad_gate_weight(w_hh_enc, Hp, in_rows=Hp)    # (Hp,  G)
    wih_dec_gp_x = _pad_gate_weight(w_ih_dec, Hp)              # (D,   G) wrapper-only
    wih_dec_gp = _pad_gate_weight(w_ih_dec, Hp, in_rows=ODp)   # (ODp, G) fusion-only
    whh_dec_gp = _pad_gate_weight(w_hh_dec, Hp, in_rows=Hp)    # (Hp,  G)
    wfc_p = jnp.zeros((Hp, ODp), f32).at[:H, :OD].set(
        jnp.transpose(w_fc).astype(f32))
    bfc_p = jnp.zeros((1, ODp), f32).at[0, :OD].set(b_fc.astype(f32))

    # Fused decoder FC + input re-projection:  gx_next = h @ W_comb + b_comb.
    w_comb = wfc_p @ wih_dec_gp                                # (Hp, G)
    b_comb = bfc_p @ wih_dec_gp                                # (1,  G)

    # Reproduce Encoder's seq.view(seq_len, batch, input_dim): a reshape.
    x = jnp.reshape(source.astype(f32), (T, B, D))
    x_pad = jnp.zeros((T, Bp, D), f32).at[:, :B, :].set(x)

    # Decoder's first input uses the ORIGINAL (batch, seq_len, D) layout.
    dec_in0 = source[:, -1, :].astype(f32)
    dec_in0_pad = jnp.zeros((Bp, D), f32).at[:B, :].set(dec_in0)
    gx0_dec = dec_in0_pad @ wih_dec_gp_x                       # (Bp, G) f32

    operands = (x_pad,
                wih_enc_gp,                 # f32 — VPU outer-product path
                whh_enc_gp.astype(bf16),
                gx0_dec,
                whh_dec_gp.astype(bf16),
                w_comb.astype(bf16),
                b_comb,
                wfc_p.astype(bf16),
                bfc_p)

    # Raise scoped VMEM above the conservative default, bounded for v7x.
    resident_bytes = sum(int(o.size) * o.dtype.itemsize for o in operands)
    resident_bytes += ts_out * Bp * ODp * 4
    vmem_limit = int(min(max(2 * resident_bytes + (4 << 20), 16 << 20), 64 << 20))

    vmem = pl.BlockSpec(memory_space=pltpu.MemorySpace.VMEM)
    dec_out = pl.pallas_call(
        seq2seq_kernel,
        out_shape=jax.ShapeDtypeStruct((ts_out, Bp, ODp), f32),
        in_specs=[vmem] * len(operands),
        out_specs=vmem,
        compiler_params=pltpu.CompilerParams(vmem_limit_bytes=vmem_limit),
    )(*operands)

    out = dec_out[:, :B, :OD]                 # strip batch / lane padding
    squeezed = jnp.squeeze(out)               # torch .squeeze()
    # torch .permute(1, 0) itself requires a 2-D tensor after squeeze.
    assert squeezed.ndim == 2, "permute(1,0) requires 2 dims after squeeze"
    return jnp.transpose(squeezed, (1, 0))    # torch .permute(1, 0)


def _reference_seq2seq(source, w_ih_enc, w_hh_enc, w_ih_dec, w_hh_dec,
                       w_fc, b_fc, ts_out):
    """Pure-JAX f32 reference mirroring the PyTorch Seq2Seq forward (y=None)."""
    B, T, D = source.shape
    H = w_hh_enc.shape[1]

    def cell(x_t, h, c, w_ih, w_hh):
        gates = x_t @ w_ih.T + h @ w_hh.T       # PyTorch gate order (i, f, g, o)
        i = jax.nn.sigmoid(gates[:, 0 * H:1 * H])
        f = jax.nn.sigmoid(gates[:, 1 * H:2 * H])
        g = jnp.tanh(gates[:, 2 * H:3 * H])
        o = jax.nn.sigmoid(gates[:, 3 * H:4 * H])
        c_new = f * c + i * g
        h_new = o * jnp.tanh(c_new)
        return h_new, c_new

    x = jnp.reshape(source, (T, B, D))
    h = jnp.zeros((B, H), jnp.float32)
    c = jnp.zeros((B, H), jnp.float32)
    for t in range(T):
        h, c = cell(x[t], h, c, w_ih_enc, w_hh_enc)

    dec_in = source[:, -1, :]
    outs = []
    for _ in range(ts_out):
        h, c = cell(dec_in, h, c, w_ih_dec, w_hh_dec)
        y = h @ w_fc.T + b_fc
        outs.append(y)
        dec_in = y
    outputs = jnp.stack(outs, axis=0)                    # (ts_out, B, OD)
    return jnp.transpose(jnp.squeeze(outputs), (1, 0))   # (B, ts_out)


if __name__ == "__main__":
    # Small shapes consistent with the module (output_dim == input_dim == 1
    # is required by the autoregressive feedback and the final permute(1,0)).
    batch, seq_len = 2, 8
    input_dim, hid_dim, output_dim, ts_out = 1, 32, 1, 6

    key = jax.random.PRNGKey(0)
    ks = jax.random.split(key, 7)
    bound = 1.0 / (hid_dim ** 0.5)
    source = jax.random.normal(ks[0], (batch, seq_len, input_dim), jnp.float32)
    w_ih_enc = jax.random.uniform(ks[1], (4 * hid_dim, input_dim), jnp.float32, -bound, bound)
    w_hh_enc = jax.random.uniform(ks[2], (4 * hid_dim, hid_dim), jnp.float32, -bound, bound)
    w_ih_dec = jax.random.uniform(ks[3], (4 * hid_dim, input_dim), jnp.float32, -bound, bound)
    w_hh_dec = jax.random.uniform(ks[4], (4 * hid_dim, hid_dim), jnp.float32, -bound, bound)
    w_fc = jax.random.uniform(ks[5], (output_dim, hid_dim), jnp.float32, -bound, bound)
    b_fc = jax.random.uniform(ks[6], (output_dim,), jnp.float32, -bound, bound)

    fwd = jax.jit(lambda s: seq2seq_forward(s, w_ih_enc, w_hh_enc, w_ih_dec,
                                            w_hh_dec, w_fc, b_fc, ts_out))
    out = fwd(source)
    jax.block_until_ready(out)

    ref = _reference_seq2seq(source, w_ih_enc, w_hh_enc, w_ih_dec, w_hh_dec,
                             w_fc, b_fc, ts_out)
    assert out.shape == (batch, ts_out), out.shape
    # Tolerance relaxed vs. the pure-f32 reference because the kernel's matmul
    # operands are bf16 (f32 accumulation); errors are O(1e-3) on O(0.1) values.
    assert jnp.allclose(out, ref, atol=5e-3, rtol=5e-3), (out, ref)

    print("KERNEL_OK")
</pallas_src>

<mosaic_0001>
module attributes {stable_mosaic.version = 11 : i64} {
  func.func @seq2seq_kernel(%arg0: memref<8x8x1xf32, #tpu.memory_space<vmem>>, %arg1: memref<1x512xf32, #tpu.memory_space<vmem>>, %arg2: memref<128x512xbf16, #tpu.memory_space<vmem>>, %arg3: memref<8x512xf32, #tpu.memory_space<vmem>>, %arg4: memref<128x512xbf16, #tpu.memory_space<vmem>>, %arg5: memref<128x512xbf16, #tpu.memory_space<vmem>>, %arg6: memref<1x512xf32, #tpu.memory_space<vmem>>, %arg7: memref<128x128xbf16, #tpu.memory_space<vmem>>, %arg8: memref<1x128xf32, #tpu.memory_space<vmem>>, %arg9: memref<6x8x128xf32, #tpu.memory_space<vmem>>) attributes {dimension_semantics = [], scalar_prefetch = 0 : i64, scratch_operands = 0 : i64, tpu.core_type = #tpu.core_type<tc>} {
    %c0 = arith.constant 0 : index
    %c0_0 = arith.constant 0 : index
    %0 = vector.load %arg2[%c0, %c0_0] : memref<128x512xbf16, #tpu.memory_space<vmem>>, vector<128x512xbf16>
    %c0_1 = arith.constant 0 : index
    %c0_2 = arith.constant 0 : index
    %1 = vector.load %arg4[%c0_1, %c0_2] : memref<128x512xbf16, #tpu.memory_space<vmem>>, vector<128x512xbf16>
    %c0_3 = arith.constant 0 : index
    %c0_4 = arith.constant 0 : index
    %2 = vector.load %arg5[%c0_3, %c0_4] : memref<128x512xbf16, #tpu.memory_space<vmem>>, vector<128x512xbf16>
    %c0_5 = arith.constant 0 : index
    %c0_6 = arith.constant 0 : index
    %3 = vector.load %arg7[%c0_5, %c0_6] : memref<128x128xbf16, #tpu.memory_space<vmem>>, vector<128x128xbf16>
    %c0_7 = arith.constant 0 : index
    %c0_8 = arith.constant 0 : index
    %4 = vector.load %arg6[%c0_7, %c0_8] : memref<1x512xf32, #tpu.memory_space<vmem>>, vector<1x512xf32>
    %5 = vector.shape_cast %4 : vector<1x512xf32> to vector<1x512xf32>
    %6 = vector.broadcast %5 : vector<1x512xf32> to vector<8x512xf32>
    %c0_9 = arith.constant 0 : index
    %c0_10 = arith.constant 0 : index
    %7 = vector.load %arg8[%c0_9, %c0_10] : memref<1x128xf32, #tpu.memory_space<vmem>>, vector<1x128xf32>
    %8 = vector.shape_cast %7 : vector<1x128xf32> to vector<1x128xf32>
    %9 = vector.broadcast %8 : vector<1x128xf32> to vector<8x128xf32>
    %c0_11 = arith.constant 0 : index
    %c0_12 = arith.constant 0 : index
    %10 = vector.load %arg1[%c0_11, %c0_12] : memref<1x512xf32, #tpu.memory_space<vmem>>, vector<1x512xf32>
    %11 = vector.shape_cast %10 : vector<1x512xf32> to vector<1x512xf32>
    %12 = vector.broadcast %11 : vector<1x512xf32> to vector<8x512xf32>
    %cst = arith.constant 0.000000e+00 : f32
    %13 = vector.broadcast %cst : f32 to vector<8x128xf32>
    %cst_13 = arith.constant 0.000000e+00 : f32
    %14 = vector.broadcast %cst_13 : f32 to vector<8x128xf32>
    %c0_i32 = arith.constant 0 : i32
    %15 = arith.index_cast %c0_i32 : i32 to index
    %c0_14 = arith.constant 0 : index
    %c0_15 = arith.constant 0 : index
    %16 = vector.load %arg0[%15, %c0_14, %c0_15] : memref<8x8x1xf32, #tpu.memory_space<vmem>>, vector<1x8x1xf32>
    %17 = vector.shape_cast %16 : vector<1x8x1xf32> to vector<8x1xf32>
    %18 = vector.broadcast %17 : vector<8x1xf32> to vector<8x512xf32>
    %19 = arith.mulf %12, %18 : vector<8x512xf32>
    %20 = arith.truncf %13 : vector<8x128xf32> to vector<8x128xbf16>
    %cst_16 = arith.constant dense<0.000000e+00> : vector<8x512xf32>
    %21 = tpu.matmul %20, %0, %cst_16 {dimension_numbers = #tpu.dot_dimension_numbers<[1], [0], [0], [1], [0, 0, 1, 1], [], []>} : vector<8x128xbf16>, vector<128x512xbf16>, vector<8x512xf32> -> vector<8x512xf32>
    %22 = arith.addf %19, %21 : vector<8x512xf32>
    %23 = vector.extract_strided_slice %22 {offsets = [0, 0], sizes = [8, 384], strides = [1, 1]} : vector<8x512xf32> to vector<8x384xf32>
    %24 = arith.negf %23 : vector<8x384xf32>
    %25 = math.exp %24 : vector<8x384xf32>
    %cst_17 = arith.constant 1.000000e+00 : f32
    %26 = vector.broadcast %cst_17 : f32 to vector<8x384xf32>
    %27 = arith.addf %26, %25 : vector<8x384xf32>
    %28 = arith.divf %26, %27 : vector<8x384xf32>
    %29 = vector.extract_strided_slice %28 {offsets = [0, 0], sizes = [8, 128], strides = [1, 1]} : vector<8x384xf32> to vector<8x128xf32>
    %30 = vector.extract_strided_slice %28 {offsets = [0, 128], sizes = [8, 128], strides = [1, 1]} : vector<8x384xf32> to vector<8x128xf32>
    %31 = vector.extract_strided_slice %28 {offsets = [0, 256], sizes = [8, 128], strides = [1, 1]} : vector<8x384xf32> to vector<8x128xf32>
    %32 = vector.extract_strided_slice %22 {offsets = [0, 384], sizes = [8, 128], strides = [1, 1]} : vector<8x512xf32> to vector<8x128xf32>
    %33 = math.tanh %32 : vector<8x128xf32>
    %34 = arith.mulf %30, %14 : vector<8x128xf32>
    %35 = arith.mulf %29, %33 : vector<8x128xf32>
    %36 = arith.addf %34, %35 : vector<8x128xf32>
    %37 = math.tanh %36 : vector<8x128xf32>
    %38 = arith.mulf %31, %37 : vector<8x128xf32>
    %c1_i32 = arith.constant 1 : i32
    %39 = arith.index_cast %c1_i32 : i32 to index
    %c0_18 = arith.constant 0 : index
    %c0_19 = arith.constant 0 : index
    %40 = vector.load %arg0[%39, %c0_18, %c0_19] : memref<8x8x1xf32, #tpu.memory_space<vmem>>, vector<1x8x1xf32>
    %41 = vector.shape_cast %40 : vector<1x8x1xf32> to vector<8x1xf32>
    %42 = vector.broadcast %41 : vector<8x1xf32> to vector<8x512xf32>
    %43 = arith.mulf %12, %42 : vector<8x512xf32>
    %44 = arith.truncf %38 : vector<8x128xf32> to vector<8x128xbf16>
    %cst_20 = arith.constant dense<0.000000e+00> : vector<8x512xf32>
    %45 = tpu.matmul %44, %0, %cst_20 {dimension_numbers = #tpu.dot_dimension_numbers<[1], [0], [0], [1], [0, 0, 1, 1], [], []>} : vector<8x128xbf16>, vector<128x512xbf16>, vector<8x512xf32> -> vector<8x512xf32>
    %46 = arith.addf %43, %45 : vector<8x512xf32>
    %47 = vector.extract_strided_slice %46 {offsets = [0, 0], sizes = [8, 384], strides = [1, 1]} : vector<8x512xf32> to vector<8x384xf32>
    %48 = arith.negf %47 : vector<8x384xf32>
    %49 = math.exp %48 : vector<8x384xf32>
    %cst_21 = arith.constant 1.000000e+00 : f32
    %50 = vector.broadcast %cst_21 : f32 to vector<8x384xf32>
    %51 = arith.addf %50, %49 : vector<8x384xf32>
    %52 = arith.divf %50, %51 : vector<8x384xf32>
    %53 = vector.extract_strided_slice %52 {offsets = [0, 0], sizes = [8, 128], strides = [1, 1]} : vector<8x384xf32> to vector<8x128xf32>
    %54 = vector.extract_strided_slice %52 {offsets = [0, 128], sizes = [8, 128], strides = [1, 1]} : vector<8x384xf32> to vector<8x128xf32>
    %55 = vector.extract_strided_slice %52 {offsets = [0, 256], sizes = [8, 128], strides = [1, 1]} : vector<8x384xf32> to vector<8x128xf32>
    %56 = vector.extract_strided_slice %46 {offsets = [0, 384], sizes = [8, 128], strides = [1, 1]} : vector<8x512xf32> to vector<8x128xf32>
    %57 = math.tanh %56 : vector<8x128xf32>
    %58 = arith.mulf %54, %36 : vector<8x128xf32>
    %59 = arith.mulf %53, %57 : vector<8x128xf32>
    %60 = arith.addf %58, %59 : vector<8x128xf32>
    %61 = math.tanh %60 : vector<8x128xf32>
    %62 = arith.mulf %55, %61 : vector<8x128xf32>
    %c2_i32 = arith.constant 2 : i32
    %63 = arith.index_cast %c2_i32 : i32 to index
    %c0_22 = arith.constant 0 : index
    %c0_23 = arith.constant 0 : index
    %64 = vector.load %arg0[%63, %c0_22, %c0_23] : memref<8x8x1xf32, #tpu.memory_space<vmem>>, vector<1x8x1xf32>
    %65 = vector.shape_cast %64 : vector<1x8x1xf32> to vector<8x1xf32>
    %66 = vector.broadcast %65 : vector<8x1xf32> to vector<8x512xf32>
    %67 = arith.mulf %12, %66 : vector<8x512xf32>
    %68 = arith.truncf %62 : vector<8x128xf32> to vector<8x128xbf16>
    %cst_24 = arith.constant dense<0.000000e+00> : vector<8x512xf32>
    %69 = tpu.matmul %68, %0, %cst_24 {dimension_numbers = #tpu.dot_dimension_numbers<[1], [0], [0], [1], [0, 0, 1, 1], [], []>} : vector<8x128xbf16>, vector<128x512xbf16>, vector<8x512xf32> -> vector<8x512xf32>
    %70 = arith.addf %67, %69 : vector<8x512xf32>
    %71 = vector.extract_strided_slice %70 {offsets = [0, 0], sizes = [8, 384], strides = [1, 1]} : vector<8x512xf32> to vector<8x384xf32>
    %72 = arith.negf %71 : vector<8x384xf32>
    %73 = math.exp %72 : vector<8x384xf32>
    %cst_25 = arith.constant 1.000000e+00 : f32
    %74 = vector.broadcast %cst_25 : f32 to vector<8x384xf32>
    %75 = arith.addf %74, %73 : vector<8x384xf32>
    %76 = arith.divf %74, %75 : vector<8x384xf32>
    %77 = vector.extract_strided_slice %76 {offsets = [0, 0], sizes = [8, 128], strides = [1, 1]} : vector<8x384xf32> to vector<8x128xf32>
    %78 = vector.extract_strided_slice %76 {offsets = [0, 128], sizes = [8, 128], strides = [1, 1]} : vector<8x384xf32> to vector<8x128xf32>
    %79 = vector.extract_strided_slice %76 {offsets = [0, 256], sizes = [8, 128], strides = [1, 1]} : vector<8x384xf32> to vector<8x128xf32>
    %80 = vector.extract_strided_slice %70 {offsets = [0, 384], sizes = [8, 128], strides = [1, 1]} : vector<8x512xf32> to vector<8x128xf32>
    %81 = math.tanh %80 : vector<8x128xf32>
    %82 = arith.mulf %78, %60 : vector<8x128xf32>
    %83 = arith.mulf %77, %81 : vector<8x128xf32>
    %84 = arith.addf %82, %83 : vector<8x128xf32>
    %85 = math.tanh %84 : vector<8x128xf32>
    %86 = arith.mulf %79, %85 : vector<8x128xf32>
    %c3_i32 = arith.constant 3 : i32
    %87 = arith.index_cast %c3_i32 : i32 to index
    %c0_26 = arith.constant 0 : index
    %c0_27 = arith.constant 0 : index
    %88 = vector.load %arg0[%87, %c0_26, %c0_27] : memref<8x8x1xf32, #tpu.memory_space<vmem>>, vector<1x8x1xf32>
    %89 = vector.shape_cast %88 : vector<1x8x1xf32> to vector<8x1xf32>
    %90 = vector.broadcast %89 : vector<8x1xf32> to vector<8x512xf32>
    %91 = arith.mulf %12, %90 : vector<8x512xf32>
    %92 = arith.truncf %86 : vector<8x128xf32> to vector<8x128xbf16>
    %cst_28 = arith.constant dense<0.000000e+00> : vector<8x512xf32>
    %93 = tpu.matmul %92, %0, %cst_28 {dimension_numbers = #tpu.dot_dimension_numbers<[1], [0], [0], [1], [0, 0, 1, 1], [], []>} : vector<8x128xbf16>, vector<128x512xbf16>, vector<8x512xf32> -> vector<8x512xf32>
    %94 = arith.addf %91, %93 : vector<8x512xf32>
    %95 = vector.extract_strided_slice %94 {offsets = [0, 0], sizes = [8, 384], strides = [1, 1]} : vector<8x512xf32> to vector<8x384xf32>
    %96 = arith.negf %95 : vector<8x384xf32>
    %97 = math.exp %96 : vector<8x384xf32>
    %cst_29 = arith.constant 1.000000e+00 : f32
    %98 = vector.broadcast %cst_29 : f32 to vector<8x384xf32>
    %99 = arith.addf %98, %97 : vector<8x384xf32>
    %100 = arith.divf %98, %99 : vector<8x384xf32>
    %101 = vector.extract_strided_slice %100 {offsets = [0, 0], sizes = [8, 128], strides = [1, 1]} : vector<8x384xf32> to vector<8x128xf32>
    %102 = vector.extract_strided_slice %100 {offsets = [0, 128], sizes = [8, 128], strides = [1, 1]} : vector<8x384xf32> to vector<8x128xf32>
    %103 = vector.extract_strided_slice %100 {offsets = [0, 256], sizes = [8, 128], strides = [1, 1]} : vector<8x384xf32> to vector<8x128xf32>
    %104 = vector.extract_strided_slice %94 {offsets = [0, 384], sizes = [8, 128], strides = [1, 1]} : vector<8x512xf32> to vector<8x128xf32>
    %105 = math.tanh %104 : vector<8x128xf32>
    %106 = arith.mulf %102, %84 : vector<8x128xf32>
    %107 = arith.mulf %101, %105 : vector<8x128xf32>
    %108 = arith.addf %106, %107 : vector<8x128xf32>
    %109 = math.tanh %108 : vector<8x128xf32>
    %110 = arith.mulf %103, %109 : vector<8x128xf32>
    %c4_i32 = arith.constant 4 : i32
    %111 = arith.index_cast %c4_i32 : i32 to index
    %c0_30 = arith.constant 0 : index
    %c0_31 = arith.constant 0 : index
    %112 = vector.load %arg0[%111, %c0_30, %c0_31] : memref<8x8x1xf32, #tpu.memory_space<vmem>>, vector<1x8x1xf32>
    %113 = vector.shape_cast %112 : vector<1x8x1xf32> to vector<8x1xf32>
    %114 = vector.broadcast %113 : vector<8x1xf32> to vector<8x512xf32>
    %115 = arith.mulf %12, %114 : vector<8x512xf32>
    %116 = arith.truncf %110 : vector<8x128xf32> to vector<8x128xbf16>
    %cst_32 = arith.constant dense<0.000000e+00> : vector<8x512xf32>
    %117 = tpu.matmul %116, %0, %cst_32 {dimension_numbers = #tpu.dot_dimension_numbers<[1], [0], [0], [1], [0, 0, 1, 1], [], []>} : vector<8x128xbf16>, vector<128x512xbf16>, vector<8x512xf32> -> vector<8x512xf32>
    %118 = arith.addf %115, %117 : vector<8x512xf32>
    %119 = vector.extract_strided_slice %118 {offsets = [0, 0], sizes = [8, 384], strides = [1, 1]} : vector<8x512xf32> to vector<8x384xf32>
    %120 = arith.negf %119 : vector<8x384xf32>
    %121 = math.exp %120 : vector<8x384xf32>
    %cst_33 = arith.constant 1.000000e+00 : f32
    %122 = vector.broadcast %cst_33 : f32 to vector<8x384xf32>
    %123 = arith.addf %122, %121 : vector<8x384xf32>
    %124 = arith.divf %122, %123 : vector<8x384xf32>
    %125 = vector.extract_strided_slice %124 {offsets = [0, 0], sizes = [8, 128], strides = [1, 1]} : vector<8x384xf32> to vector<8x128xf32>
    %126 = vector.extract_strided_slice %124 {offsets = [0, 128], sizes = [8, 128], strides = [1, 1]} : vector<8x384xf32> to vector<8x128xf32>
    %127 = vector.extract_strided_slice %124 {offsets = [0, 256], sizes = [8, 128], strides = [1, 1]} : vector<8x384xf32> to vector<8x128xf32>
    %128 = vector.extract_strided_slice %118 {offsets = [0, 384], sizes = [8, 128], strides = [1, 1]} : vector<8x512xf32> to vector<8x128xf32>
    %129 = math.tanh %128 : vector<8x128xf32>
    %130 = arith.mulf %126, %108 : vector<8x128xf32>
    %131 = arith.mulf %125, %129 : vector<8x128xf32>
    %132 = arith.addf %130, %131 : vector<8x128xf32>
    %133 = math.tanh %132 : vector<8x128xf32>
    %134 = arith.mulf %127, %133 : vector<8x128xf32>
    %c5_i32 = arith.constant 5 : i32
    %135 = arith.index_cast %c5_i32 : i32 to index
    %c0_34 = arith.constant 0 : index
    %c0_35 = arith.constant 0 : index
    %136 = vector.load %arg0[%135, %c0_34, %c0_35] : memref<8x8x1xf32, #tpu.memory_space<vmem>>, vector<1x8x1xf32>
    %137 = vector.shape_cast %136 : vector<1x8x1xf32> to vector<8x1xf32>
    %138 = vector.broadcast %137 : vector<8x1xf32> to vector<8x512xf32>
    %139 = arith.mulf %12, %138 : vector<8x512xf32>
    %140 = arith.truncf %134 : vector<8x128xf32> to vector<8x128xbf16>
    %cst_36 = arith.constant dense<0.000000e+00> : vector<8x512xf32>
    %141 = tpu.matmul %140, %0, %cst_36 {dimension_numbers = #tpu.dot_dimension_numbers<[1], [0], [0], [1], [0, 0, 1, 1], [], []>} : vector<8x128xbf16>, vector<128x512xbf16>, vector<8x512xf32> -> vector<8x512xf32>
    %142 = arith.addf %139, %141 : vector<8x512xf32>
    %143 = vector.extract_strided_slice %142 {offsets = [0, 0], sizes = [8, 384], strides = [1, 1]} : vector<8x512xf32> to vector<8x384xf32>
    %144 = arith.negf %143 : vector<8x384xf32>
    %145 = math.exp %144 : vector<8x384xf32>
    %cst_37 = arith.constant 1.000000e+00 : f32
    %146 = vector.broadcast %cst_37 : f32 to vector<8x384xf32>
    %147 = arith.addf %146, %145 : vector<8x384xf32>
    %148 = arith.divf %146, %147 : vector<8x384xf32>
    %149 = vector.extract_strided_slice %148 {offsets = [0, 0], sizes = [8, 128], strides = [1, 1]} : vector<8x384xf32> to vector<8x128xf32>
    %150 = vector.extract_strided_slice %148 {offsets = [0, 128], sizes = [8, 128], strides = [1, 1]} : vector<8x384xf32> to vector<8x128xf32>
    %151 = vector.extract_strided_slice %148 {offsets = [0, 256], sizes = [8, 128], strides = [1, 1]} : vector<8x384xf32> to vector<8x128xf32>
    %152 = vector.extract_strided_slice %142 {offsets = [0, 384], sizes = [8, 128], strides = [1, 1]} : vector<8x512xf32> to vector<8x128xf32>
    %153 = math.tanh %152 : vector<8x128xf32>
    %154 = arith.mulf %150, %132 : vector<8x128xf32>
    %155 = arith.mulf %149, %153 : vector<8x128xf32>
    %156 = arith.addf %154, %155 : vector<8x128xf32>
    %157 = math.tanh %156 : vector<8x128xf32>
    %158 = arith.mulf %151, %157 : vector<8x128xf32>
    %c6_i32 = arith.constant 6 : i32
    %159 = arith.index_cast %c6_i32 : i32 to index
    %c0_38 = arith.constant 0 : index
    %c0_39 = arith.constant 0 : index
    %160 = vector.load %arg0[%159, %c0_38, %c0_39] : memref<8x8x1xf32, #tpu.memory_space<vmem>>, vector<1x8x1xf32>
    %161 = vector.shape_cast %160 : vector<1x8x1xf32> to vector<8x1xf32>
    %162 = vector.broadcast %161 : vector<8x1xf32> to vector<8x512xf32>
    %163 = arith.mulf %12, %162 : vector<8x512xf32>
    %164 = arith.truncf %158 : vector<8x128xf32> to vector<8x128xbf16>
    %cst_40 = arith.constant dense<0.000000e+00> : vector<8x512xf32>
    %165 = tpu.matmul %164, %0, %cst_40 {dimension_numbers = #tpu.dot_dimension_numbers<[1], [0], [0], [1], [0, 0, 1, 1], [], []>} : vector<8x128xbf16>, vector<128x512xbf16>, vector<8x512xf32> -> vector<8x512xf32>
    %166 = arith.addf %163, %165 : vector<8x512xf32>
    %167 = vector.extract_strided_slice %166 {offsets = [0, 0], sizes = [8, 384], strides = [1, 1]} : vector<8x512xf32> to vector<8x384xf32>
    %168 = arith.negf %167 : vector<8x384xf32>
    %169 = math.exp %168 : vector<8x384xf32>
    %cst_41 = arith.constant 1.000000e+00 : f32
    %170 = vector.broadcast %cst_41 : f32 to vector<8x384xf32>
    %171 = arith.addf %170, %169 : vector<8x384xf32>
    %172 = arith.divf %170, %171 : vector<8x384xf32>
    %173 = vector.extract_strided_slice %172 {offsets = [0, 0], sizes = [8, 128], strides = [1, 1]} : vector<8x384xf32> to vector<8x128xf32>
    %174 = vector.extract_strided_slice %172 {offsets = [0, 128], sizes = [8, 128], strides = [1, 1]} : vector<8x384xf32> to vector<8x128xf32>
    %175 = vector.extract_strided_slice %172 {offsets = [0, 256], sizes = [8, 128], strides = [1, 1]} : vector<8x384xf32> to vector<8x128xf32>
    %176 = vector.extract_strided_slice %166 {offsets = [0, 384], sizes = [8, 128], strides = [1, 1]} : vector<8x512xf32> to vector<8x128xf32>
    %177 = math.tanh %176 : vector<8x128xf32>
    %178 = arith.mulf %174, %156 : vector<8x128xf32>
    %179 = arith.mulf %173, %177 : vector<8x128xf32>
    %180 = arith.addf %178, %179 : vector<8x128xf32>
    %181 = math.tanh %180 : vector<8x128xf32>
    %182 = arith.mulf %175, %181 : vector<8x128xf32>
    %c7_i32 = arith.constant 7 : i32
    %183 = arith.index_cast %c7_i32 : i32 to index
    %c0_42 = arith.constant 0 : index
    %c0_43 = arith.constant 0 : index
    %184 = vector.load %arg0[%183, %c0_42, %c0_43] : memref<8x8x1xf32, #tpu.memory_space<vmem>>, vector<1x8x1xf32>
    %185 = vector.shape_cast %184 : vector<1x8x1xf32> to vector<8x1xf32>
    %186 = vector.broadcast %185 : vector<8x1xf32> to vector<8x512xf32>
    %187 = arith.mulf %12, %186 : vector<8x512xf32>
    %188 = arith.truncf %182 : vector<8x128xf32> to vector<8x128xbf16>
    %cst_44 = arith.constant dense<0.000000e+00> : vector<8x512xf32>
    %189 = tpu.matmul %188, %0, %cst_44 {dimension_numbers = #tpu.dot_dimension_numbers<[1], [0], [0], [1], [0, 0, 1, 1], [], []>} : vector<8x128xbf16>, vector<128x512xbf16>, vector<8x512xf32> -> vector<8x512xf32>
    %190 = arith.addf %187, %189 : vector<8x512xf32>
    %191 = vector.extract_strided_slice %190 {offsets = [0, 0], sizes = [8, 384], strides = [1, 1]} : vector<8x512xf32> to vector<8x384xf32>
    %192 = arith.negf %191 : vector<8x384xf32>
    %193 = math.exp %192 : vector<8x384xf32>
    %cst_45 = arith.constant 1.000000e+00 : f32
    %194 = vector.broadcast %cst_45 : f32 to vector<8x384xf32>
    %195 = arith.addf %194, %193 : vector<8x384xf32>
    %196 = arith.divf %194, %195 : vector<8x384xf32>
    %197 = vector.extract_strided_slice %196 {offsets = [0, 0], sizes = [8, 128], strides = [1, 1]} : vector<8x384xf32> to vector<8x128xf32>
    %198 = vector.extract_strided_slice %196 {offsets = [0, 128], sizes = [8, 128], strides = [1, 1]} : vector<8x384xf32> to vector<8x128xf32>
    %199 = vector.extract_strided_slice %196 {offsets = [0, 256], sizes = [8, 128], strides = [1, 1]} : vector<8x384xf32> to vector<8x128xf32>
    %200 = vector.extract_strided_slice %190 {offsets = [0, 384], sizes = [8, 128], strides = [1, 1]} : vector<8x512xf32> to vector<8x128xf32>
    %201 = math.tanh %200 : vector<8x128xf32>
    %202 = arith.mulf %198, %180 : vector<8x128xf32>
    %203 = arith.mulf %197, %201 : vector<8x128xf32>
    %204 = arith.addf %202, %203 : vector<8x128xf32>
    %205 = math.tanh %204 : vector<8x128xf32>
    %206 = arith.mulf %199, %205 : vector<8x128xf32>
    %c8_i32 = arith.constant 8 : i32
    %c0_46 = arith.constant 0 : index
    %c0_47 = arith.constant 0 : index
    %207 = vector.load %arg3[%c0_46, %c0_47] : memref<8x512xf32, #tpu.memory_space<vmem>>, vector<8x512xf32>
    %c0_i32_48 = arith.constant 0 : i32
    %208 = arith.truncf %206 : vector<8x128xf32> to vector<8x128xbf16>
    %cst_49 = arith.constant dense<0.000000e+00> : vector<8x512xf32>
    %209 = tpu.matmul %208, %1, %cst_49 {dimension_numbers = #tpu.dot_dimension_numbers<[1], [0], [0], [1], [0, 0, 1, 1], [], []>} : vector<8x128xbf16>, vector<128x512xbf16>, vector<8x512xf32> -> vector<8x512xf32>
    %210 = arith.addf %207, %209 : vector<8x512xf32>
    %211 = vector.extract_strided_slice %210 {offsets = [0, 0], sizes = [8, 384], strides = [1, 1]} : vector<8x512xf32> to vector<8x384xf32>
    %212 = arith.negf %211 : vector<8x384xf32>
    %213 = math.exp %212 : vector<8x384xf32>
    %cst_50 = arith.constant 1.000000e+00 : f32
    %214 = vector.broadcast %cst_50 : f32 to vector<8x384xf32>
    %215 = arith.addf %214, %213 : vector<8x384xf32>
    %216 = arith.divf %214, %215 : vector<8x384xf32>
    %217 = vector.extract_strided_slice %216 {offsets = [0, 0], sizes = [8, 128], strides = [1, 1]} : vector<8x384xf32> to vector<8x128xf32>
    %218 = vector.extract_strided_slice %216 {offsets = [0, 128], sizes = [8, 128], strides = [1, 1]} : vector<8x384xf32> to vector<8x128xf32>
    %219 = vector.extract_strided_slice %216 {offsets = [0, 256], sizes = [8, 128], strides = [1, 1]} : vector<8x384xf32> to vector<8x128xf32>
    %220 = vector.extract_strided_slice %210 {offsets = [0, 384], sizes = [8, 128], strides = [1, 1]} : vector<8x512xf32> to vector<8x128xf32>
    %221 = math.tanh %220 : vector<8x128xf32>
    %222 = arith.mulf %218, %204 : vector<8x128xf32>
    %223 = arith.mulf %217, %221 : vector<8x128xf32>
    %224 = arith.addf %222, %223 : vector<8x128xf32>
    %225 = math.tanh %224 : vector<8x128xf32>
    %226 = arith.mulf %219, %225 : vector<8x128xf32>
    %227 = arith.truncf %226 : vector<8x128xf32> to vector<8x128xbf16>
    %cst_51 = arith.constant dense<0.000000e+00> : vector<8x512xf32>
    %228 = tpu.matmul %227, %2, %cst_51 {dimension_numbers = #tpu.dot_dimension_numbers<[1], [0], [0], [1], [0, 0, 1, 1], [], []>} : vector<8x128xbf16>, vector<128x512xbf16>, vector<8x512xf32> -> vector<8x512xf32>
    %229 = arith.addf %228, %6 : vector<8x512xf32>
    %cst_52 = arith.constant dense<0.000000e+00> : vector<8x128xf32>
    %230 = tpu.matmul %227, %3, %cst_52 {dimension_numbers = #tpu.dot_dimension_numbers<[1], [0], [0], [1], [0, 0, 1, 1], [], []>} : vector<8x128xbf16>, vector<128x128xbf16>, vector<8x128xf32> -> vector<8x128xf32>
    %231 = arith.addf %230, %9 : vector<8x128xf32>
    %232 = arith.index_cast %c0_i32_48 : i32 to index
    %c0_53 = arith.constant 0 : index
    %c0_54 = arith.constant 0 : index
    %233 = vector.load %arg9[%232, %c0_53, %c0_54] : memref<6x8x128xf32, #tpu.memory_space<vmem>>, vector<1x8x128xf32>
    %234 = vector.shape_cast %233 : vector<1x8x128xf32> to vector<8x128xf32>
    %235 = vector.shape_cast %231 : vector<8x128xf32> to vector<1x8x128xf32>
    tpu.vector_store %arg9[%232, %c0_53, %c0_54], %235 {strides = array<i32>} : memref<6x8x128xf32, #tpu.memory_space<vmem>>, vector<1x8x128xf32>,
    %c1_i32_55 = arith.constant 1 : i32
    %236 = arith.truncf %226 : vector<8x128xf32> to vector<8x128xbf16>
    %cst_56 = arith.constant dense<0.000000e+00> : vector<8x512xf32>
    %237 = tpu.matmul %236, %1, %cst_56 {dimension_numbers = #tpu.dot_dimension_numbers<[1], [0], [0], [1], [0, 0, 1, 1], [], []>} : vector<8x128xbf16>, vector<128x512xbf16>, vector<8x512xf32> -> vector<8x512xf32>
    %238 = arith.addf %229, %237 : vector<8x512xf32>
    %239 = vector.extract_strided_slice %238 {offsets = [0, 0], sizes = [8, 384], strides = [1, 1]} : vector<8x512xf32> to vector<8x384xf32>
    %240 = arith.negf %239 : vector<8x384xf32>
    %241 = math.exp %240 : vector<8x384xf32>
    %cst_57 = arith.constant 1.000000e+00 : f32
    %242 = vector.broadcast %cst_57 : f32 to vector<8x384xf32>
    %243 = arith.addf %242, %241 : vector<8x384xf32>
    %244 = arith.divf %242, %243 : vector<8x384xf32>
    %245 = vector.extract_strided_slice %244 {offsets = [0, 0], sizes = [8, 128], strides = [1, 1]} : vector<8x384xf32> to vector<8x128xf32>
    %246 = vector.extract_strided_slice %244 {offsets = [0, 128], sizes = [8, 128], strides = [1, 1]} : vector<8x384xf32> to vector<8x128xf32>
    %247 = vector.extract_strided_slice %244 {offsets = [0, 256], sizes = [8, 128], strides = [1, 1]} : vector<8x384xf32> to vector<8x128xf32>
    %248 = vector.extract_strided_slice %238 {offsets = [0, 384], sizes = [8, 128], strides = [1, 1]} : vector<8x512xf32> to vector<8x128xf32>
    %249 = math.tanh %248 : vector<8x128xf32>
    %250 = arith.mulf %246, %224 : vector<8x128xf32>
    %251 = arith.mulf %245, %249 : vector<8x128xf32>
    %252 = arith.addf %250, %251 : vector<8x128xf32>
    %253 = math.tanh %252 : vector<8x128xf32>
    %254 = arith.mulf %247, %253 : vector<8x128xf32>
    %255 = arith.truncf %254 : vector<8x128xf32> to vector<8x128xbf16>
    %cst_58 = arith.constant dense<0.000000e+00> : vector<8x512xf32>
    %256 = tpu.matmul %255, %2, %cst_58 {dimension_numbers = #tpu.dot_dimension_numbers<[1], [0], [0], [1], [0, 0, 1, 1], [], []>} : vector<8x128xbf16>, vector<128x512xbf16>, vector<8x512xf32> -> vector<8x512xf32>
    %257 = arith.addf %256, %6 : vector<8x512xf32>
    %cst_59 = arith.constant dense<0.000000e+00> : vector<8x128xf32>
    %258 = tpu.matmul %255, %3, %cst_59 {dimension_numbers = #tpu.dot_dimension_numbers<[1], [0], [0], [1], [0, 0, 1, 1], [], []>} : vector<8x128xbf16>, vector<128x128xbf16>, vector<8x128xf32> -> vector<8x128xf32>
    %259 = arith.addf %258, %9 : vector<8x128xf32>
    %260 = arith.index_cast %c1_i32_55 : i32 to index
    %c0_60 = arith.constant 0 : index
    %c0_61 = arith.constant 0 : index
    %261 = vector.load %arg9[%260, %c0_60, %c0_61] : memref<6x8x128xf32, #tpu.memory_space<vmem>>, vector<1x8x128xf32>
    %262 = vector.shape_cast %261 : vector<1x8x128xf32> to vector<8x128xf32>
    %263 = vector.shape_cast %259 : vector<8x128xf32> to vector<1x8x128xf32>
    tpu.vector_store %arg9[%260, %c0_60, %c0_61], %263 {strides = array<i32>} : memref<6x8x128xf32, #tpu.memory_space<vmem>>, vector<1x8x128xf32>,
    %c2_i32_62 = arith.constant 2 : i32
    %264 = arith.truncf %254 : vector<8x128xf32> to vector<8x128xbf16>
    %cst_63 = arith.constant dense<0.000000e+00> : vector<8x512xf32>
    %265 = tpu.matmul %264, %1, %cst_63 {dimension_numbers = #tpu.dot_dimension_numbers<[1], [0], [0], [1], [0, 0, 1, 1], [], []>} : vector<8x128xbf16>, vector<128x512xbf16>, vector<8x512xf32> -> vector<8x512xf32>
    %266 = arith.addf %257, %265 : vector<8x512xf32>
    %267 = vector.extract_strided_slice %266 {offsets = [0, 0], sizes = [8, 384], strides = [1, 1]} : vector<8x512xf32> to vector<8x384xf32>
    %268 = arith.negf %267 : vector<8x384xf32>
    %269 = math.exp %268 : vector<8x384xf32>
    %cst_64 = arith.constant 1.000000e+00 : f32
    %270 = vector.broadcast %cst_64 : f32 to vector<8x384xf32>
    %271 = arith.addf %270, %269 : vector<8x384xf32>
    %272 = arith.divf %270, %271 : vector<8x384xf32>
    %273 = vector.extract_strided_slice %272 {offsets = [0, 0], sizes = [8, 128], strides = [1, 1]} : vector<8x384xf32> to vector<8x128xf32>
    %274 = vector.extract_strided_slice %272 {offsets = [0, 128], sizes = [8, 128], strides = [1, 1]} : vector<8x384xf32> to vector<8x128xf32>
    %275 = vector.extract_strided_slice %272 {offsets = [0, 256], sizes = [8, 128], strides = [1, 1]} : vector<8x384xf32> to vector<8x128xf32>
    %276 = vector.extract_strided_slice %266 {offsets = [0, 384], sizes = [8, 128], strides = [1, 1]} : vector<8x512xf32> to vector<8x128xf32>
    %277 = math.tanh %276 : vector<8x128xf32>
    %278 = arith.mulf %274, %252 : vector<8x128xf32>
    %279 = arith.mulf %273, %277 : vector<8x128xf32>
    %280 = arith.addf %278, %279 : vector<8x128xf32>
    %281 = math.tanh %280 : vector<8x128xf32>
    %282 = arith.mulf %275, %281 : vector<8x128xf32>
    %283 = arith.truncf %282 : vector<8x128xf32> to vector<8x128xbf16>
    %cst_65 = arith.constant dense<0.000000e+00> : vector<8x512xf32>
    %284 = tpu.matmul %283, %2, %cst_65 {dimension_numbers = #tpu.dot_dimension_numbers<[1], [0], [0], [1], [0, 0, 1, 1], [], []>} : vector<8x128xbf16>, vector<128x512xbf16>, vector<8x512xf32> -> vector<8x512xf32>
    %285 = arith.addf %284, %6 : vector<8x512xf32>
    %cst_66 = arith.constant dense<0.000000e+00> : vector<8x128xf32>
    %286 = tpu.matmul %283, %3, %cst_66 {dimension_numbers = #tpu.dot_dimension_numbers<[1], [0], [0], [1], [0, 0, 1, 1], [], []>} : vector<8x128xbf16>, vector<128x128xbf16>, vector<8x128xf32> -> vector<8x128xf32>
    %287 = arith.addf %286, %9 : vector<8x128xf32>
    %288 = arith.index_cast %c2_i32_62 : i32 to index
    %c0_67 = arith.constant 0 : index
    %c0_68 = arith.constant 0 : index
    %289 = vector.load %arg9[%288, %c0_67, %c0_68] : memref<6x8x128xf32, #tpu.memory_space<vmem>>, vector<1x8x128xf32>
    %290 = vector.shape_cast %289 : vector<1x8x128xf32> to vector<8x128xf32>
    %291 = vector.shape_cast %287 : vector<8x128xf32> to vector<1x8x128xf32>
    tpu.vector_store %arg9[%288, %c0_67, %c0_68], %291 {strides = array<i32>} : memref<6x8x128xf32, #tpu.memory_space<vmem>>, vector<1x8x128xf32>,
    %c3_i32_69 = arith.constant 3 : i32
    %292 = arith.truncf %282 : vector<8x128xf32> to vector<8x128xbf16>
    %cst_70 = arith.constant dense<0.000000e+00> : vector<8x512xf32>
    %293 = tpu.matmul %292, %1, %cst_70 {dimension_numbers = #tpu.dot_dimension_numbers<[1], [0], [0], [1], [0, 0, 1, 1], [], []>} : vector<8x128xbf16>, vector<128x512xbf16>, vector<8x512xf32> -> vector<8x512xf32>
    %294 = arith.addf %285, %293 : vector<8x512xf32>
    %295 = vector.extract_strided_slice %294 {offsets = [0, 0], sizes = [8, 384], strides = [1, 1]} : vector<8x512xf32> to vector<8x384xf32>
    %296 = arith.negf %295 : vector<8x384xf32>
    %297 = math.exp %296 : vector<8x384xf32>
    %cst_71 = arith.constant 1.000000e+00 : f32
    %298 = vector.broadcast %cst_71 : f32 to vector<8x384xf32>
    %299 = arith.addf %298, %297 : vector<8x384xf32>
    %300 = arith.divf %298, %299 : vector<8x384xf32>
    %301 = vector.extract_strided_slice %300 {offsets = [0, 0], sizes = [8, 128], strides = [1, 1]} : vector<8x384xf32> to vector<8x128xf32>
    %302 = vector.extract_strided_slice %300 {offsets = [0, 128], sizes = [8, 128], strides = [1, 1]} : vector<8x384xf32> to vector<8x128xf32>
    %303 = vector.extract_strided_slice %300 {offsets = [0, 256], sizes = [8, 128], strides = [1, 1]} : vector<8x384xf32> to vector<8x128xf32>
    %304 = vector.extract_strided_slice %294 {offsets = [0, 384], sizes = [8, 128], strides = [1, 1]} : vector<8x512xf32> to vector<8x128xf32>
    %305 = math.tanh %304 : vector<8x128xf32>
    %306 = arith.mulf %302, %280 : vector<8x128xf32>
    %307 = arith.mulf %301, %305 : vector<8x128xf32>
    %308 = arith.addf %306, %307 : vector<8x128xf32>
    %309 = math.tanh %308 : vector<8x128xf32>
    %310 = arith.mulf %303, %309 : vector<8x128xf32>
    %311 = arith.truncf %310 : vector<8x128xf32> to vector<8x128xbf16>
    %cst_72 = arith.constant dense<0.000000e+00> : vector<8x512xf32>
    %312 = tpu.matmul %311, %2, %cst_72 {dimension_numbers = #tpu.dot_dimension_numbers<[1], [0], [0], [1], [0, 0, 1, 1], [], []>} : vector<8x128xbf16>, vector<128x512xbf16>, vector<8x512xf32> -> vector<8x512xf32>
    %313 = arith.addf %312, %6 : vector<8x512xf32>
    %cst_73 = arith.constant dense<0.000000e+00> : vector<8x128xf32>
    %314 = tpu.matmul %311, %3, %cst_73 {dimension_numbers = #tpu.dot_dimension_numbers<[1], [0], [0], [1], [0, 0, 1, 1], [], []>} : vector<8x128xbf16>, vector<128x128xbf16>, vector<8x128xf32> -> vector<8x128xf32>
    %315 = arith.addf %314, %9 : vector<8x128xf32>
    %316 = arith.index_cast %c3_i32_69 : i32 to index
    %c0_74 = arith.constant 0 : index
    %c0_75 = arith.constant 0 : index
    %317 = vector.load %arg9[%316, %c0_74, %c0_75] : memref<6x8x128xf32, #tpu.memory_space<vmem>>, vector<1x8x128xf32>
    %318 = vector.shape_cast %317 : vector<1x8x128xf32> to vector<8x128xf32>
    %319 = vector.shape_cast %315 : vector<8x128xf32> to vector<1x8x128xf32>
    tpu.vector_store %arg9[%316, %c0_74, %c0_75], %319 {strides = array<i32>} : memref<6x8x128xf32, #tpu.memory_space<vmem>>, vector<1x8x128xf32>,
    %c4_i32_76 = arith.constant 4 : i32
    %320 = arith.truncf %310 : vector<8x128xf32> to vector<8x128xbf16>
    %cst_77 = arith.constant dense<0.000000e+00> : vector<8x512xf32>
    %321 = tpu.matmul %320, %1, %cst_77 {dimension_numbers = #tpu.dot_dimension_numbers<[1], [0], [0], [1], [0, 0, 1, 1], [], []>} : vector<8x128xbf16>, vector<128x512xbf16>, vector<8x512xf32> -> vector<8x512xf32>
    %322 = arith.addf %313, %321 : vector<8x512xf32>
    %323 = vector.extract_strided_slice %322 {offsets = [0, 0], sizes = [8, 384], strides = [1, 1]} : vector<8x512xf32> to vector<8x384xf32>
    %324 = arith.negf %323 : vector<8x384xf32>
    %325 = math.exp %324 : vector<8x384xf32>
    %cst_78 = arith.constant 1.000000e+00 : f32
    %326 = vector.broadcast %cst_78 : f32 to vector<8x384xf32>
    %327 = arith.addf %326, %325 : vector<8x384xf32>
    %328 = arith.divf %326, %327 : vector<8x384xf32>
    %329 = vector.extract_strided_slice %328 {offsets = [0, 0], sizes = [8, 128], strides = [1, 1]} : vector<8x384xf32> to vector<8x128xf32>
    %330 = vector.extract_strided_slice %328 {offsets = [0, 128], sizes = [8, 128], strides = [1, 1]} : vector<8x384xf32> to vector<8x128xf32>
    %331 = vector.extract_strided_slice %328 {offsets = [0, 256], sizes = [8, 128], strides = [1, 1]} : vector<8x384xf32> to vector<8x128xf32>
    %332 = vector.extract_strided_slice %322 {offsets = [0, 384], sizes = [8, 128], strides = [1, 1]} : vector<8x512xf32> to vector<8x128xf32>
    %333 = math.tanh %332 : vector<8x128xf32>
    %334 = arith.mulf %330, %308 : vector<8x128xf32>
    %335 = arith.mulf %329, %333 : vector<8x128xf32>
    %336 = arith.addf %334, %335 : vector<8x128xf32>
    %337 = math.tanh %336 : vector<8x128xf32>
    %338 = arith.mulf %331, %337 : vector<8x128xf32>
    %339 = arith.truncf %338 : vector<8x128xf32> to vector<8x128xbf16>
    %cst_79 = arith.constant dense<0.000000e+00> : vector<8x512xf32>
    %340 = tpu.matmul %339, %2, %cst_79 {dimension_numbers = #tpu.dot_dimension_numbers<[1], [0], [0], [1], [0, 0, 1, 1], [], []>} : vector<8x128xbf16>, vector<128x512xbf16>, vector<8x512xf32> -> vector<8x512xf32>
    %341 = arith.addf %340, %6 : vector<8x512xf32>
    %cst_80 = arith.constant dense<0.000000e+00> : vector<8x128xf32>
    %342 = tpu.matmul %339, %3, %cst_80 {dimension_numbers = #tpu.dot_dimension_numbers<[1], [0], [0], [1], [0, 0, 1, 1], [], []>} : vector<8x128xbf16>, vector<128x128xbf16>, vector<8x128xf32> -> vector<8x128xf32>
    %343 = arith.addf %342, %9 : vector<8x128xf32>
    %344 = arith.index_cast %c4_i32_76 : i32 to index
    %c0_81 = arith.constant 0 : index
    %c0_82 = arith.constant 0 : index
    %345 = vector.load %arg9[%344, %c0_81, %c0_82] : memref<6x8x128xf32, #tpu.memory_space<vmem>>, vector<1x8x128xf32>
    %346 = vector.shape_cast %345 : vector<1x8x128xf32> to vector<8x128xf32>
    %347 = vector.shape_cast %343 : vector<8x128xf32> to vector<1x8x128xf32>
    tpu.vector_store %arg9[%344, %c0_81, %c0_82], %347 {strides = array<i32>} : memref<6x8x128xf32, #tpu.memory_space<vmem>>, vector<1x8x128xf32>,
    %c5_i32_83 = arith.constant 5 : i32
    %348 = arith.truncf %338 : vector<8x128xf32> to vector<8x128xbf16>
    %cst_84 = arith.constant dense<0.000000e+00> : vector<8x512xf32>
    %349 = tpu.matmul %348, %1, %cst_84 {dimension_numbers = #tpu.dot_dimension_numbers<[1], [0], [0], [1], [0, 0, 1, 1], [], []>} : vector<8x128xbf16>, vector<128x512xbf16>, vector<8x512xf32> -> vector<8x512xf32>
    %350 = arith.addf %341, %349 : vector<8x512xf32>
    %351 = vector.extract_strided_slice %350 {offsets = [0, 0], sizes = [8, 384], strides = [1, 1]} : vector<8x512xf32> to vector<8x384xf32>
    %352 = arith.negf %351 : vector<8x384xf32>
    %353 = math.exp %352 : vector<8x384xf32>
    %cst_85 = arith.constant 1.000000e+00 : f32
    %354 = vector.broadcast %cst_85 : f32 to vector<8x384xf32>
    %355 = arith.addf %354, %353 : vector<8x384xf32>
    %356 = arith.divf %354, %355 : vector<8x384xf32>
    %357 = vector.extract_strided_slice %356 {offsets = [0, 0], sizes = [8, 128], strides = [1, 1]} : vector<8x384xf32> to vector<8x128xf32>
    %358 = vector.extract_strided_slice %356 {offsets = [0, 128], sizes = [8, 128], strides = [1, 1]} : vector<8x384xf32> to vector<8x128xf32>
    %359 = vector.extract_strided_slice %356 {offsets = [0, 256], sizes = [8, 128], strides = [1, 1]} : vector<8x384xf32> to vector<8x128xf32>
    %360 = vector.extract_strided_slice %350 {offsets = [0, 384], sizes = [8, 128], strides = [1, 1]} : vector<8x512xf32> to vector<8x128xf32>
    %361 = math.tanh %360 : vector<8x128xf32>
    %362 = arith.mulf %358, %336 : vector<8x128xf32>
    %363 = arith.mulf %357, %361 : vector<8x128xf32>
    %364 = arith.addf %362, %363 : vector<8x128xf32>
    %365 = math.tanh %364 : vector<8x128xf32>
    %366 = arith.mulf %359, %365 : vector<8x128xf32>
    %367 = arith.truncf %366 : vector<8x128xf32> to vector<8x128xbf16>
    %cst_86 = arith.constant dense<0.000000e+00> : vector<8x512xf32>
    %368 = tpu.matmul %367, %2, %cst_86 {dimension_numbers = #tpu.dot_dimension_numbers<[1], [0], [0], [1], [0, 0, 1, 1], [], []>} : vector<8x128xbf16>, vector<128x512xbf16>, vector<8x512xf32> -> vector<8x512xf32>
    %369 = arith.addf %368, %6 : vector<8x512xf32>
    %cst_87 = arith.constant dense<0.000000e+00> : vector<8x128xf32>
    %370 = tpu.matmul %367, %3, %cst_87 {dimension_numbers = #tpu.dot_dimension_numbers<[1], [0], [0], [1], [0, 0, 1, 1], [], []>} : vector<8x128xbf16>, vector<128x128xbf16>, vector<8x128xf32> -> vector<8x128xf32>
    %371 = arith.addf %370, %9 : vector<8x128xf32>
    %372 = arith.index_cast %c5_i32_83 : i32 to index
    %c0_88 = arith.constant 0 : index
    %c0_89 = arith.constant 0 : index
    %373 = vector.load %arg9[%372, %c0_88, %c0_89] : memref<6x8x128xf32, #tpu.memory_space<vmem>>, vector<1x8x128xf32>
    %374 = vector.shape_cast %373 : vector<1x8x128xf32> to vector<8x128xf32>
    %375 = vector.shape_cast %371 : vector<8x128xf32> to vector<1x8x128xf32>
    tpu.vector_store %arg9[%372, %c0_88, %c0_89], %375 {strides = array<i32>} : memref<6x8x128xf32, #tpu.memory_space<vmem>>, vector<1x8x128xf32>,
    %c6_i32_90 = arith.constant 6 : i32
    return
  }
}

</mosaic_0001>

<llo_original>
// kernel: _lambda_.1
$region0: #{_lambda_.1}
  #allocation0 [shape = 'u32[]', space=smem, size = 0x4, offset = 0x4, fixed_abs, tag = 'smem constant byte address 0x4 - core index']
  #allocation1 [shape = 'u32[144,128]{1,0:T(1,128)}', space=vmem, size = 0x12000, scoped, tag = 'internal scratch']
  %s0 = inlined_call_operand.vmem [shape: f32[8,8,1], index: 0, kind: input, shape index: {}]
  %s1 = inlined_call_operand.vmem [shape: f32[1,512], index: 1, kind: input, shape index: {}]
  %s2 = inlined_call_operand.vmem [shape: bf16[128,512], index: 2, kind: input, shape index: {}]
  %s3 = inlined_call_operand.vmem [shape: f32[8,512], index: 3, kind: input, shape index: {}]
  %s4 = inlined_call_operand.vmem [shape: bf16[128,512], index: 4, kind: input, shape index: {}]
  %s5 = inlined_call_operand.vmem [shape: bf16[128,512], index: 5, kind: input, shape index: {}]
  %s6 = inlined_call_operand.vmem [shape: f32[1,512], index: 6, kind: input, shape index: {}]
  %s7 = inlined_call_operand.vmem [shape: bf16[128,128], index: 7, kind: input, shape index: {}]
  %s8 = inlined_call_operand.vmem [shape: f32[1,128], index: 8, kind: input, shape index: {}]
  %s9 = inlined_call_operand.vmem [shape: f32[6,8,128], index: 9, kind: output, shape index: {}]
  %s10 = sld [smem:[#allocation0]]
  $region46: #{_lambda_.1} parent=0
    _
  %s12 = ssub.s32 1, %s10
  %s13 = scalar_select 0, %s12, %s10
  // Predicated region
  $region2: #{_lambda_.1} parent=0 // pred_check
    _
  $region3: #{_lambda_.1} parent=0 // pred_check_branch
    %15 = sbr.rel (0) target = $region5
  $region4: #{_lambda_.1} parent=0 // pred_region
    _
  $region5: #{_lambda_.1} parent=0 // pred_fallthru
    _
  // Predicated region
  $region6: #{_lambda_.1} parent=0 // pred_check
    _
  $region7: #{_lambda_.1} parent=0 // pred_check_branch
    %17 = sbr.rel (0) target = $region9
  $region8: #{_lambda_.1} parent=0 // pred_region
    _
  $region9: #{_lambda_.1} parent=0 // pred_fallthru
    _
  // Predicated region
  $region10: #{_lambda_.1} parent=0 // pred_check
    _
  $region11: #{_lambda_.1} parent=0 // pred_check_branch
    %19 = sbr.rel (0) target = $region13
  $region12: #{_lambda_.1} parent=0 // pred_region
    _
  $region13: #{_lambda_.1} parent=0 // pred_fallthru
    _
  // Predicated region
  $region14: #{_lambda_.1} parent=0 // pred_check
    _
  $region15: #{_lambda_.1} parent=0 // pred_check_branch
    %21 = sbr.rel (0) target = $region17
  $region16: #{_lambda_.1} parent=0 // pred_region
    _
  $region17: #{_lambda_.1} parent=0 // pred_fallthru
    _
  // Predicated region
  $region18: #{_lambda_.1} parent=0 // pred_check
    _
  $region19: #{_lambda_.1} parent=0 // pred_check_branch
    %23 = sbr.rel (0) target = $region21
  $region20: #{_lambda_.1} parent=0 // pred_region
    _
  $region21: #{_lambda_.1} parent=0 // pred_fallthru
    _
  // Predicated region
  $region22: #{_lambda_.1} parent=0 // pred_check
    _
  $region23: #{_lambda_.1} parent=0 // pred_check_branch
    %25 = sbr.rel (0) target = $region25
  $region24: #{_lambda_.1} parent=0 // pred_region
    _
  $region25: #{_lambda_.1} parent=0 // pred_fallthru
    _
  // Predicated region
  $region26: #{_lambda_.1} parent=0 // pred_check
    _
  $region27: #{_lambda_.1} parent=0 // pred_check_branch
    %27 = sbr.rel (0) target = $region29
  $region28: #{_lambda_.1} parent=0 // pred_region
    _
  $region29: #{_lambda_.1} parent=0 // pred_fallthru
    _
  // Predicated region
  $region30: #{_lambda_.1} parent=0 // pred_check
    _
  $region31: #{_lambda_.1} parent=0 // pred_check_branch
    %29 = sbr.rel (0) target = $region33
  $region32: #{_lambda_.1} parent=0 // pred_region
    _
  $region33: #{_lambda_.1} parent=0 // pred_fallthru
    _
  // Predicated region
  $region34: #{_lambda_.1} parent=0 // pred_check
    _
  $region35: #{_lambda_.1} parent=0 // pred_check_branch
    %31 = sbr.rel (0) target = $region37
  $region36: #{_lambda_.1} parent=0 // pred_region
    _
  $region37: #{_lambda_.1} parent=0 // pred_fallthru
    _
  %v33 = vld [vmem:[%s2] sm:$0xff]
  %v34 = vld [vmem:[%s2 + $0x8] sm:$0xff]
  %v35 = vld [vmem:[%s2 + $0x10] sm:$0xff]
  %v36 = vld [vmem:[%s2 + $0x18] sm:$0xff]
  %v37 = vld [vmem:[%s2 + $0x20] sm:$0xff]
  %v38 = vld [vmem:[%s2 + $0x28] sm:$0xff]
  %v39 = vld [vmem:[%s2 + $0x30] sm:$0xff]
  %v40 = vld [vmem:[%s2 + $0x38] sm:$0xff]
  %v41 = vld [vmem:[%s2 + $0x40] sm:$0xff]
  %v42 = vld [vmem:[%s2 + $0x48] sm:$0xff]
  %v43 = vld [vmem:[%s2 + $0x50] sm:$0xff]
  %v44 = vld [vmem:[%s2 + $0x58] sm:$0xff]
  %v45 = vld [vmem:[%s2 + $0x60] sm:$0xff]
  %v46 = vld [vmem:[%s2 + $0x68] sm:$0xff]
  %v47 = vld [vmem:[%s2 + $0x70] sm:$0xff]
  %v48 = vld [vmem:[%s2 + $0x78] sm:$0xff]
  %v49 = vld [vmem:[%s2 + $0x80] sm:$0xff]
  %v50 = vld [vmem:[%s2 + $0x88] sm:$0xff]
  %v51 = vld [vmem:[%s2 + $0x90] sm:$0xff]
  %v52 = vld [vmem:[%s2 + $0x98] sm:$0xff]
  %v53 = vld [vmem:[%s2 + $0xa0] sm:$0xff]
  %v54 = vld [vmem:[%s2 + $0xa8] sm:$0xff]
  %v55 = vld [vmem:[%s2 + $0xb0] sm:$0xff]
  %v56 = vld [vmem:[%s2 + $0xb8] sm:$0xff]
  %v57 = vld [vmem:[%s2 + $0xc0] sm:$0xff]
  %v58 = vld [vmem:[%s2 + $0xc8] sm:$0xff]
  %v59 = vld [vmem:[%s2 + $0xd0] sm:$0xff]
  %v60 = vld [vmem:[%s2 + $0xd8] sm:$0xff]
  %v61 = vld [vmem:[%s2 + $0xe0] sm:$0xff]
  %v62 = vld [vmem:[%s2 + $0xe8] sm:$0xff]
  %v63 = vld [vmem:[%s2 + $0xf0] sm:$0xff]
  %v64 = vld [vmem:[%s2 + $0xf8] sm:$0xff]
  %v65 = vld [vmem:[%s4] sm:$0xff]
  %v66 = vld [vmem:[%s4 + $0x8] sm:$0xff]
  %v67 = vld [vmem:[%s4 + $0x10] sm:$0xff]
  %v68 = vld [vmem:[%s4 + $0x18] sm:$0xff]
  %v69 = vld [vmem:[%s4 + $0x20] sm:$0xff]
  %v70 = vld [vmem:[%s4 + $0x28] sm:$0xff]
  %v71 = vld [vmem:[%s4 + $0x30] sm:$0xff]
  %v72 = vld [vmem:[%s4 + $0x38] sm:$0xff]
  %v73 = vld [vmem:[%s4 + $0x40] sm:$0xff]
  %v74 = vld [vmem:[%s4 + $0x48] sm:$0xff]
  %v75 = vld [vmem:[%s4 + $0x50] sm:$0xff]
  %v76 = vld [vmem:[%s4 + $0x58] sm:$0xff]
  %v77 = vld [vmem:[%s4 + $0x60] sm:$0xff]
  %v78 = vld [vmem:[%s4 + $0x68] sm:$0xff]
  %v79 = vld [vmem:[%s4 + $0x70] sm:$0xff]
  %v80 = vld [vmem:[%s4 + $0x78] sm:$0xff]
  %v81 = vld [vmem:[%s4 + $0x80] sm:$0xff]
  %v82 = vld [vmem:[%s4 + $0x88] sm:$0xff]
  %v83 = vld [vmem:[%s4 + $0x90] sm:$0xff]
  %v84 = vld [vmem:[%s4 + $0x98] sm:$0xff]
  %v85 = vld [vmem:[%s4 + $0xa0] sm:$0xff]
  %v86 = vld [vmem:[%s4 + $0xa8] sm:$0xff]
  %v87 = vld [vmem:[%s4 + $0xb0] sm:$0xff]
  %v88 = vld [vmem:[%s4 + $0xb8] sm:$0xff]
  %v89 = vld [vmem:[%s4 + $0xc0] sm:$0xff]
  %v90 = vld [vmem:[%s4 + $0xc8] sm:$0xff]
  %v91 = vld [vmem:[%s4 + $0xd0] sm:$0xff]
  %v92 = vld [vmem:[%s4 + $0xd8] sm:$0xff]
  %v93 = vld [vmem:[%s4 + $0xe0] sm:$0xff]
  %v94 = vld [vmem:[%s4 + $0xe8] sm:$0xff]
  %v95 = vld [vmem:[%s4 + $0xf0] sm:$0xff]
  %v96 = vld [vmem:[%s4 + $0xf8] sm:$0xff]
  %v97 = vld [vmem:[%s5] sm:$0xff]
  %v98 = vld [vmem:[%s5 + $0x8] sm:$0xff]
  %v99 = vld [vmem:[%s5 + $0x10] sm:$0xff]
  %v100 = vld [vmem:[%s5 + $0x18] sm:$0xff]
  %v101 = vld [vmem:[%s5 + $0x20] sm:$0xff]
  %v102 = vld [vmem:[%s5 + $0x28] sm:$0xff]
  %v103 = vld [vmem:[%s5 + $0x30] sm:$0xff]
  %v104 = vld [vmem:[%s5 + $0x38] sm:$0xff]
  %v105 = vld [vmem:[%s5 + $0x40] sm:$0xff]
  %v106 = vld [vmem:[%s5 + $0x48] sm:$0xff]
  %v107 = vld [vmem:[%s5 + $0x50] sm:$0xff]
  %v108 = vld [vmem:[%s5 + $0x58] sm:$0xff]
  %v109 = vld [vmem:[%s5 + $0x60] sm:$0xff]
  %v110 = vld [vmem:[%s5 + $0x68] sm:$0xff]
  %v111 = vld [vmem:[%s5 + $0x70] sm:$0xff]
  %v112 = vld [vmem:[%s5 + $0x78] sm:$0xff]
  %v113 = vld [vmem:[%s5 + $0x80] sm:$0xff]
  %v114 = vld [vmem:[%s5 + $0x88] sm:$0xff]
  %v115 = vld [vmem:[%s5 + $0x90] sm:$0xff]
  %v116 = vld [vmem:[%s5 + $0x98] sm:$0xff]
  %v117 = vld [vmem:[%s5 + $0xa0] sm:$0xff]
  %v118 = vld [vmem:[%s5 + $0xa8] sm:$0xff]
  %v119 = vld [vmem:[%s5 + $0xb0] sm:$0xff]
  %v120 = vld [vmem:[%s5 + $0xb8] sm:$0xff]
  %v121 = vld [vmem:[%s5 + $0xc0] sm:$0xff]
  %v122 = vld [vmem:[%s5 + $0xc8] sm:$0xff]
  %v123 = vld [vmem:[%s5 + $0xd0] sm:$0xff]
  %v124 = vld [vmem:[%s5 + $0xd8] sm:$0xff]
  %v125 = vld [vmem:[%s5 + $0xe0] sm:$0xff]
  %v126 = vld [vmem:[%s5 + $0xe8] sm:$0xff]
  %v127 = vld [vmem:[%s5 + $0xf0] sm:$0xff]
  %v128 = vld [vmem:[%s5 + $0xf8] sm:$0xff]
  %v129 = vld [vmem:[%s7] sm:$0xf]
  %v130 = vld [vmem:[%s7 + $0x4] sm:$0xf]
  %v131 = vld [vmem:[%s7 + $0x8] sm:$0xf]
  %v132 = vld [vmem:[%s7 + $0xc] sm:$0xf]
  %v133 = vld [vmem:[%s7 + $0x10] sm:$0xf]
  %v134 = vld [vmem:[%s7 + $0x14] sm:$0xf]
  %v135 = vld [vmem:[%s7 + $0x18] sm:$0xf]
  %v136 = vld [vmem:[%s7 + $0x1c] sm:$0xf]
  %v137 = vld [vmem:[%s7 + $0x20] sm:$0xf]
  %v138 = vld [vmem:[%s7 + $0x24] sm:$0xf]
  %v139 = vld [vmem:[%s7 + $0x28] sm:$0xf]
  %v140 = vld [vmem:[%s7 + $0x2c] sm:$0xf]
  %v141 = vld [vmem:[%s7 + $0x30] sm:$0xf]
  %v142 = vld [vmem:[%s7 + $0x34] sm:$0xf]
  %v143 = vld [vmem:[%s7 + $0x38] sm:$0xf]
  %v144 = vld [vmem:[%s7 + $0x3c] sm:$0xf]
  %v145 = vld [vmem:[%s6] sm:$0xf]
  %v147 = vlaneseq
  %v148 = vshrl.u32 %v147, 7
  %v149 = vsub.s32 0, %v148
  %v150 = vrot.slane %v145, %v149
  %v151 = vlaneseq
  %v152 = vshrl.u32 %v151, 7
  %v153 = vsub.s32 1, %v152
  %v154 = vrot.slane %v145, %v153
  %v155 = vlaneseq
  %v156 = vshrl.u32 %v155, 7
  %v157 = vsub.s32 2, %v156
  %v158 = vrot.slane %v145, %v157
  %v159 = vlaneseq
  %v160 = vshrl.u32 %v159, 7
  %v161 = vsub.s32 3, %v160
  %v162 = vrot.slane %v145, %v161
  %v167 = vld [vmem:[%s8] sm:$0x1]
  %v169 = vlaneseq
  %v170 = vshrl.u32 %v169, 7
  %v171 = vsub.s32 0, %v170
  %v172 = vrot.slane %v167, %v171
  %v174 = vld [vmem:[%s1] sm:$0xf]
  %v176 = vlaneseq
  %v177 = vshrl.u32 %v176, 7
  %v178 = vsub.s32 0, %v177
  %v179 = vrot.slane %v174, %v178
  %v180 = vlaneseq
  %v181 = vshrl.u32 %v180, 7
  %v182 = vsub.s32 1, %v181
  %v183 = vrot.slane %v174, %v182
  %v184 = vlaneseq
  %v185 = vshrl.u32 %v184, 7
  %v186 = vsub.s32 2, %v185
  %v187 = vrot.slane %v174, %v186
  %v188 = vlaneseq
  %v189 = vshrl.u32 %v188, 7
  %v190 = vsub.s32 3, %v189
  %v191 = vrot.slane %v174, %v190
  %v196 = vld [vmem:[%s0] sm:$0xff]
  %198 = vset.pattern.permute.xlu0 0
  %199 = vperm.xlu0 %198, %v196
  %v200 = vpop.permute.xlu0 %199
  %v202 = vmul.f32 %v179, %v200
  %v203 = vmul.f32 %v183, %v200
  %v204 = vmul.f32 %v187, %v200
  %v205 = vmul.f32 %v191, %v200
  %v238 = vunpack.c.l.b16 %v33
  %v239 = vunpack.c.h.b16 %v33
  %v240 = vunpack.c.l.b16 %v34
  %v241 = vunpack.c.h.b16 %v34
  %v242 = vunpack.c.l.b16 %v35
  %v243 = vunpack.c.h.b16 %v35
  %v244 = vunpack.c.l.b16 %v36
  %v245 = vunpack.c.h.b16 %v36
  %v246 = vunpack.c.l.b16 %v37
  %v247 = vunpack.c.h.b16 %v37
  %v248 = vunpack.c.l.b16 %v38
  %v249 = vunpack.c.h.b16 %v38
  %v250 = vunpack.c.l.b16 %v39
  %v251 = vunpack.c.h.b16 %v39
  %v252 = vunpack.c.l.b16 %v40
  %v253 = vunpack.c.h.b16 %v40
  %v254 = vunpack.c.l.b16 %v41
  %v255 = vunpack.c.h.b16 %v41
  %v256 = vunpack.c.l.b16 %v42
  %v257 = vunpack.c.h.b16 %v42
  %v258 = vunpack.c.l.b16 %v43
  %v259 = vunpack.c.h.b16 %v43
  %v260 = vunpack.c.l.b16 %v44
  %v261 = vunpack.c.h.b16 %v44
  %v262 = vunpack.c.l.b16 %v45
  %v263 = vunpack.c.h.b16 %v45
  %v264 = vunpack.c.l.b16 %v46
  %v265 = vunpack.c.h.b16 %v46
  %v266 = vunpack.c.l.b16 %v47
  %v267 = vunpack.c.h.b16 %v47
  %v268 = vunpack.c.l.b16 %v48
  %v269 = vunpack.c.h.b16 %v48
  %v270 = vunpack.c.l.b16 %v49
  %v271 = vunpack.c.h.b16 %v49
  %v272 = vunpack.c.l.b16 %v50
  %v273 = vunpack.c.h.b16 %v50
  %v274 = vunpack.c.l.b16 %v51
  %v275 = vunpack.c.h.b16 %v51
  %v276 = vunpack.c.l.b16 %v52
  %v277 = vunpack.c.h.b16 %v52
  %v278 = vunpack.c.l.b16 %v53
  %v279 = vunpack.c.h.b16 %v53
  %v280 = vunpack.c.l.b16 %v54
  %v281 = vunpack.c.h.b16 %v54
  %v282 = vunpack.c.l.b16 %v55
  %v283 = vunpack.c.h.b16 %v55
  %v284 = vunpack.c.l.b16 %v56
  %v285 = vunpack.c.h.b16 %v56
  %v286 = vunpack.c.l.b16 %v57
  %v287 = vunpack.c.h.b16 %v57
  %v288 = vunpack.c.l.b16 %v58
  %v289 = vunpack.c.h.b16 %v58
  %v290 = vunpack.c.l.b16 %v59
  %v291 = vunpack.c.h.b16 %v59
  %v292 = vunpack.c.l.b16 %v60
  %v293 = vunpack.c.h.b16 %v60
  %v294 = vunpack.c.l.b16 %v61
  %v295 = vunpack.c.h.b16 %v61
  %v296 = vunpack.c.l.b16 %v62
  %v297 = vunpack.c.h.b16 %v62
  %v298 = vunpack.c.l.b16 %v63
  %v299 = vunpack.c.h.b16 %v63
  %v300 = vunpack.c.l.b16 %v64
  %v301 = vunpack.c.h.b16 %v64
  %v302 = vpack.c.b16 %v242, %v238
  %v303 = vpack.c.b16 %v243, %v239
  %v304 = vpack.c.b16 %v244, %v240
  %v305 = vpack.c.b16 %v245, %v241
  %v306 = vpack.c.b16 %v250, %v246
  %v307 = vpack.c.b16 %v251, %v247
  %v308 = vpack.c.b16 %v252, %v248
  %v309 = vpack.c.b16 %v253, %v249
  %v310 = vpack.c.b16 %v258, %v254
  %v311 = vpack.c.b16 %v259, %v255
  %v312 = vpack.c.b16 %v260, %v256
  %v313 = vpack.c.b16 %v261, %v257
  %v314 = vpack.c.b16 %v266, %v262
  %v315 = vpack.c.b16 %v267, %v263
  %v316 = vpack.c.b16 %v268, %v264
  %v317 = vpack.c.b16 %v269, %v265
  %v318 = vpack.c.b16 %v274, %v270
  %v319 = vpack.c.b16 %v275, %v271
  %v320 = vpack.c.b16 %v276, %v272
  %v321 = vpack.c.b16 %v277, %v273
  %v322 = vpack.c.b16 %v282, %v278
  %v323 = vpack.c.b16 %v283, %v279
  %v324 = vpack.c.b16 %v284, %v280
  %v325 = vpack.c.b16 %v285, %v281
  %v326 = vpack.c.b16 %v290, %v286
  %v327 = vpack.c.b16 %v291, %v287
  %v328 = vpack.c.b16 %v292, %v288
  %v329 = vpack.c.b16 %v293, %v289
  %v330 = vpack.c.b16 %v298, %v294
  %v331 = vpack.c.b16 %v299, %v295
  %v332 = vpack.c.b16 %v300, %v296
  %v333 = vpack.c.b16 %v301, %v297
  %366 = vmatprep.subr.bf16.mxu0 %v331
  %367 = vmatpush1.bf16.msra.mxu0 %v330
  %368 = vmatprep.subr.bf16.mxu0 %v327
  %369 = vmatpush1.bf16.msra.mxu0 %v326
  %370 = vmatprep.subr.bf16.mxu0 %v323
  %371 = vmatpush1.bf16.msra.mxu0 %v322
  %372 = vmatprep.subr.bf16.mxu0 %v319
  %373 = vmatpush1.bf16.msra.mxu0 %v318
  %374 = vmatprep.subr.bf16.mxu0 %v315
  %375 = vmatpush1.bf16.msra.mxu0 %v314
  %376 = vmatprep.subr.bf16.mxu0 %v311
  %377 = vmatpush1.bf16.msra.mxu0 %v310
  %378 = vmatprep.subr.bf16.mxu0 %v307
  %379 = vmatpush1.bf16.msra.mxu0 %v306
  %380 = vmatprep.subr.bf16.mxu0 %v303
  %381 = vmatpush1.bf16.msra.mxu0 %v302
  %382 = vmatprep.subr.bf16.mxu0 0
  %383 = vmatpush2.bf16.msra.mxu0 0
  %384 = vmatprep.subr.bf16.mxu0 0
  %385 = vmatpush2.bf16.msra.mxu0 0
  %386 = vmatprep.subr.bf16.mxu0 0
  %387 = vmatpush2.bf16.msra.mxu0 0
  %388 = vmatprep.subr.bf16.mxu0 0
  %389 = vmatpush2.bf16.msra.mxu0 0
  %390 = vmatprep.subr.bf16.mxu0 0
  %391 = vmatpush2.bf16.msra.mxu0 0
  %392 = vmatprep.subr.bf16.mxu0 0
  %393 = vmatpush2.bf16.msra.mxu0 0
  %394 = vmatprep.subr.bf16.mxu0 0
  %395 = vmatpush2.bf16.msra.mxu0 0
  %396 = vmatprep.subr.bf16.mxu0 0
  %397 = vmatpush2.bf16.msra.mxu0 0
  %398 = vmatprep.mubr.bf16.mxu0 0
  %399 = vmatmul.mubr.bf16.gmra.mxu0 0
  %v400 = vpop.f32.mrf.mxu0
  %v401 = vadd.f32 0.0, %v400
  %v402 = vpop.f32.mrf.mxu0
  %v403 = vadd.f32 0.0, %v402
  %v404 = vpop.f32.mrf.mxu0
  %v405 = vpop.f32.mrf.mxu0
  %406 = vdwg.mxu0
  %407 = vmatprep.subr.bf16.mxu0 %v333
  %408 = vmatpush1.bf16.msra.mxu0 %v332
  %409 = vmatprep.subr.bf16.mxu0 %v329
  %410 = vmatpush1.bf16.msra.mxu0 %v328
  %411 = vmatprep.subr.bf16.mxu0 %v325
  %412 = vmatpush1.bf16.msra.mxu0 %v324
  %413 = vmatprep.subr.bf16.mxu0 %v321
  %414 = vmatpush1.bf16.msra.mxu0 %v320
  %415 = vmatprep.subr.bf16.mxu0 %v317
  %416 = vmatpush1.bf16.msra.mxu0 %v316
  %417 = vmatprep.subr.bf16.mxu0 %v313
  %418 = vmatpush1.bf16.msra.mxu0 %v312
  %419 = vmatprep.subr.bf16.mxu0 %v309
  %420 = vmatpush1.bf16.msra.mxu0 %v308
  %421 = vmatprep.subr.bf16.mxu0 %v305
  %422 = vmatpush1.bf16.msra.mxu0 %v304
  %423 = vmatprep.subr.bf16.mxu0 0
  %424 = vmatpush2.bf16.msra.mxu0 0
  %425 = vmatprep.subr.bf16.mxu0 0
  %426 = vmatpush2.bf16.msra.mxu0 0
  %427 = vmatprep.subr.bf16.mxu0 0
  %428 = vmatpush2.bf16.msra.mxu0 0
  %429 = vmatprep.subr.bf16.mxu0 0
  %430 = vmatpush2.bf16.msra.mxu0 0
  %431 = vmatprep.subr.bf16.mxu0 0
  %432 = vmatpush2.bf16.msra.mxu0 0
  %433 = vmatprep.subr.bf16.mxu0 0
  %434 = vmatpush2.bf16.msra.mxu0 0
  %435 = vmatprep.subr.bf16.mxu0 0
  %436 = vmatpush2.bf16.msra.mxu0 0
  %437 = vmatprep.subr.bf16.mxu0 0
  %438 = vmatpush2.bf16.msra.mxu0 0
  %439 = vmatprep.mubr.bf16.mxu0 0
  %440 = vmatmul.mubr.bf16.gmra.mxu0 0
  %v441 = vpop.f32.mrf.mxu0
  %v442 = vadd.f32 0.0, %v441
  %v443 = vpop.f32.mrf.mxu0
  %v444 = vadd.f32 0.0, %v443
  %v445 = vpop.f32.mrf.mxu0
  %v446 = vpop.f32.mrf.mxu0
  %447 = vdwg.mxu0
  %v448 = vadd.f32 %v202, %v401
  %v449 = vadd.f32 %v203, %v403
  %v450 = vadd.f32 %v204, %v442
  %v451 = vadd.f32 %v205, %v444
  %v452 = vxor.u32 %v448, 2147483648
  %v453 = vxor.u32 %v449, 2147483648
  %v454 = vxor.u32 %v450, 2147483648
  %v455 = vmul.f32 %v452, 1.442695
  %v456 = vpow.pop %v455
  %v457 = vmul.f32 %v453, 1.442695
  %v458 = vpow.pop %v457
  %v459 = vmul.f32 %v454, 1.442695
  %v460 = vpow.pop %v459
  %v461 = vadd.f32 %v456, 1.0
  %v462 = vadd.f32 %v458, 1.0
  %v463 = vadd.f32 %v460, 1.0
  %v464 = vrcp.pop %v461
  %v465 = vmul.f32 1.0, %v464
  %v466 = vrcp.pop %v462
  %v467 = vmul.f32 1.0, %v466
  %v468 = vrcp.pop %v463
  %v469 = vmul.f32 1.0, %v468
  %v470 = vtanh.pop %v451
  %v471 = vmul.f32 %v467, 0.0
  %v472 = vmul.f32 %v465, %v470
  %v473 = vadd.f32 %v471, %v472
  %v474 = vtanh.pop %v473
  %v475 = vmul.f32 %v469, %v474
  %s476 = scalar_lea.vmem %s0, 8
  %v477 = vld [vmem:[%s476] sm:$0xff]
  %479 = vset.pattern.permute.xlu0 0
  %480 = vperm.xlu0 %479, %v477
  %v481 = vpop.permute.xlu0 %480
  %v483 = vmul.f32 %v179, %v481
  %v484 = vmul.f32 %v183, %v481
  %v485 = vmul.f32 %v187, %v481
  %v486 = vmul.f32 %v191, %v481
  %v487 = vpack.c.bf16 %v475, %v475
  %488 = vmatprep.subr.bf16.mxu0 %v331
  %489 = vmatpush1.bf16.msra.mxu0 %v330
  %490 = vmatprep.subr.bf16.mxu0 %v327
  %491 = vmatpush1.bf16.msra.mxu0 %v326
  %492 = vmatprep.subr.bf16.mxu0 %v323
  %493 = vmatpush1.bf16.msra.mxu0 %v322
  %494 = vmatprep.subr.bf16.mxu0 %v319
  %495 = vmatpush1.bf16.msra.mxu0 %v318
  %496 = vmatprep.subr.bf16.mxu0 %v315
  %497 = vmatpush1.bf16.msra.mxu0 %v314
  %498 = vmatprep.subr.bf16.mxu0 %v311
  %499 = vmatpush1.bf16.msra.mxu0 %v310
  %500 = vmatprep.subr.bf16.mxu0 %v307
  %501 = vmatpush1.bf16.msra.mxu0 %v306
  %502 = vmatprep.subr.bf16.mxu0 %v303
  %503 = vmatpush1.bf16.msra.mxu0 %v302
  %504 = vmatprep.subr.bf16.mxu0 0
  %505 = vmatpush2.bf16.msra.mxu0 0
  %506 = vmatprep.subr.bf16.mxu0 0
  %507 = vmatpush2.bf16.msra.mxu0 0
  %508 = vmatprep.subr.bf16.mxu0 0
  %509 = vmatpush2.bf16.msra.mxu0 0
  %510 = vmatprep.subr.bf16.mxu0 0
  %511 = vmatpush2.bf16.msra.mxu0 0
  %512 = vmatprep.subr.bf16.mxu0 0
  %513 = vmatpush2.bf16.msra.mxu0 0
  %514 = vmatprep.subr.bf16.mxu0 0
  %515 = vmatpush2.bf16.msra.mxu0 0
  %516 = vmatprep.subr.bf16.mxu0 0
  %517 = vmatpush2.bf16.msra.mxu0 0
  %518 = vmatprep.subr.bf16.mxu0 0
  %519 = vmatpush2.bf16.msra.mxu0 0
  %520 = vmatprep.mubr.bf16.mxu0 0
  %521 = vmatmul.mubr.bf16.gmra.mxu0 %v487
  %v522 = vpop.f32.mrf.mxu0
  %v523 = vadd.f32 0.0, %v522
  %v524 = vpop.f32.mrf.mxu0
  %v525 = vadd.f32 0.0, %v524
  %v526 = vpop.f32.mrf.mxu0
  %v527 = vpop.f32.mrf.mxu0
  %528 = vdwg.mxu0
  %529 = vmatprep.subr.bf16.mxu0 %v333
  %530 = vmatpush1.bf16.msra.mxu0 %v332
  %531 = vmatprep.subr.bf16.mxu0 %v329
  %532 = vmatpush1.bf16.msra.mxu0 %v328
  %533 = vmatprep.subr.bf16.mxu0 %v325
  %534 = vmatpush1.bf16.msra.mxu0 %v324
  %535 = vmatprep.subr.bf16.mxu0 %v321
  %536 = vmatpush1.bf16.msra.mxu0 %v320
  %537 = vmatprep.subr.bf16.mxu0 %v317
  %538 = vmatpush1.bf16.msra.mxu0 %v316
  %539 = vmatprep.subr.bf16.mxu0 %v313
  %540 = vmatpush1.bf16.msra.mxu0 %v312
  %541 = vmatprep.subr.bf16.mxu0 %v309
  %542 = vmatpush1.bf16.msra.mxu0 %v308
  %543 = vmatprep.subr.bf16.mxu0 %v305
  %544 = vmatpush1.bf16.msra.mxu0 %v304
  %545 = vmatprep.subr.bf16.mxu0 0
  %546 = vmatpush2.bf16.msra.mxu0 0
  %547 = vmatprep.subr.bf16.mxu0 0
  %548 = vmatpush2.bf16.msra.mxu0 0
  %549 = vmatprep.subr.bf16.mxu0 0
  %550 = vmatpush2.bf16.msra.mxu0 0
  %551 = vmatprep.subr.bf16.mxu0 0
  %552 = vmatpush2.bf16.msra.mxu0 0
  %553 = vmatprep.subr.bf16.mxu0 0
  %554 = vmatpush2.bf16.msra.mxu0 0
  %555 = vmatprep.subr.bf16.mxu0 0
  %556 = vmatpush2.bf16.msra.mxu0 0
  %557 = vmatprep.subr.bf16.mxu0 0
  %558 = vmatpush2.bf16.msra.mxu0 0
  %559 = vmatprep.subr.bf16.mxu0 0
  %560 = vmatpush2.bf16.msra.mxu0 0
  %561 = vmatprep.mubr.bf16.mxu0 0
  %562 = vmatmul.mubr.bf16.gmra.mxu0 %v487
  %v563 = vpop.f32.mrf.mxu0
  %v564 = vadd.f32 0.0, %v563
  %v565 = vpop.f32.mrf.mxu0
  %v566 = vadd.f32 0.0, %v565
  %v567 = vpop.f32.mrf.mxu0
  %v568 = vpop.f32.mrf.mxu0
  %569 = vdwg.mxu0
  %v570 = vadd.f32 %v483, %v523
  %v571 = vadd.f32 %v484, %v525
  %v572 = vadd.f32 %v485, %v564
  %v573 = vadd.f32 %v486, %v566
  %v574 = vxor.u32 %v570, 2147483648
  %v575 = vxor.u32 %v571, 2147483648
  %v576 = vxor.u32 %v572, 2147483648
  %v577 = vmul.f32 %v574, 1.442695
  %v578 = vpow.pop %v577
  %v579 = vmul.f32 %v575, 1.442695
  %v580 = vpow.pop %v579
  %v581 = vmul.f32 %v576, 1.442695
  %v582 = vpow.pop %v581
  %v583 = vadd.f32 %v578, 1.0
  %v584 = vadd.f32 %v580, 1.0
  %v585 = vadd.f32 %v582, 1.0
  %v586 = vrcp.pop %v583
  %v587 = vmul.f32 1.0, %v586
  %v588 = vrcp.pop %v584
  %v589 = vmul.f32 1.0, %v588
  %v590 = vrcp.pop %v585
  %v591 = vmul.f32 1.0, %v590
  %v592 = vtanh.pop %v573
  %v593 = vmul.f32 %v589, %v473
  %v594 = vmul.f32 %v587, %v592
  %v595 = vadd.f32 %v593, %v594
  %v596 = vtanh.pop %v595
  %v597 = vmul.f32 %v591, %v596
  %s598 = scalar_lea.vmem %s0, 16
  %v599 = vld [vmem:[%s598] sm:$0xff]
  %601 = vset.pattern.permute.xlu0 0
  %602 = vperm.xlu0 %601, %v599
  %v603 = vpop.permute.xlu0 %602
  %v605 = vmul.f32 %v179, %v603
  %v606 = vmul.f32 %v183, %v603
  %v607 = vmul.f32 %v187, %v603
  %v608 = vmul.f32 %v191, %v603
  %v609 = vpack.c.bf16 %v597, %v597
  %610 = vmatprep.subr.bf16.mxu0 %v331
  %611 = vmatpush1.bf16.msra.mxu0 %v330
  %612 = vmatprep.subr.bf16.mxu0 %v327
  %613 = vmatpush1.bf16.msra.mxu0 %v326
  %614 = vmatprep.subr.bf16.mxu0 %v323
  %615 = vmatpush1.bf16.msra.mxu0 %v322
  %616 = vmatprep.subr.bf16.mxu0 %v319
  %617 = vmatpush1.bf16.msra.mxu0 %v318
  %618 = vmatprep.subr.bf16.mxu0 %v315
  %619 = vmatpush1.bf16.msra.mxu0 %v314
  %620 = vmatprep.subr.bf16.mxu0 %v311
  %621 = vmatpush1.bf16.msra.mxu0 %v310
  %622 = vmatprep.subr.bf16.mxu0 %v307
  %623 = vmatpush1.bf16.msra.mxu0 %v306
  %624 = vmatprep.subr.bf16.mxu0 %v303
  %625 = vmatpush1.bf16.msra.mxu0 %v302
  %626 = vmatprep.subr.bf16.mxu0 0
  %627 = vmatpush2.bf16.msra.mxu0 0
  %628 = vmatprep.subr.bf16.mxu0 0
  %629 = vmatpush2.bf16.msra.mxu0 0
  %630 = vmatprep.subr.bf16.mxu0 0
  %631 = vmatpush2.bf16.msra.mxu0 0
  %632 = vmatprep.subr.bf16.mxu0 0
  %633 = vmatpush2.bf16.msra.mxu0 0
  %634 = vmatprep.subr.bf16.mxu0 0
  %635 = vmatpush2.bf16.msra.mxu0 0
  %636 = vmatprep.subr.bf16.mxu0 0
  %637 = vmatpush2.bf16.msra.mxu0 0
  %638 = vmatprep.subr.bf16.mxu0 0
  %639 = vmatpush2.bf16.msra.mxu0 0
  %640 = vmatprep.subr.bf16.mxu0 0
  %641 = vmatpush2.bf16.msra.mxu0 0
  %642 = vmatprep.mubr.bf16.mxu0 0
  %643 = vmatmul.mubr.bf16.gmra.mxu0 %v609
  %v644 = vpop.f32.mrf.mxu0
  %v645 = vadd.f32 0.0, %v644
  %v646 = vpop.f32.mrf.mxu0
  %v647 = vadd.f32 0.0, %v646
  %v648 = vpop.f32.mrf.mxu0
  %v649 = vpop.f32.mrf.mxu0
  %650 = vdwg.mxu0
  %651 = vmatprep.subr.bf16.mxu0 %v333
  %652 = vmatpush1.bf16.msra.mxu0 %v332
  %653 = vmatprep.subr.bf16.mxu0 %v329
  %654 = vmatpush1.bf16.msra.mxu0 %v328
  %655 = vmatprep.subr.bf16.mxu0 %v325
  %656 = vmatpush1.bf16.msra.mxu0 %v324
  %657 = vmatprep.subr.bf16.mxu0 %v321
  %658 = vmatpush1.bf16.msra.mxu0 %v320
  %659 = vmatprep.subr.bf16.mxu0 %v317
  %660 = vmatpush1.bf16.msra.mxu0 %v316
  %661 = vmatprep.subr.bf16.mxu0 %v313
  %662 = vmatpush1.bf16.msra.mxu0 %v312
  %663 = vmatprep.subr.bf16.mxu0 %v309
  %664 = vmatpush1.bf16.msra.mxu0 %v308
  %665 = vmatprep.subr.bf16.mxu0 %v305
  %666 = vmatpush1.bf16.msra.mxu0 %v304
  %667 = vmatprep.subr.bf16.mxu0 0
  %668 = vmatpush2.bf16.msra.mxu0 0
  %669 = vmatprep.subr.bf16.mxu0 0
  %670 = vmatpush2.bf16.msra.mxu0 0
  %671 = vmatprep.subr.bf16.mxu0 0
  %672 = vmatpush2.bf16.msra.mxu0 0
  %673 = vmatprep.subr.bf16.mxu0 0
  %674 = vmatpush2.bf16.msra.mxu0 0
  %675 = vmatprep.subr.bf16.mxu0 0
  %676 = vmatpush2.bf16.msra.mxu0 0
  %677 = vmatprep.subr.bf16.mxu0 0
  %678 = vmatpush2.bf16.msra.mxu0 0
  %679 = vmatprep.subr.bf16.mxu0 0
  %680 = vmatpush2.bf16.msra.mxu0 0
  %681 = vmatprep.subr.bf16.mxu0 0
  %682 = vmatpush2.bf16.msra.mxu0 0
  %683 = vmatprep.mubr.bf16.mxu0 0
  %684 = vmatmul.mubr.bf16.gmra.mxu0 %v609
  %v685 = vpop.f32.mrf.mxu0
  %v686 = vadd.f32 0.0, %v685
  %v687 = vpop.f32.mrf.mxu0
  %v688 = vadd.f32 0.0, %v687
  %v689 = vpop.f32.mrf.mxu0
  %v690 = vpop.f32.mrf.mxu0
  %691 = vdwg.mxu0
  %v692 = vadd.f32 %v605, %v645
  %v693 = vadd.f32 %v606, %v647
  %v694 = vadd.f32 %v607, %v686
  %v695 = vadd.f32 %v608, %v688
  %v696 = vxor.u32 %v692, 2147483648
  %v697 = vxor.u32 %v693, 2147483648
  %v698 = vxor.u32 %v694, 2147483648
  %v699 = vmul.f32 %v696, 1.442695
  %v700 = vpow.pop %v699
  %v701 = vmul.f32 %v697, 1.442695
  %v702 = vpow.pop %v701
  %v703 = vmul.f32 %v698, 1.442695
  %v704 = vpow.pop %v703
  %v705 = vadd.f32 %v700, 1.0
  %v706 = vadd.f32 %v702, 1.0
  %v707 = vadd.f32 %v704, 1.0
  %v708 = vrcp.pop %v705
  %v709 = vmul.f32 1.0, %v708
  %v710 = vrcp.pop %v706
  %v711 = vmul.f32 1.0, %v710
  %v712 = vrcp.pop %v707
  %v713 = vmul.f32 1.0, %v712
  %v714 = vtanh.pop %v695
  %v715 = vmul.f32 %v711, %v595
  %v716 = vmul.f32 %v709, %v714
  %v717 = vadd.f32 %v715, %v716
  %v718 = vtanh.pop %v717
  %v719 = vmul.f32 %v713, %v718
  %s720 = scalar_lea.vmem %s0, 24
  %v721 = vld [vmem:[%s720] sm:$0xff]
  %723 = vset.pattern.permute.xlu0 0
  %724 = vperm.xlu0 %723, %v721
  %v725 = vpop.permute.xlu0 %724
  %v727 = vmul.f32 %v179, %v725
  %v728 = vmul.f32 %v183, %v725
  %v729 = vmul.f32 %v187, %v725
  %v730 = vmul.f32 %v191, %v725
  %v731 = vpack.c.bf16 %v719, %v719
  %732 = vmatprep.subr.bf16.mxu0 %v331
  %733 = vmatpush1.bf16.msra.mxu0 %v330
  %734 = vmatprep.subr.bf16.mxu0 %v327
  %735 = vmatpush1.bf16.msra.mxu0 %v326
  %736 = vmatprep.subr.bf16.mxu0 %v323
  %737 = vmatpush1.bf16.msra.mxu0 %v322
  %738 = vmatprep.subr.bf16.mxu0 %v319
  %739 = vmatpush1.bf16.msra.mxu0 %v318
  %740 = vmatprep.subr.bf16.mxu0 %v315
  %741 = vmatpush1.bf16.msra.mxu0 %v314
  %742 = vmatprep.subr.bf16.mxu0 %v311
  %743 = vmatpush1.bf16.msra.mxu0 %v310
  %744 = vmatprep.subr.bf16.mxu0 %v307
  %745 = vmatpush1.bf16.msra.mxu0 %v306
  %746 = vmatprep.subr.bf16.mxu0 %v303
  %747 = vmatpush1.bf16.msra.mxu0 %v302
  %748 = vmatprep.subr.bf16.mxu0 0
  %749 = vmatpush2.bf16.msra.mxu0 0
  %750 = vmatprep.subr.bf16.mxu0 0
  %751 = vmatpush2.bf16.msra.mxu0 0
  %752 = vmatprep.subr.bf16.mxu0 0
  %753 = vmatpush2.bf16.msra.mxu0 0
  %754 = vmatprep.subr.bf16.mxu0 0
  %755 = vmatpush2.bf16.msra.mxu0 0
  %756 = vmatprep.subr.bf16.mxu0 0
  %757 = vmatpush2.bf16.msra.mxu0 0
  %758 = vmatprep.subr.bf16.mxu0 0
  %759 = vmatpush2.bf16.msra.mxu0 0
  %760 = vmatprep.subr.bf16.mxu0 0
  %761 = vmatpush2.bf16.msra.mxu0 0
  %762 = vmatprep.subr.bf16.mxu0 0
  %763 = vmatpush2.bf16.msra.mxu0 0
  %764 = vmatprep.mubr.bf16.mxu0 0
  %765 = vmatmul.mubr.bf16.gmra.mxu0 %v731
  %v766 = vpop.f32.mrf.mxu0
  %v767 = vadd.f32 0.0, %v766
  %v768 = vpop.f32.mrf.mxu0
  %v769 = vadd.f32 0.0, %v768
  %v770 = vpop.f32.mrf.mxu0
  %v771 = vpop.f32.mrf.mxu0
  %772 = vdwg.mxu0
  %773 = vmatprep.subr.bf16.mxu0 %v333
  %774 = vmatpush1.bf16.msra.mxu0 %v332
  %775 = vmatprep.subr.bf16.mxu0 %v329
  %776 = vmatpush1.bf16.msra.mxu0 %v328
  %777 = vmatprep.subr.bf16.mxu0 %v325
  %778 = vmatpush1.bf16.msra.mxu0 %v324
  %779 = vmatprep.subr.bf16.mxu0 %v321
  %780 = vmatpush1.bf16.msra.mxu0 %v320
  %781 = vmatprep.subr.bf16.mxu0 %v317
  %782 = vmatpush1.bf16.msra.mxu0 %v316
  %783 = vmatprep.subr.bf16.mxu0 %v313
  %784 = vmatpush1.bf16.msra.mxu0 %v312
  %785 = vmatprep.subr.bf16.mxu0 %v309
  %786 = vmatpush1.bf16.msra.mxu0 %v308
  %787 = vmatprep.subr.bf16.mxu0 %v305
  %788 = vmatpush1.bf16.msra.mxu0 %v304
  %789 = vmatprep.subr.bf16.mxu0 0
  %790 = vmatpush2.bf16.msra.mxu0 0
  %791 = vmatprep.subr.bf16.mxu0 0
  %792 = vmatpush2.bf16.msra.mxu0 0
  %793 = vmatprep.subr.bf16.mxu0 0
  %794 = vmatpush2.bf16.msra.mxu0 0
  %795 = vmatprep.subr.bf16.mxu0 0
  %796 = vmatpush2.bf16.msra.mxu0 0
  %797 = vmatprep.subr.bf16.mxu0 0
  %798 = vmatpush2.bf16.msra.mxu0 0
  %799 = vmatprep.subr.bf16.mxu0 0
  %800 = vmatpush2.bf16.msra.mxu0 0
  %801 = vmatprep.subr.bf16.mxu0 0
  %802 = vmatpush2.bf16.msra.mxu0 0
  %803 = vmatprep.subr.bf16.mxu0 0
  %804 = vmatpush2.bf16.msra.mxu0 0
  %805 = vmatprep.mubr.bf16.mxu0 0
  %806 = vmatmul.mubr.bf16.gmra.mxu0 %v731
  %v807 = vpop.f32.mrf.mxu0
  %v808 = vadd.f32 0.0, %v807
  %v809 = vpop.f32.mrf.mxu0
  %v810 = vadd.f32 0.0, %v809
  %v811 = vpop.f32.mrf.mxu0
  %v812 = vpop.f32.mrf.mxu0
  %813 = vdwg.mxu0
  %v814 = vadd.f32 %v727, %v767
  %v815 = vadd.f32 %v728, %v769
  %v816 = vadd.f32 %v729, %v808
  %v817 = vadd.f32 %v730, %v810
  %v818 = vxor.u32 %v814, 2147483648
  %v819 = vxor.u32 %v815, 2147483648
  %v820 = vxor.u32 %v816, 2147483648
  %v821 = vmul.f32 %v818, 1.442695
  %v822 = vpow.pop %v821
  %v823 = vmul.f32 %v819, 1.442695
  %v824 = vpow.pop %v823
  %v825 = vmul.f32 %v820, 1.442695
  %v826 = vpow.pop %v825
  %v827 = vadd.f32 %v822, 1.0
  %v828 = vadd.f32 %v824, 1.0
  %v829 = vadd.f32 %v826, 1.0
  %v830 = vrcp.pop %v827
  %v831 = vmul.f32 1.0, %v830
  %v832 = vrcp.pop %v828
  %v833 = vmul.f32 1.0, %v832
  %v834 = vrcp.pop %v829
  %v835 = vmul.f32 1.0, %v834
  %v836 = vtanh.pop %v817
  %v837 = vmul.f32 %v833, %v717
  %v838 = vmul.f32 %v831, %v836
  %v839 = vadd.f32 %v837, %v838
  %v840 = vtanh.pop %v839
  %v841 = vmul.f32 %v835, %v840
  %s842 = scalar_lea.vmem %s0, 32
  %v843 = vld [vmem:[%s842] sm:$0xff]
  %845 = vset.pattern.permute.xlu0 0
  %846 = vperm.xlu0 %845, %v843
  %v847 = vpop.permute.xlu0 %846
  %v849 = vmul.f32 %v179, %v847
  %v850 = vmul.f32 %v183, %v847
  %v851 = vmul.f32 %v187, %v847
  %v852 = vmul.f32 %v191, %v847
  %v853 = vpack.c.bf16 %v841, %v841
  %854 = vmatprep.subr.bf16.mxu0 %v331
  %855 = vmatpush1.bf16.msra.mxu0 %v330
  %856 = vmatprep.subr.bf16.mxu0 %v327
  %857 = vmatpush1.bf16.msra.mxu0 %v326
  %858 = vmatprep.subr.bf16.mxu0 %v323
  %859 = vmatpush1.bf16.msra.mxu0 %v322
  %860 = vmatprep.subr.bf16.mxu0 %v319
  %861 = vmatpush1.bf16.msra.mxu0 %v318
  %862 = vmatprep.subr.bf16.mxu0 %v315
  %863 = vmatpush1.bf16.msra.mxu0 %v314
  %864 = vmatprep.subr.bf16.mxu0 %v311
  %865 = vmatpush1.bf16.msra.mxu0 %v310
  %866 = vmatprep.subr.bf16.mxu0 %v307
  %867 = vmatpush1.bf16.msra.mxu0 %v306
  %868 = vmatprep.subr.bf16.mxu0 %v303
  %869 = vmatpush1.bf16.msra.mxu0 %v302
  %870 = vmatprep.subr.bf16.mxu0 0
  %871 = vmatpush2.bf16.msra.mxu0 0
  %872 = vmatprep.subr.bf16.mxu0 0
  %873 = vmatpush2.bf16.msra.mxu0 0
  %874 = vmatprep.subr.bf16.mxu0 0
  %875 = vmatpush2.bf16.msra.mxu0 0
  %876 = vmatprep.subr.bf16.mxu0 0
  %877 = vmatpush2.bf16.msra.mxu0 0
  %878 = vmatprep.subr.bf16.mxu0 0
  %879 = vmatpush2.bf16.msra.mxu0 0
  %880 = vmatprep.subr.bf16.mxu0 0
  %881 = vmatpush2.bf16.msra.mxu0 0
  %882 = vmatprep.subr.bf16.mxu0 0
  %883 = vmatpush2.bf16.msra.mxu0 0
  %884 = vmatprep.subr.bf16.mxu0 0
  %885 = vmatpush2.bf16.msra.mxu0 0
  %886 = vmatprep.mubr.bf16.mxu0 0
  %887 = vmatmul.mubr.bf16.gmra.mxu0 %v853
  %v888 = vpop.f32.mrf.mxu0
  %v889 = vadd.f32 0.0, %v888
  %v890 = vpop.f32.mrf.mxu0
  %v891 = vadd.f32 0.0, %v890
  %v892 = vpop.f32.mrf.mxu0
  %v893 = vpop.f32.mrf.mxu0
  %894 = vdwg.mxu0
  %895 = vmatprep.subr.bf16.mxu0 %v333
  %896 = vmatpush1.bf16.msra.mxu0 %v332
  %897 = vmatprep.subr.bf16.mxu0 %v329
  %898 = vmatpush1.bf16.msra.mxu0 %v328
  %899 = vmatprep.subr.bf16.mxu0 %v325
  %900 = vmatpush1.bf16.msra.mxu0 %v324
  %901 = vmatprep.subr.bf16.mxu0 %v321
  %902 = vmatpush1.bf16.msra.mxu0 %v320
  %903 = vmatprep.subr.bf16.mxu0 %v317
  %904 = vmatpush1.bf16.msra.mxu0 %v316
  %905 = vmatprep.subr.bf16.mxu0 %v313
  %906 = vmatpush1.bf16.msra.mxu0 %v312
  %907 = vmatprep.subr.bf16.mxu0 %v309
  %908 = vmatpush1.bf16.msra.mxu0 %v308
  %909 = vmatprep.subr.bf16.mxu0 %v305
  %910 = vmatpush1.bf16.msra.mxu0 %v304
  %911 = vmatprep.subr.bf16.mxu0 0
  %912 = vmatpush2.bf16.msra.mxu0 0
  %913 = vmatprep.subr.bf16.mxu0 0
  %914 = vmatpush2.bf16.msra.mxu0 0
  %915 = vmatprep.subr.bf16.mxu0 0
  %916 = vmatpush2.bf16.msra.mxu0 0
  %917 = vmatprep.subr.bf16.mxu0 0
  %918 = vmatpush2.bf16.msra.mxu0 0
  %919 = vmatprep.subr.bf16.mxu0 0
  %920 = vmatpush2.bf16.msra.mxu0 0
  %921 = vmatprep.subr.bf16.mxu0 0
  %922 = vmatpush2.bf16.msra.mxu0 0
  %923 = vmatprep.subr.bf16.mxu0 0
  %924 = vmatpush2.bf16.msra.mxu0 0
  %925 = vmatprep.subr.bf16.mxu0 0
  %926 = vmatpush2.bf16.msra.mxu0 0
  %927 = vmatprep.mubr.bf16.mxu0 0
  %928 = vmatmul.mubr.bf16.gmra.mxu0 %v853
  %v929 = vpop.f32.mrf.mxu0
  %v930 = vadd.f32 0.0, %v929
  %v931 = vpop.f32.mrf.mxu0
  %v932 = vadd.f32 0.0, %v931
  %v933 = vpop.f32.mrf.mxu0
  %v934 = vpop.f32.mrf.mxu0
  %935 = vdwg.mxu0
  %v936 = vadd.f32 %v849, %v889
  %v937 = vadd.f32 %v850, %v891
  %v938 = vadd.f32 %v851, %v930
  %v939 = vadd.f32 %v852, %v932
  %v940 = vxor.u32 %v936, 2147483648
  %v941 = vxor.u32 %v937, 2147483648
  %v942 = vxor.u32 %v938, 2147483648
  %v943 = vmul.f32 %v940, 1.442695
  %v944 = vpow.pop %v943
  %v945 = vmul.f32 %v941, 1.442695
  %v946 = vpow.pop %v945
  %v947 = vmul.f32 %v942, 1.442695
  %v948 = vpow.pop %v947
  %v949 = vadd.f32 %v944, 1.0
  %v950 = vadd.f32 %v946, 1.0
  %v951 = vadd.f32 %v948, 1.0
  %v952 = vrcp.pop %v949
  %v953 = vmul.f32 1.0, %v952
  %v954 = vrcp.pop %v950
  %v955 = vmul.f32 1.0, %v954
  %v956 = vrcp.pop %v951
  %v957 = vmul.f32 1.0, %v956
  %v958 = vtanh.pop %v939
  %v959 = vmul.f32 %v955, %v839
  %v960 = vmul.f32 %v953, %v958
  %v961 = vadd.f32 %v959, %v960
  %v962 = vtanh.pop %v961
  %v963 = vmul.f32 %v957, %v962
  %s964 = scalar_lea.vmem %s0, 40
  %v965 = vld [vmem:[%s964] sm:$0xff]
  %967 = vset.pattern.permute.xlu0 0
  %968 = vperm.xlu0 %967, %v965
  %v969 = vpop.permute.xlu0 %968
  %v971 = vmul.f32 %v179, %v969
  %v972 = vmul.f32 %v183, %v969
  %v973 = vmul.f32 %v187, %v969
  %v974 = vmul.f32 %v191, %v969
  %v975 = vpack.c.bf16 %v963, %v963
  %976 = vmatprep.subr.bf16.mxu0 %v331
  %977 = vmatpush1.bf16.msra.mxu0 %v330
  %978 = vmatprep.subr.bf16.mxu0 %v327
  %979 = vmatpush1.bf16.msra.mxu0 %v326
  %980 = vmatprep.subr.bf16.mxu0 %v323
  %981 = vmatpush1.bf16.msra.mxu0 %v322
  %982 = vmatprep.subr.bf16.mxu0 %v319
  %983 = vmatpush1.bf16.msra.mxu0 %v318
  %984 = vmatprep.subr.bf16.mxu0 %v315
  %985 = vmatpush1.bf16.msra.mxu0 %v314
  %986 = vmatprep.subr.bf16.mxu0 %v311
  %987 = vmatpush1.bf16.msra.mxu0 %v310
  %988 = vmatprep.subr.bf16.mxu0 %v307
  %989 = vmatpush1.bf16.msra.mxu0 %v306
  %990 = vmatprep.subr.bf16.mxu0 %v303
  %991 = vmatpush1.bf16.msra.mxu0 %v302
  %992 = vmatprep.subr.bf16.mxu0 0
  %993 = vmatpush2.bf16.msra.mxu0 0
  %994 = vmatprep.subr.bf16.mxu0 0
  %995 = vmatpush2.bf16.msra.mxu0 0
  %996 = vmatprep.subr.bf16.mxu0 0
  %997 = vmatpush2.bf16.msra.mxu0 0
  %998 = vmatprep.subr.bf16.mxu0 0
  %999 = vmatpush2.bf16.msra.mxu0 0
  %1000 = vmatprep.subr.bf16.mxu0 0
  %1001 = vmatpush2.bf16.msra.mxu0 0
  %1002 = vmatprep.subr.bf16.mxu0 0
  %1003 = vmatpush2.bf16.msra.mxu0 0
  %1004 = vmatprep.subr.bf16.mxu0 0
  %1005 = vmatpush2.bf16.msra.mxu0 0
  %1006 = vmatprep.subr.bf16.mxu0 0
  %1007 = vmatpush2.bf16.msra.mxu0 0
  %1008 = vmatprep.mubr.bf16.mxu0 0
  %1009 = vmatmul.mubr.bf16.gmra.mxu0 %v975
  %v1010 = vpop.f32.mrf.mxu0
  %v1011 = vadd.f32 0.0, %v1010
  %v1012 = vpop.f32.mrf.mxu0
  %v1013 = vadd.f32 0.0, %v1012
  %v1014 = vpop.f32.mrf.mxu0
  %v1015 = vpop.f32.mrf.mxu0
  %1016 = vdwg.mxu0
  %1017 = vmatprep.subr.bf16.mxu0 %v333
  %1018 = vmatpush1.bf16.msra.mxu0 %v332
  %1019 = vmatprep.subr.bf16.mxu0 %v329
  %1020 = vmatpush1.bf16.msra.mxu0 %v328
  %1021 = vmatprep.subr.bf16.mxu0 %v325
  %1022 = vmatpush1.bf16.msra.mxu0 %v324
  %1023 = vmatprep.subr.bf16.mxu0 %v321
  %1024 = vmatpush1.bf16.msra.mxu0 %v320
  %1025 = vmatprep.subr.bf16.mxu0 %v317
  %1026 = vmatpush1.bf16.msra.mxu0 %v316
  %1027 = vmatprep.subr.bf16.mxu0 %v313
  %1028 = vmatpush1.bf16.msra.mxu0 %v312
  %1029 = vmatprep.subr.bf16.mxu0 %v309
  %1030 = vmatpush1.bf16.msra.mxu0 %v308
  %1031 = vmatprep.subr.bf16.mxu0 %v305
  %1032 = vmatpush1.bf16.msra.mxu0 %v304
  %1033 = vmatprep.subr.bf16.mxu0 0
  %1034 = vmatpush2.bf16.msra.mxu0 0
  %1035 = vmatprep.subr.bf16.mxu0 0
  %1036 = vmatpush2.bf16.msra.mxu0 0
  %1037 = vmatprep.subr.bf16.mxu0 0
  %1038 = vmatpush2.bf16.msra.mxu0 0
  %1039 = vmatprep.subr.bf16.mxu0 0
  %1040 = vmatpush2.bf16.msra.mxu0 0
  %1041 = vmatprep.subr.bf16.mxu0 0
  %1042 = vmatpush2.bf16.msra.mxu0 0
  %1043 = vmatprep.subr.bf16.mxu0 0
  %1044 = vmatpush2.bf16.msra.mxu0 0
  %1045 = vmatprep.subr.bf16.mxu0 0
  %1046 = vmatpush2.bf16.msra.mxu0 0
  %1047 = vmatprep.subr.bf16.mxu0 0
  %1048 = vmatpush2.bf16.msra.mxu0 0
  %1049 = vmatprep.mubr.bf16.mxu0 0
  %1050 = vmatmul.mubr.bf16.gmra.mxu0 %v975
  %v1051 = vpop.f32.mrf.mxu0
  %v1052 = vadd.f32 0.0, %v1051
  %v1053 = vpop.f32.mrf.mxu0
  %v1054 = vadd.f32 0.0, %v1053
  %v1055 = vpop.f32.mrf.mxu0
  %v1056 = vpop.f32.mrf.mxu0
  %1057 = vdwg.mxu0
  %v1058 = vadd.f32 %v971, %v1011
  %v1059 = vadd.f32 %v972, %v1013
  %v1060 = vadd.f32 %v973, %v1052
  %v1061 = vadd.f32 %v974, %v1054
  %v1062 = vxor.u32 %v1058, 2147483648
  %v1063 = vxor.u32 %v1059, 2147483648
  %v1064 = vxor.u32 %v1060, 2147483648
  %v1065 = vmul.f32 %v1062, 1.442695
  %v1066 = vpow.pop %v1065
  %v1067 = vmul.f32 %v1063, 1.442695
  %v1068 = vpow.pop %v1067
  %v1069 = vmul.f32 %v1064, 1.442695
  %v1070 = vpow.pop %v1069
  %v1071 = vadd.f32 %v1066, 1.0
  %v1072 = vadd.f32 %v1068, 1.0
  %v1073 = vadd.f32 %v1070, 1.0
  %v1074 = vrcp.pop %v1071
  %v1075 = vmul.f32 1.0, %v1074
  %v1076 = vrcp.pop %v1072
  %v1077 = vmul.f32 1.0, %v1076
  %v1078 = vrcp.pop %v1073
  %v1079 = vmul.f32 1.0, %v1078
  %v1080 = vtanh.pop %v1061
  %v1081 = vmul.f32 %v1077, %v961
  %v1082 = vmul.f32 %v1075, %v1080
  %v1083 = vadd.f32 %v1081, %v1082
  %v1084 = vtanh.pop %v1083
  %v1085 = vmul.f32 %v1079, %v1084
  %s1086 = scalar_lea.vmem %s0, 48
  %v1087 = vld [vmem:[%s1086] sm:$0xff]
  %1089 = vset.pattern.permute.xlu0 0
  %1090 = vperm.xlu0 %1089, %v1087
  %v1091 = vpop.permute.xlu0 %1090
  %v1093 = vmul.f32 %v179, %v1091
  %v1094 = vmul.f32 %v183, %v1091
  %v1095 = vmul.f32 %v187, %v1091
  %v1096 = vmul.f32 %v191, %v1091
  %v1097 = vpack.c.bf16 %v1085, %v1085
  %1098 = vmatprep.subr.bf16.mxu0 %v331
  %1099 = vmatpush1.bf16.msra.mxu0 %v330
  %1100 = vmatprep.subr.bf16.mxu0 %v327
  %1101 = vmatpush1.bf16.msra.mxu0 %v326
  %1102 = vmatprep.subr.bf16.mxu0 %v323
  %1103 = vmatpush1.bf16.msra.mxu0 %v322
  %1104 = vmatprep.subr.bf16.mxu0 %v319
  %1105 = vmatpush1.bf16.msra.mxu0 %v318
  %1106 = vmatprep.subr.bf16.mxu0 %v315
  %1107 = vmatpush1.bf16.msra.mxu0 %v314
  %1108 = vmatprep.subr.bf16.mxu0 %v311
  %1109 = vmatpush1.bf16.msra.mxu0 %v310
  %1110 = vmatprep.subr.bf16.mxu0 %v307
  %1111 = vmatpush1.bf16.msra.mxu0 %v306
  %1112 = vmatprep.subr.bf16.mxu0 %v303
  %1113 = vmatpush1.bf16.msra.mxu0 %v302
  %1114 = vmatprep.subr.bf16.mxu0 0
  %1115 = vmatpush2.bf16.msra.mxu0 0
  %1116 = vmatprep.subr.bf16.mxu0 0
  %1117 = vmatpush2.bf16.msra.mxu0 0
  %1118 = vmatprep.subr.bf16.mxu0 0
  %1119 = vmatpush2.bf16.msra.mxu0 0
  %1120 = vmatprep.subr.bf16.mxu0 0
  %1121 = vmatpush2.bf16.msra.mxu0 0
  %1122 = vmatprep.subr.bf16.mxu0 0
  %1123 = vmatpush2.bf16.msra.mxu0 0
  %1124 = vmatprep.subr.bf16.mxu0 0
  %1125 = vmatpush2.bf16.msra.mxu0 0
  %1126 = vmatprep.subr.bf16.mxu0 0
  %1127 = vmatpush2.bf16.msra.mxu0 0
  %1128 = vmatprep.subr.bf16.mxu0 0
  %1129 = vmatpush2.bf16.msra.mxu0 0
  %1130 = vmatprep.mubr.bf16.mxu0 0
  %1131 = vmatmul.mubr.bf16.gmra.mxu0 %v1097
  %v1132 = vpop.f32.mrf.mxu0
  %v1133 = vadd.f32 0.0, %v1132
  %v1134 = vpop.f32.mrf.mxu0
  %v1135 = vadd.f32 0.0, %v1134
  %v1136 = vpop.f32.mrf.mxu0
  %v1137 = vpop.f32.mrf.mxu0
  %1138 = vdwg.mxu0
  %1139 = vmatprep.subr.bf16.mxu0 %v333
  %1140 = vmatpush1.bf16.msra.mxu0 %v332
  %1141 = vmatprep.subr.bf16.mxu0 %v329
  %1142 = vmatpush1.bf16.msra.mxu0 %v328
  %1143 = vmatprep.subr.bf16.mxu0 %v325
  %1144 = vmatpush1.bf16.msra.mxu0 %v324
  %1145 = vmatprep.subr.bf16.mxu0 %v321
  %1146 = vmatpush1.bf16.msra.mxu0 %v320
  %1147 = vmatprep.subr.bf16.mxu0 %v317
  %1148 = vmatpush1.bf16.msra.mxu0 %v316
  %1149 = vmatprep.subr.bf16.mxu0 %v313
  %1150 = vmatpush1.bf16.msra.mxu0 %v312
  %1151 = vmatprep.subr.bf16.mxu0 %v309
  %1152 = vmatpush1.bf16.msra.mxu0 %v308
  %1153 = vmatprep.subr.bf16.mxu0 %v305
  %1154 = vmatpush1.bf16.msra.mxu0 %v304
  %1155 = vmatprep.subr.bf16.mxu0 0
  %1156 = vmatpush2.bf16.msra.mxu0 0
  %1157 = vmatprep.subr.bf16.mxu0 0
  %1158 = vmatpush2.bf16.msra.mxu0 0
  %1159 = vmatprep.subr.bf16.mxu0 0
  %1160 = vmatpush2.bf16.msra.mxu0 0
  %1161 = vmatprep.subr.bf16.mxu0 0
  %1162 = vmatpush2.bf16.msra.mxu0 0
  %1163 = vmatprep.subr.bf16.mxu0 0
  %1164 = vmatpush2.bf16.msra.mxu0 0
  %1165 = vmatprep.subr.bf16.mxu0 0
  %1166 = vmatpush2.bf16.msra.mxu0 0
  %1167 = vmatprep.subr.bf16.mxu0 0
  %1168 = vmatpush2.bf16.msra.mxu0 0
  %1169 = vmatprep.subr.bf16.mxu0 0
  %1170 = vmatpush2.bf16.msra.mxu0 0
  %1171 = vmatprep.mubr.bf16.mxu0 0
  %1172 = vmatmul.mubr.bf16.gmra.mxu0 %v1097
  %v1173 = vpop.f32.mrf.mxu0
  %v1174 = vadd.f32 0.0, %v1173
  %v1175 = vpop.f32.mrf.mxu0
  %v1176 = vadd.f32 0.0, %v1175
  %v1177 = vpop.f32.mrf.mxu0
  %v1178 = vpop.f32.mrf.mxu0
  %1179 = vdwg.mxu0
  %v1180 = vadd.f32 %v1093, %v1133
  %v1181 = vadd.f32 %v1094, %v1135
  %v1182 = vadd.f32 %v1095, %v1174
  %v1183 = vadd.f32 %v1096, %v1176
  %v1184 = vxor.u32 %v1180, 2147483648
  %v1185 = vxor.u32 %v1181, 2147483648
  %v1186 = vxor.u32 %v1182, 2147483648
  %v1187 = vmul.f32 %v1184, 1.442695
  %v1188 = vpow.pop %v1187
  %v1189 = vmul.f32 %v1185, 1.442695
  %v1190 = vpow.pop %v1189
  %v1191 = vmul.f32 %v1186, 1.442695
  %v1192 = vpow.pop %v1191
  %v1193 = vadd.f32 %v1188, 1.0
  %v1194 = vadd.f32 %v1190, 1.0
  %v1195 = vadd.f32 %v1192, 1.0
  %v1196 = vrcp.pop %v1193
  %v1197 = vmul.f32 1.0, %v1196
  %v1198 = vrcp.pop %v1194
  %v1199 = vmul.f32 1.0, %v1198
  %v1200 = vrcp.pop %v1195
  %v1201 = vmul.f32 1.0, %v1200
  %v1202 = vtanh.pop %v1183
  %v1203 = vmul.f32 %v1199, %v1083
  %v1204 = vmul.f32 %v1197, %v1202
  %v1205 = vadd.f32 %v1203, %v1204
  %v1206 = vtanh.pop %v1205
  %v1207 = vmul.f32 %v1201, %v1206
  %s1208 = scalar_lea.vmem %s0, 56
  %v1209 = vld [vmem:[%s1208] sm:$0xff]
  %1211 = vset.pattern.permute.xlu0 0
  %1212 = vperm.xlu0 %1211, %v1209
  %v1213 = vpop.permute.xlu0 %1212
  %v1215 = vmul.f32 %v179, %v1213
  %v1216 = vmul.f32 %v183, %v1213
  %v1217 = vmul.f32 %v187, %v1213
  %v1218 = vmul.f32 %v191, %v1213
  %v1219 = vpack.c.bf16 %v1207, %v1207
  %1220 = vmatprep.subr.bf16.mxu0 %v331
  %1221 = vmatpush1.bf16.msra.mxu0 %v330
  %1222 = vmatprep.subr.bf16.mxu0 %v327
  %1223 = vmatpush1.bf16.msra.mxu0 %v326
  %1224 = vmatprep.subr.bf16.mxu0 %v323
  %1225 = vmatpush1.bf16.msra.mxu0 %v322
  %1226 = vmatprep.subr.bf16.mxu0 %v319
  %1227 = vmatpush1.bf16.msra.mxu0 %v318
  %1228 = vmatprep.subr.bf16.mxu0 %v315
  %1229 = vmatpush1.bf16.msra.mxu0 %v314
  %1230 = vmatprep.subr.bf16.mxu0 %v311
  %1231 = vmatpush1.bf16.msra.mxu0 %v310
  %1232 = vmatprep.subr.bf16.mxu0 %v307
  %1233 = vmatpush1.bf16.msra.mxu0 %v306
  %1234 = vmatprep.subr.bf16.mxu0 %v303
  %1235 = vmatpush1.bf16.msra.mxu0 %v302
  %1236 = vmatprep.subr.bf16.mxu0 0
  %1237 = vmatpush2.bf16.msra.mxu0 0
  %1238 = vmatprep.subr.bf16.mxu0 0
  %1239 = vmatpush2.bf16.msra.mxu0 0
  %1240 = vmatprep.subr.bf16.mxu0 0
  %1241 = vmatpush2.bf16.msra.mxu0 0
  %1242 = vmatprep.subr.bf16.mxu0 0
  %1243 = vmatpush2.bf16.msra.mxu0 0
  %1244 = vmatprep.subr.bf16.mxu0 0
  %1245 = vmatpush2.bf16.msra.mxu0 0
  %1246 = vmatprep.subr.bf16.mxu0 0
  %1247 = vmatpush2.bf16.msra.mxu0 0
  %1248 = vmatprep.subr.bf16.mxu0 0
  %1249 = vmatpush2.bf16.msra.mxu0 0
  %1250 = vmatprep.subr.bf16.mxu0 0
  %1251 = vmatpush2.bf16.msra.mxu0 0
  %1252 = vmatprep.mubr.bf16.mxu0 0
  %1253 = vmatmul.mubr.bf16.gmra.mxu0 %v1219
  %v1254 = vpop.f32.mrf.mxu0
  %v1255 = vadd.f32 0.0, %v1254
  %v1256 = vpop.f32.mrf.mxu0
  %v1257 = vadd.f32 0.0, %v1256
  %v1258 = vpop.f32.mrf.mxu0
  %v1259 = vpop.f32.mrf.mxu0
  %1260 = vdwg.mxu0
  %1261 = vmatprep.subr.bf16.mxu0 %v333
  %1262 = vmatpush1.bf16.msra.mxu0 %v332
  %1263 = vmatprep.subr.bf16.mxu0 %v329
  %1264 = vmatpush1.bf16.msra.mxu0 %v328
  %1265 = vmatprep.subr.bf16.mxu0 %v325
  %1266 = vmatpush1.bf16.msra.mxu0 %v324
  %1267 = vmatprep.subr.bf16.mxu0 %v321
  %1268 = vmatpush1.bf16.msra.mxu0 %v320
  %1269 = vmatprep.subr.bf16.mxu0 %v317
  %1270 = vmatpush1.bf16.msra.mxu0 %v316
  %1271 = vmatprep.subr.bf16.mxu0 %v313
  %1272 = vmatpush1.bf16.msra.mxu0 %v312
  %1273 = vmatprep.subr.bf16.mxu0 %v309
  %1274 = vmatpush1.bf16.msra.mxu0 %v308
  %1275 = vmatprep.subr.bf16.mxu0 %v305
  %1276 = vmatpush1.bf16.msra.mxu0 %v304
  %1277 = vmatprep.subr.bf16.mxu0 0
  %1278 = vmatpush2.bf16.msra.mxu0 0
  %1279 = vmatprep.subr.bf16.mxu0 0
  %1280 = vmatpush2.bf16.msra.mxu0 0
  %1281 = vmatprep.subr.bf16.mxu0 0
  %1282 = vmatpush2.bf16.msra.mxu0 0
  %1283 = vmatprep.subr.bf16.mxu0 0
  %1284 = vmatpush2.bf16.msra.mxu0 0
  %1285 = vmatprep.subr.bf16.mxu0 0
  %1286 = vmatpush2.bf16.msra.mxu0 0
  %1287 = vmatprep.subr.bf16.mxu0 0
  %1288 = vmatpush2.bf16.msra.mxu0 0
  %1289 = vmatprep.subr.bf16.mxu0 0
  %1290 = vmatpush2.bf16.msra.mxu0 0
  %1291 = vmatprep.subr.bf16.mxu0 0
  %1292 = vmatpush2.bf16.msra.mxu0 0
  %1293 = vmatprep.mubr.bf16.mxu0 0
  %1294 = vmatmul.mubr.bf16.gmra.mxu0 %v1219
  %v1295 = vpop.f32.mrf.mxu0
  %v1296 = vadd.f32 0.0, %v1295
  %v1297 = vpop.f32.mrf.mxu0
  %v1298 = vadd.f32 0.0, %v1297
  %v1299 = vpop.f32.mrf.mxu0
  %v1300 = vpop.f32.mrf.mxu0
  %1301 = vdwg.mxu0
  %v1302 = vadd.f32 %v1215, %v1255
  %v1303 = vadd.f32 %v1216, %v1257
  %v1304 = vadd.f32 %v1217, %v1296
  %v1305 = vadd.f32 %v1218, %v1298
  %v1306 = vxor.u32 %v1302, 2147483648
  %v1307 = vxor.u32 %v1303, 2147483648
  %v1308 = vxor.u32 %v1304, 2147483648
  %v1309 = vmul.f32 %v1306, 1.442695
  %v1310 = vpow.pop %v1309
  %v1311 = vmul.f32 %v1307, 1.442695
  %v1312 = vpow.pop %v1311
  %v1313 = vmul.f32 %v1308, 1.442695
  %v1314 = vpow.pop %v1313
  %v1315 = vadd.f32 %v1310, 1.0
  %v1316 = vadd.f32 %v1312, 1.0
  %v1317 = vadd.f32 %v1314, 1.0
  %v1318 = vrcp.pop %v1315
  %v1319 = vmul.f32 1.0, %v1318
  %v1320 = vrcp.pop %v1316
  %v1321 = vmul.f32 1.0, %v1320
  %v1322 = vrcp.pop %v1317
  %v1323 = vmul.f32 1.0, %v1322
  %v1324 = vtanh.pop %v1305
  %v1325 = vmul.f32 %v1321, %v1205
  %v1326 = vmul.f32 %v1319, %v1324
  %v1327 = vadd.f32 %v1325, %v1326
  %v1328 = vtanh.pop %v1327
  %v1329 = vmul.f32 %v1323, %v1328
  %v1330 = vld [vmem:[%s3] sm:$0xff]
  %v1331 = vld [vmem:[%s3 + $0x8] sm:$0xff]
  %v1332 = vld [vmem:[%s3 + $0x10] sm:$0xff]
  %v1333 = vld [vmem:[%s3 + $0x18] sm:$0xff]
  %v1334 = vpack.c.bf16 %v1329, %v1329
  %v1367 = vunpack.c.l.b16 %v65
  %v1368 = vunpack.c.h.b16 %v65
  %v1369 = vunpack.c.l.b16 %v66
  %v1370 = vunpack.c.h.b16 %v66
  %v1371 = vunpack.c.l.b16 %v67
  %v1372 = vunpack.c.h.b16 %v67
  %v1373 = vunpack.c.l.b16 %v68
  %v1374 = vunpack.c.h.b16 %v68
  %v1375 = vunpack.c.l.b16 %v69
  %v1376 = vunpack.c.h.b16 %v69
  %v1377 = vunpack.c.l.b16 %v70
  %v1378 = vunpack.c.h.b16 %v70
  %v1379 = vunpack.c.l.b16 %v71
  %v1380 = vunpack.c.h.b16 %v71
  %v1381 = vunpack.c.l.b16 %v72
  %v1382 = vunpack.c.h.b16 %v72
  %v1383 = vunpack.c.l.b16 %v73
  %v1384 = vunpack.c.h.b16 %v73
  %v1385 = vunpack.c.l.b16 %v74
  %v1386 = vunpack.c.h.b16 %v74
  %v1387 = vunpack.c.l.b16 %v75
  %v1388 = vunpack.c.h.b16 %v75
  %v1389 = vunpack.c.l.b16 %v76
  %v1390 = vunpack.c.h.b16 %v76
  %v1391 = vunpack.c.l.b16 %v77
  %v1392 = vunpack.c.h.b16 %v77
  %v1393 = vunpack.c.l.b16 %v78
  %v1394 = vunpack.c.h.b16 %v78
  %v1395 = vunpack.c.l.b16 %v79
  %v1396 = vunpack.c.h.b16 %v79
  %v1397 = vunpack.c.l.b16 %v80
  %v1398 = vunpack.c.h.b16 %v80
  %v1399 = vunpack.c.l.b16 %v81
  %v1400 = vunpack.c.h.b16 %v81
  %v1401 = vunpack.c.l.b16 %v82
  %v1402 = vunpack.c.h.b16 %v82
  %v1403 = vunpack.c.l.b16 %v83
  %v1404 = vunpack.c.h.b16 %v83
  %v1405 = vunpack.c.l.b16 %v84
  %v1406 = vunpack.c.h.b16 %v84
  %v1407 = vunpack.c.l.b16 %v85
  %v1408 = vunpack.c.h.b16 %v85
  %v1409 = vunpack.c.l.b16 %v86
  %v1410 = vunpack.c.h.b16 %v86
  %v1411 = vunpack.c.l.b16 %v87
  %v1412 = vunpack.c.h.b16 %v87
  %v1413 = vunpack.c.l.b16 %v88
  %v1414 = vunpack.c.h.b16 %v88
  %v1415 = vunpack.c.l.b16 %v89
  %v1416 = vunpack.c.h.b16 %v89
  %v1417 = vunpack.c.l.b16 %v90
  %v1418 = vunpack.c.h.b16 %v90
  %v1419 = vunpack.c.l.b16 %v91
  %v1420 = vunpack.c.h.b16 %v91
  %v1421 = vunpack.c.l.b16 %v92
  %v1422 = vunpack.c.h.b16 %v92
  %v1423 = vunpack.c.l.b16 %v93
  %v1424 = vunpack.c.h.b16 %v93
  %v1425 = vunpack.c.l.b16 %v94
  %v1426 = vunpack.c.h.b16 %v94
  %v1427 = vunpack.c.l.b16 %v95
  %v1428 = vunpack.c.h.b16 %v95
  %v1429 = vunpack.c.l.b16 %v96
  %v1430 = vunpack.c.h.b16 %v96
  %v1431 = vpack.c.b16 %v1371, %v1367
  %v1432 = vpack.c.b16 %v1372, %v1368
  %v1433 = vpack.c.b16 %v1373, %v1369
  %v1434 = vpack.c.b16 %v1374, %v1370
  %v1435 = vpack.c.b16 %v1379, %v1375
  %v1436 = vpack.c.b16 %v1380, %v1376
  %v1437 = vpack.c.b16 %v1381, %v1377
  %v1438 = vpack.c.b16 %v1382, %v1378
  %v1439 = vpack.c.b16 %v1387, %v1383
  %v1440 = vpack.c.b16 %v1388, %v1384
  %v1441 = vpack.c.b16 %v1389, %v1385
  %v1442 = vpack.c.b16 %v1390, %v1386
  %v1443 = vpack.c.b16 %v1395, %v1391
  %v1444 = vpack.c.b16 %v1396, %v1392
  %v1445 = vpack.c.b16 %v1397, %v1393
  %v1446 = vpack.c.b16 %v1398, %v1394
  %v1447 = vpack.c.b16 %v1403, %v1399
  %v1448 = vpack.c.b16 %v1404, %v1400
  %v1449 = vpack.c.b16 %v1405, %v1401
  %v1450 = vpack.c.b16 %v1406, %v1402
  %v1451 = vpack.c.b16 %v1411, %v1407
  %v1452 = vpack.c.b16 %v1412, %v1408
  %v1453 = vpack.c.b16 %v1413, %v1409
  %v1454 = vpack.c.b16 %v1414, %v1410
  %v1455 = vpack.c.b16 %v1419, %v1415
  %v1456 = vpack.c.b16 %v1420, %v1416
  %v1457 = vpack.c.b16 %v1421, %v1417
  %v1458 = vpack.c.b16 %v1422, %v1418
  %v1459 = vpack.c.b16 %v1427, %v1423
  %v1460 = vpack.c.b16 %v1428, %v1424
  %v1461 = vpack.c.b16 %v1429, %v1425
  %v1462 = vpack.c.b16 %v1430, %v1426
  %1495 = vmatprep.subr.bf16.mxu0 %v1460
  %1496 = vmatpush1.bf16.msra.mxu0 %v1459
  %1497 = vmatprep.subr.bf16.mxu0 %v1456
  %1498 = vmatpush1.bf16.msra.mxu0 %v1455
  %1499 = vmatprep.subr.bf16.mxu0 %v1452
  %1500 = vmatpush1.bf16.msra.mxu0 %v1451
  %1501 = vmatprep.subr.bf16.mxu0 %v1448
  %1502 = vmatpush1.bf16.msra.mxu0 %v1447
  %1503 = vmatprep.subr.bf16.mxu0 %v1444
  %1504 = vmatpush1.bf16.msra.mxu0 %v1443
  %1505 = vmatprep.subr.bf16.mxu0 %v1440
  %1506 = vmatpush1.bf16.msra.mxu0 %v1439
  %1507 = vmatprep.subr.bf16.mxu0 %v1436
  %1508 = vmatpush1.bf16.msra.mxu0 %v1435
  %1509 = vmatprep.subr.bf16.mxu0 %v1432
  %1510 = vmatpush1.bf16.msra.mxu0 %v1431
  %1511 = vmatprep.subr.bf16.mxu0 0
  %1512 = vmatpush2.bf16.msra.mxu0 0
  %1513 = vmatprep.subr.bf16.mxu0 0
  %1514 = vmatpush2.bf16.msra.mxu0 0
  %1515 = vmatprep.subr.bf16.mxu0 0
  %1516 = vmatpush2.bf16.msra.mxu0 0
  %1517 = vmatprep.subr.bf16.mxu0 0
  %1518 = vmatpush2.bf16.msra.mxu0 0
  %1519 = vmatprep.subr.bf16.mxu0 0
  %1520 = vmatpush2.bf16.msra.mxu0 0
  %1521 = vmatprep.subr.bf16.mxu0 0
  %1522 = vmatpush2.bf16.msra.mxu0 0
  %1523 = vmatprep.subr.bf16.mxu0 0
  %1524 = vmatpush2.bf16.msra.mxu0 0
  %1525 = vmatprep.subr.bf16.mxu0 0
  %1526 = vmatpush2.bf16.msra.mxu0 0
  %1527 = vmatprep.mubr.bf16.mxu0 0
  %1528 = vmatmul.mubr.bf16.gmra.mxu0 %v1334
  %v1529 = vpop.f32.mrf.mxu0
  %v1530 = vadd.f32 0.0, %v1529
  %v1531 = vpop.f32.mrf.mxu0
  %v1532 = vadd.f32 0.0, %v1531
  %v1533 = vpop.f32.mrf.mxu0
  %v1534 = vpop.f32.mrf.mxu0
  %1535 = vdwg.mxu0
  %1536 = vmatprep.subr.bf16.mxu0 %v1462
  %1537 = vmatpush1.bf16.msra.mxu0 %v1461
  %1538 = vmatprep.subr.bf16.mxu0 %v1458
  %1539 = vmatpush1.bf16.msra.mxu0 %v1457
  %1540 = vmatprep.subr.bf16.mxu0 %v1454
  %1541 = vmatpush1.bf16.msra.mxu0 %v1453
  %1542 = vmatprep.subr.bf16.mxu0 %v1450
  %1543 = vmatpush1.bf16.msra.mxu0 %v1449
  %1544 = vmatprep.subr.bf16.mxu0 %v1446
  %1545 = vmatpush1.bf16.msra.mxu0 %v1445
  %1546 = vmatprep.subr.bf16.mxu0 %v1442
  %1547 = vmatpush1.bf16.msra.mxu0 %v1441
  %1548 = vmatprep.subr.bf16.mxu0 %v1438
  %1549 = vmatpush1.bf16.msra.mxu0 %v1437
  %1550 = vmatprep.subr.bf16.mxu0 %v1434
  %1551 = vmatpush1.bf16.msra.mxu0 %v1433
  %1552 = vmatprep.subr.bf16.mxu0 0
  %1553 = vmatpush2.bf16.msra.mxu0 0
  %1554 = vmatprep.subr.bf16.mxu0 0
  %1555 = vmatpush2.bf16.msra.mxu0 0
  %1556 = vmatprep.subr.bf16.mxu0 0
  %1557 = vmatpush2.bf16.msra.mxu0 0
  %1558 = vmatprep.subr.bf16.mxu0 0
  %1559 = vmatpush2.bf16.msra.mxu0 0
  %1560 = vmatprep.subr.bf16.mxu0 0
  %1561 = vmatpush2.bf16.msra.mxu0 0
  %1562 = vmatprep.subr.bf16.mxu0 0
  %1563 = vmatpush2.bf16.msra.mxu0 0
  %1564 = vmatprep.subr.bf16.mxu0 0
  %1565 = vmatpush2.bf16.msra.mxu0 0
  %1566 = vmatprep.subr.bf16.mxu0 0
  %1567 = vmatpush2.bf16.msra.mxu0 0
  %1568 = vmatprep.mubr.bf16.mxu0 0
  %1569 = vmatmul.mubr.bf16.gmra.mxu0 %v1334
  %v1570 = vpop.f32.mrf.mxu0
  %v1571 = vadd.f32 0.0, %v1570
  %v1572 = vpop.f32.mrf.mxu0
  %v1573 = vadd.f32 0.0, %v1572
  %v1574 = vpop.f32.mrf.mxu0
  %v1575 = vpop.f32.mrf.mxu0
  %1576 = vdwg.mxu0
  %v1577 = vadd.f32 %v1330, %v1530
  %v1578 = vadd.f32 %v1331, %v1532
  %v1579 = vadd.f32 %v1332, %v1571
  %v1580 = vadd.f32 %v1333, %v1573
  %v1581 = vxor.u32 %v1577, 2147483648
  %v1582 = vxor.u32 %v1578, 2147483648
  %v1583 = vxor.u32 %v1579, 2147483648
  %v1584 = vmul.f32 %v1581, 1.442695
  %v1585 = vpow.pop %v1584
  %v1586 = vmul.f32 %v1582, 1.442695
  %v1587 = vpow.pop %v1586
  %v1588 = vmul.f32 %v1583, 1.442695
  %v1589 = vpow.pop %v1588
  %v1590 = vadd.f32 %v1585, 1.0
  %v1591 = vadd.f32 %v1587, 1.0
  %v1592 = vadd.f32 %v1589, 1.0
  %v1593 = vrcp.pop %v1590
  %v1594 = vmul.f32 1.0, %v1593
  %v1595 = vrcp.pop %v1591
  %v1596 = vmul.f32 1.0, %v1595
  %v1597 = vrcp.pop %v1592
  %v1598 = vmul.f32 1.0, %v1597
  %v1599 = vtanh.pop %v1580
  %v1600 = vmul.f32 %v1596, %v1327
  %v1601 = vmul.f32 %v1594, %v1599
  %v1602 = vadd.f32 %v1600, %v1601
  %v1603 = vtanh.pop %v1602
  %v1604 = vmul.f32 %v1598, %v1603
  %v1605 = vpack.c.bf16 %v1604, %v1604
  %v1638 = vunpack.c.l.b16 %v97
  %v1639 = vunpack.c.h.b16 %v97
  %v1640 = vunpack.c.l.b16 %v98
  %v1641 = vunpack.c.h.b16 %v98
  %v1642 = vunpack.c.l.b16 %v99
  %v1643 = vunpack.c.h.b16 %v99
  %v1644 = vunpack.c.l.b16 %v100
  %v1645 = vunpack.c.h.b16 %v100
  %v1646 = vunpack.c.l.b16 %v101
  %v1647 = vunpack.c.h.b16 %v101
  %v1648 = vunpack.c.l.b16 %v102
  %v1649 = vunpack.c.h.b16 %v102
  %v1650 = vunpack.c.l.b16 %v103
  %v1651 = vunpack.c.h.b16 %v103
  %v1652 = vunpack.c.l.b16 %v104
  %v1653 = vunpack.c.h.b16 %v104
  %v1654 = vunpack.c.l.b16 %v105
  %v1655 = vunpack.c.h.b16 %v105
  %v1656 = vunpack.c.l.b16 %v106
  %v1657 = vunpack.c.h.b16 %v106
  %v1658 = vunpack.c.l.b16 %v107
  %v1659 = vunpack.c.h.b16 %v107
  %v1660 = vunpack.c.l.b16 %v108
  %v1661 = vunpack.c.h.b16 %v108
  %v1662 = vunpack.c.l.b16 %v109
  %v1663 = vunpack.c.h.b16 %v109
  %v1664 = vunpack.c.l.b16 %v110
  %v1665 = vunpack.c.h.b16 %v110
  %v1666 = vunpack.c.l.b16 %v111
  %v1667 = vunpack.c.h.b16 %v111
  %v1668 = vunpack.c.l.b16 %v112
  %v1669 = vunpack.c.h.b16 %v112
  %v1670 = vunpack.c.l.b16 %v113
  %v1671 = vunpack.c.h.b16 %v113
  %v1672 = vunpack.c.l.b16 %v114
  %v1673 = vunpack.c.h.b16 %v114
  %v1674 = vunpack.c.l.b16 %v115
  %v1675 = vunpack.c.h.b16 %v115
  %v1676 = vunpack.c.l.b16 %v116
  %v1677 = vunpack.c.h.b16 %v116
  %v1678 = vunpack.c.l.b16 %v117
  %v1679 = vunpack.c.h.b16 %v117
  %v1680 = vunpack.c.l.b16 %v118
  %v1681 = vunpack.c.h.b16 %v118
  %v1682 = vunpack.c.l.b16 %v119
  %v1683 = vunpack.c.h.b16 %v119
  %v1684 = vunpack.c.l.b16 %v120
  %v1685 = vunpack.c.h.b16 %v120
  %v1686 = vunpack.c.l.b16 %v121
  %v1687 = vunpack.c.h.b16 %v121
  %v1688 = vunpack.c.l.b16 %v122
  %v1689 = vunpack.c.h.b16 %v122
  %v1690 = vunpack.c.l.b16 %v123
  %v1691 = vunpack.c.h.b16 %v123
  %v1692 = vunpack.c.l.b16 %v124
  %v1693 = vunpack.c.h.b16 %v124
  %v1694 = vunpack.c.l.b16 %v125
  %v1695 = vunpack.c.h.b16 %v125
  %v1696 = vunpack.c.l.b16 %v126
  %v1697 = vunpack.c.h.b16 %v126
  %v1698 = vunpack.c.l.b16 %v127
  %v1699 = vunpack.c.h.b16 %v127
  %v1700 = vunpack.c.l.b16 %v128
  %v1701 = vunpack.c.h.b16 %v128
  %v1702 = vpack.c.b16 %v1642, %v1638
  %v1703 = vpack.c.b16 %v1643, %v1639
  %v1704 = vpack.c.b16 %v1644, %v1640
  %v1705 = vpack.c.b16 %v1645, %v1641
  %v1706 = vpack.c.b16 %v1650, %v1646
  %v1707 = vpack.c.b16 %v1651, %v1647
  %v1708 = vpack.c.b16 %v1652, %v1648
  %v1709 = vpack.c.b16 %v1653, %v1649
  %v1710 = vpack.c.b16 %v1658, %v1654
  %v1711 = vpack.c.b16 %v1659, %v1655
  %v1712 = vpack.c.b16 %v1660, %v1656
  %v1713 = vpack.c.b16 %v1661, %v1657
  %v1714 = vpack.c.b16 %v1666, %v1662
  %v1715 = vpack.c.b16 %v1667, %v1663
  %v1716 = vpack.c.b16 %v1668, %v1664
  %v1717 = vpack.c.b16 %v1669, %v1665
  %v1718 = vpack.c.b16 %v1674, %v1670
  %v1719 = vpack.c.b16 %v1675, %v1671
  %v1720 = vpack.c.b16 %v1676, %v1672
  %v1721 = vpack.c.b16 %v1677, %v1673
  %v1722 = vpack.c.b16 %v1682, %v1678
  %v1723 = vpack.c.b16 %v1683, %v1679
  %v1724 = vpack.c.b16 %v1684, %v1680
  %v1725 = vpack.c.b16 %v1685, %v1681
  %v1726 = vpack.c.b16 %v1690, %v1686
  %v1727 = vpack.c.b16 %v1691, %v1687
  %v1728 = vpack.c.b16 %v1692, %v1688
  %v1729 = vpack.c.b16 %v1693, %v1689
  %v1730 = vpack.c.b16 %v1698, %v1694
  %v1731 = vpack.c.b16 %v1699, %v1695
  %v1732 = vpack.c.b16 %v1700, %v1696
  %v1733 = vpack.c.b16 %v1701, %v1697
  %1766 = vmatprep.subr.bf16.mxu0 %v1731
  %1767 = vmatpush1.bf16.msra.mxu0 %v1730
  %1768 = vmatprep.subr.bf16.mxu0 %v1727
  %1769 = vmatpush1.bf16.msra.mxu0 %v1726
  %1770 = vmatprep.subr.bf16.mxu0 %v1723
  %1771 = vmatpush1.bf16.msra.mxu0 %v1722
  %1772 = vmatprep.subr.bf16.mxu0 %v1719
  %1773 = vmatpush1.bf16.msra.mxu0 %v1718
  %1774 = vmatprep.subr.bf16.mxu0 %v1715
  %1775 = vmatpush1.bf16.msra.mxu0 %v1714
  %1776 = vmatprep.subr.bf16.mxu0 %v1711
  %1777 = vmatpush1.bf16.msra.mxu0 %v1710
  %1778 = vmatprep.subr.bf16.mxu0 %v1707
  %1779 = vmatpush1.bf16.msra.mxu0 %v1706
  %1780 = vmatprep.subr.bf16.mxu0 %v1703
  %1781 = vmatpush1.bf16.msra.mxu0 %v1702
  %1782 = vmatprep.subr.bf16.mxu0 0
  %1783 = vmatpush2.bf16.msra.mxu0 0
  %1784 = vmatprep.subr.bf16.mxu0 0
  %1785 = vmatpush2.bf16.msra.mxu0 0
  %1786 = vmatprep.subr.bf16.mxu0 0
  %1787 = vmatpush2.bf16.msra.mxu0 0
  %1788 = vmatprep.subr.bf16.mxu0 0
  %1789 = vmatpush2.bf16.msra.mxu0 0
  %1790 = vmatprep.subr.bf16.mxu0 0
  %1791 = vmatpush2.bf16.msra.mxu0 0
  %1792 = vmatprep.subr.bf16.mxu0 0
  %1793 = vmatpush2.bf16.msra.mxu0 0
  %1794 = vmatprep.subr.bf16.mxu0 0
  %1795 = vmatpush2.bf16.msra.mxu0 0
  %1796 = vmatprep.subr.bf16.mxu0 0
  %1797 = vmatpush2.bf16.msra.mxu0 0
  %1798 = vmatprep.mubr.bf16.mxu0 0
  %1799 = vmatmul.mubr.bf16.gmra.mxu0 %v1605
  %v1800 = vpop.f32.mrf.mxu0
  %v1801 = vadd.f32 %v150, %v1800
  %v1802 = vpop.f32.mrf.mxu0
  %v1803 = vadd.f32 %v154, %v1802
  %v1804 = vpop.f32.mrf.mxu0
  %v1805 = vpop.f32.mrf.mxu0
  %1806 = vdwg.mxu0
  %1807 = vmatprep.subr.bf16.mxu0 %v1733
  %1808 = vmatpush1.bf16.msra.mxu0 %v1732
  %1809 = vmatprep.subr.bf16.mxu0 %v1729
  %1810 = vmatpush1.bf16.msra.mxu0 %v1728
  %1811 = vmatprep.subr.bf16.mxu0 %v1725
  %1812 = vmatpush1.bf16.msra.mxu0 %v1724
  %1813 = vmatprep.subr.bf16.mxu0 %v1721
  %1814 = vmatpush1.bf16.msra.mxu0 %v1720
  %1815 = vmatprep.subr.bf16.mxu0 %v1717
  %1816 = vmatpush1.bf16.msra.mxu0 %v1716
  %1817 = vmatprep.subr.bf16.mxu0 %v1713
  %1818 = vmatpush1.bf16.msra.mxu0 %v1712
  %1819 = vmatprep.subr.bf16.mxu0 %v1709
  %1820 = vmatpush1.bf16.msra.mxu0 %v1708
  %1821 = vmatprep.subr.bf16.mxu0 %v1705
  %1822 = vmatpush1.bf16.msra.mxu0 %v1704
  %1823 = vmatprep.subr.bf16.mxu0 0
  %1824 = vmatpush2.bf16.msra.mxu0 0
  %1825 = vmatprep.subr.bf16.mxu0 0
  %1826 = vmatpush2.bf16.msra.mxu0 0
  %1827 = vmatprep.subr.bf16.mxu0 0
  %1828 = vmatpush2.bf16.msra.mxu0 0
  %1829 = vmatprep.subr.bf16.mxu0 0
  %1830 = vmatpush2.bf16.msra.mxu0 0
  %1831 = vmatprep.subr.bf16.mxu0 0
  %1832 = vmatpush2.bf16.msra.mxu0 0
  %1833 = vmatprep.subr.bf16.mxu0 0
  %1834 = vmatpush2.bf16.msra.mxu0 0
  %1835 = vmatprep.subr.bf16.mxu0 0
  %1836 = vmatpush2.bf16.msra.mxu0 0
  %1837 = vmatprep.subr.bf16.mxu0 0
  %1838 = vmatpush2.bf16.msra.mxu0 0
  %1839 = vmatprep.mubr.bf16.mxu0 0
  %1840 = vmatmul.mubr.bf16.gmra.mxu0 %v1605
  %v1841 = vpop.f32.mrf.mxu0
  %v1842 = vadd.f32 %v158, %v1841
  %v1843 = vpop.f32.mrf.mxu0
  %v1844 = vadd.f32 %v162, %v1843
  %v1845 = vpop.f32.mrf.mxu0
  %v1846 = vpop.f32.mrf.mxu0
  %1847 = vdwg.mxu0
  %v1864 = vunpack.c.l.b16 %v129
  %v1865 = vunpack.c.l.b16 %v130
  %v1866 = vunpack.c.l.b16 %v131
  %v1867 = vunpack.c.l.b16 %v132
  %v1868 = vunpack.c.l.b16 %v133
  %v1869 = vunpack.c.l.b16 %v134
  %v1870 = vunpack.c.l.b16 %v135
  %v1871 = vunpack.c.l.b16 %v136
  %v1872 = vunpack.c.l.b16 %v137
  %v1873 = vunpack.c.l.b16 %v138
  %v1874 = vunpack.c.l.b16 %v139
  %v1875 = vunpack.c.l.b16 %v140
  %v1876 = vunpack.c.l.b16 %v141
  %v1877 = vunpack.c.l.b16 %v142
  %v1878 = vunpack.c.l.b16 %v143
  %v1879 = vunpack.c.l.b16 %v144
  %v1880 = vpack.c.b16 %v1865, %v1864
  %v1881 = vpack.c.b16 %v1867, %v1866
  %v1882 = vpack.c.b16 %v1869, %v1868
  %v1883 = vpack.c.b16 %v1871, %v1870
  %v1884 = vpack.c.b16 %v1873, %v1872
  %v1885 = vpack.c.b16 %v1875, %v1874
  %v1886 = vpack.c.b16 %v1877, %v1876
  %v1887 = vpack.c.b16 %v1879, %v1878
  %1896 = vmatprep.subr.bf16.mxu0 0
  %1897 = vmatpush1.bf16.msra.mxu0 %v1887
  %1898 = vmatprep.subr.bf16.mxu0 0
  %1899 = vmatpush1.bf16.msra.mxu0 %v1886
  %1900 = vmatprep.subr.bf16.mxu0 0
  %1901 = vmatpush1.bf16.msra.mxu0 %v1885
  %1902 = vmatprep.subr.bf16.mxu0 0
  %1903 = vmatpush1.bf16.msra.mxu0 %v1884
  %1904 = vmatprep.subr.bf16.mxu0 0
  %1905 = vmatpush1.bf16.msra.mxu0 %v1883
  %1906 = vmatprep.subr.bf16.mxu0 0
  %1907 = vmatpush1.bf16.msra.mxu0 %v1882
  %1908 = vmatprep.subr.bf16.mxu0 0
  %1909 = vmatpush1.bf16.msra.mxu0 %v1881
  %1910 = vmatprep.subr.bf16.mxu0 0
  %1911 = vmatpush1.bf16.msra.mxu0 %v1880
  %1912 = vmatprep.subr.bf16.mxu0 0
  %1913 = vmatpush2.bf16.msra.mxu0 0
  %1914 = vmatprep.subr.bf16.mxu0 0
  %1915 = vmatpush2.bf16.msra.mxu0 0
  %1916 = vmatprep.subr.bf16.mxu0 0
  %1917 = vmatpush2.bf16.msra.mxu0 0
  %1918 = vmatprep.subr.bf16.mxu0 0
  %1919 = vmatpush2.bf16.msra.mxu0 0
  %1920 = vmatprep.subr.bf16.mxu0 0
  %1921 = vmatpush2.bf16.msra.mxu0 0
  %1922 = vmatprep.subr.bf16.mxu0 0
  %1923 = vmatpush2.bf16.msra.mxu0 0
  %1924 = vmatprep.subr.bf16.mxu0 0
  %1925 = vmatpush2.bf16.msra.mxu0 0
  %1926 = vmatprep.subr.bf16.mxu0 0
  %1927 = vmatpush2.bf16.msra.mxu0 0
  %1928 = vmatprep.mubr.bf16.mxu0 0
  %1929 = vmatmul.mubr.bf16.gmra.mxu0 %v1605
  %v1930 = vpop.f32.mrf.mxu0
  %v1931 = vadd.f32 %v172, %v1930
  %v1932 = vpop.f32.mrf.mxu0
  %v1933 = vpop.f32.mrf.mxu0
  %v1934 = vpop.f32.mrf.mxu0
  %1935 = vdwg.mxu0
  %1936 = vst [vmem:[%s9] sm:$0xff] %v1931
  %1937 = vmatprep.subr.bf16.mxu0 %v1460
  %1938 = vmatpush1.bf16.msra.mxu0 %v1459
  %1939 = vmatprep.subr.bf16.mxu0 %v1456
  %1940 = vmatpush1.bf16.msra.mxu0 %v1455
  %1941 = vmatprep.subr.bf16.mxu0 %v1452
  %1942 = vmatpush1.bf16.msra.mxu0 %v1451
  %1943 = vmatprep.subr.bf16.mxu0 %v1448
  %1944 = vmatpush1.bf16.msra.mxu0 %v1447
  %1945 = vmatprep.subr.bf16.mxu0 %v1444
  %1946 = vmatpush1.bf16.msra.mxu0 %v1443
  %1947 = vmatprep.subr.bf16.mxu0 %v1440
  %1948 = vmatpush1.bf16.msra.mxu0 %v1439
  %1949 = vmatprep.subr.bf16.mxu0 %v1436
  %1950 = vmatpush1.bf16.msra.mxu0 %v1435
  %1951 = vmatprep.subr.bf16.mxu0 %v1432
  %1952 = vmatpush1.bf16.msra.mxu0 %v1431
  %1953 = vmatprep.subr.bf16.mxu0 0
  %1954 = vmatpush2.bf16.msra.mxu0 0
  %1955 = vmatprep.subr.bf16.mxu0 0
  %1956 = vmatpush2.bf16.msra.mxu0 0
  %1957 = vmatprep.subr.bf16.mxu0 0
  %1958 = vmatpush2.bf16.msra.mxu0 0
  %1959 = vmatprep.subr.bf16.mxu0 0
  %1960 = vmatpush2.bf16.msra.mxu0 0
  %1961 = vmatprep.subr.bf16.mxu0 0
  %1962 = vmatpush2.bf16.msra.mxu0 0
  %1963 = vmatprep.subr.bf16.mxu0 0
  %1964 = vmatpush2.bf16.msra.mxu0 0
  %1965 = vmatprep.subr.bf16.mxu0 0
  %1966 = vmatpush2.bf16.msra.mxu0 0
  %1967 = vmatprep.subr.bf16.mxu0 0
  %1968 = vmatpush2.bf16.msra.mxu0 0
  %1969 = vmatprep.mubr.bf16.mxu0 0
  %1970 = vmatmul.mubr.bf16.gmra.mxu0 %v1605
  %v1971 = vpop.f32.mrf.mxu0
  %v1972 = vadd.f32 0.0, %v1971
  %v1973 = vpop.f32.mrf.mxu0
  %v1974 = vadd.f32 0.0, %v1973
  %v1975 = vpop.f32.mrf.mxu0
  %v1976 = vpop.f32.mrf.mxu0
  %1977 = vdwg.mxu0
  %1978 = vmatprep.subr.bf16.mxu0 %v1462
  %1979 = vmatpush1.bf16.msra.mxu0 %v1461
  %1980 = vmatprep.subr.bf16.mxu0 %v1458
  %1981 = vmatpush1.bf16.msra.mxu0 %v1457
  %1982 = vmatprep.subr.bf16.mxu0 %v1454
  %1983 = vmatpush1.bf16.msra.mxu0 %v1453
  %1984 = vmatprep.subr.bf16.mxu0 %v1450
  %1985 = vmatpush1.bf16.msra.mxu0 %v1449
  %1986 = vmatprep.subr.bf16.mxu0 %v1446
  %1987 = vmatpush1.bf16.msra.mxu0 %v1445
  %1988 = vmatprep.subr.bf16.mxu0 %v1442
  %1989 = vmatpush1.bf16.msra.mxu0 %v1441
  %1990 = vmatprep.subr.bf16.mxu0 %v1438
  %1991 = vmatpush1.bf16.msra.mxu0 %v1437
  %1992 = vmatprep.subr.bf16.mxu0 %v1434
  %1993 = vmatpush1.bf16.msra.mxu0 %v1433
  %1994 = vmatprep.subr.bf16.mxu0 0
  %1995 = vmatpush2.bf16.msra.mxu0 0
  %1996 = vmatprep.subr.bf16.mxu0 0
  %1997 = vmatpush2.bf16.msra.mxu0 0
  %1998 = vmatprep.subr.bf16.mxu0 0
  %1999 = vmatpush2.bf16.msra.mxu0 0
  %2000 = vmatprep.subr.bf16.mxu0 0
  %2001 = vmatpush2.bf16.msra.mxu0 0
  %2002 = vmatprep.subr.bf16.mxu0 0
  %2003 = vmatpush2.bf16.msra.mxu0 0
  %2004 = vmatprep.subr.bf16.mxu0 0
  %2005 = vmatpush2.bf16.msra.mxu0 0
  %2006 = vmatprep.subr.bf16.mxu0 0
  %2007 = vmatpush2.bf16.msra.mxu0 0
  %2008 = vmatprep.subr.bf16.mxu0 0
  %2009 = vmatpush2.bf16.msra.mxu0 0
  %2010 = vmatprep.mubr.bf16.mxu0 0
  %2011 = vmatmul.mubr.bf16.gmra.mxu0 %v1605
  %v2012 = vpop.f32.mrf.mxu0
  %v2013 = vadd.f32 0.0, %v2012
  %v2014 = vpop.f32.mrf.mxu0
  %v2015 = vadd.f32 0.0, %v2014
  %v2016 = vpop.f32.mrf.mxu0
  %v2017 = vpop.f32.mrf.mxu0
  %2018 = vdwg.mxu0
  %v2019 = vadd.f32 %v1801, %v1972
  %v2020 = vadd.f32 %v1803, %v1974
  %v2021 = vadd.f32 %v1842, %v2013
  %v2022 = vadd.f32 %v1844, %v2015
  %v2023 = vxor.u32 %v2019, 2147483648
  %v2024 = vxor.u32 %v2020, 2147483648
  %v2025 = vxor.u32 %v2021, 2147483648
  %v2026 = vmul.f32 %v2023, 1.442695
  %v2027 = vpow.pop %v2026
  %v2028 = vmul.f32 %v2024, 1.442695
  %v2029 = vpow.pop %v2028
  %v2030 = vmul.f32 %v2025, 1.442695
  %v2031 = vpow.pop %v2030
  %v2032 = vadd.f32 %v2027, 1.0
  %v2033 = vadd.f32 %v2029, 1.0
  %v2034 = vadd.f32 %v2031, 1.0
  %v2035 = vrcp.pop %v2032
  %v2036 = vmul.f32 1.0, %v2035
  %v2037 = vrcp.pop %v2033
  %v2038 = vmul.f32 1.0, %v2037
  %v2039 = vrcp.pop %v2034
  %v2040 = vmul.f32 1.0, %v2039
  %v2041 = vtanh.pop %v2022
  %v2042 = vmul.f32 %v2038, %v1602
  %v2043 = vmul.f32 %v2036, %v2041
  %v2044 = vadd.f32 %v2042, %v2043
  %v2045 = vtanh.pop %v2044
  %v2046 = vmul.f32 %v2040, %v2045
  %v2047 = vpack.c.bf16 %v2046, %v2046
  %2048 = vmatprep.subr.bf16.mxu0 %v1731
  %2049 = vmatpush1.bf16.msra.mxu0 %v1730
  %2050 = vmatprep.subr.bf16.mxu0 %v1727
  %2051 = vmatpush1.bf16.msra.mxu0 %v1726
  %2052 = vmatprep.subr.bf16.mxu0 %v1723
  %2053 = vmatpush1.bf16.msra.mxu0 %v1722
  %2054 = vmatprep.subr.bf16.mxu0 %v1719
  %2055 = vmatpush1.bf16.msra.mxu0 %v1718
  %2056 = vmatprep.subr.bf16.mxu0 %v1715
  %2057 = vmatpush1.bf16.msra.mxu0 %v1714
  %2058 = vmatprep.subr.bf16.mxu0 %v1711
  %2059 = vmatpush1.bf16.msra.mxu0 %v1710
  %2060 = vmatprep.subr.bf16.mxu0 %v1707
  %2061 = vmatpush1.bf16.msra.mxu0 %v1706
  %2062 = vmatprep.subr.bf16.mxu0 %v1703
  %2063 = vmatpush1.bf16.msra.mxu0 %v1702
  %2064 = vmatprep.subr.bf16.mxu0 0
  %2065 = vmatpush2.bf16.msra.mxu0 0
  %2066 = vmatprep.subr.bf16.mxu0 0
  %2067 = vmatpush2.bf16.msra.mxu0 0
  %2068 = vmatprep.subr.bf16.mxu0 0
  %2069 = vmatpush2.bf16.msra.mxu0 0
  %2070 = vmatprep.subr.bf16.mxu0 0
  %2071 = vmatpush2.bf16.msra.mxu0 0
  %2072 = vmatprep.subr.bf16.mxu0 0
  %2073 = vmatpush2.bf16.msra.mxu0 0
  %2074 = vmatprep.subr.bf16.mxu0 0
  %2075 = vmatpush2.bf16.msra.mxu0 0
  %2076 = vmatprep.subr.bf16.mxu0 0
  %2077 = vmatpush2.bf16.msra.mxu0 0
  %2078 = vmatprep.subr.bf16.mxu0 0
  %2079 = vmatpush2.bf16.msra.mxu0 0
  %2080 = vmatprep.mubr.bf16.mxu0 0
  %2081 = vmatmul.mubr.bf16.gmra.mxu0 %v2047
  %v2082 = vpop.f32.mrf.mxu0
  %v2083 = vadd.f32 %v150, %v2082
  %v2084 = vpop.f32.mrf.mxu0
  %v2085 = vadd.f32 %v154, %v2084
  %v2086 = vpop.f32.mrf.mxu0
  %v2087 = vpop.f32.mrf.mxu0
  %2088 = vdwg.mxu0
  %2089 = vmatprep.subr.bf16.mxu0 %v1733
  %2090 = vmatpush1.bf16.msra.mxu0 %v1732
  %2091 = vmatprep.subr.bf16.mxu0 %v1729
  %2092 = vmatpush1.bf16.msra.mxu0 %v1728
  %2093 = vmatprep.subr.bf16.mxu0 %v1725
  %2094 = vmatpush1.bf16.msra.mxu0 %v1724
  %2095 = vmatprep.subr.bf16.mxu0 %v1721
  %2096 = vmatpush1.bf16.msra.mxu0 %v1720
  %2097 = vmatprep.subr.bf16.mxu0 %v1717
  %2098 = vmatpush1.bf16.msra.mxu0 %v1716
  %2099 = vmatprep.subr.bf16.mxu0 %v1713
  %2100 = vmatpush1.bf16.msra.mxu0 %v1712
  %2101 = vmatprep.subr.bf16.mxu0 %v1709
  %2102 = vmatpush1.bf16.msra.mxu0 %v1708
  %2103 = vmatprep.subr.bf16.mxu0 %v1705
  %2104 = vmatpush1.bf16.msra.mxu0 %v1704
  %2105 = vmatprep.subr.bf16.mxu0 0
  %2106 = vmatpush2.bf16.msra.mxu0 0
  %2107 = vmatprep.subr.bf16.mxu0 0
  %2108 = vmatpush2.bf16.msra.mxu0 0
  %2109 = vmatprep.subr.bf16.mxu0 0
  %2110 = vmatpush2.bf16.msra.mxu0 0
  %2111 = vmatprep.subr.bf16.mxu0 0
  %2112 = vmatpush2.bf16.msra.mxu0 0
  %2113 = vmatprep.subr.bf16.mxu0 0
  %2114 = vmatpush2.bf16.msra.mxu0 0
  %2115 = vmatprep.subr.bf16.mxu0 0
  %2116 = vmatpush2.bf16.msra.mxu0 0
  %2117 = vmatprep.subr.bf16.mxu0 0
  %2118 = vmatpush2.bf16.msra.mxu0 0
  %2119 = vmatprep.subr.bf16.mxu0 0
  %2120 = vmatpush2.bf16.msra.mxu0 0
  %2121 = vmatprep.mubr.bf16.mxu0 0
  %2122 = vmatmul.mubr.bf16.gmra.mxu0 %v2047
  %v2123 = vpop.f32.mrf.mxu0
  %v2124 = vadd.f32 %v158, %v2123
  %v2125 = vpop.f32.mrf.mxu0
  %v2126 = vadd.f32 %v162, %v2125
  %v2127 = vpop.f32.mrf.mxu0
  %v2128 = vpop.f32.mrf.mxu0
  %2129 = vdwg.mxu0
  %2130 = vmatprep.subr.bf16.mxu0 0
  %2131 = vmatpush1.bf16.msra.mxu0 %v1887
  %2132 = vmatprep.subr.bf16.mxu0 0
  %2133 = vmatpush1.bf16.msra.mxu0 %v1886
  %2134 = vmatprep.subr.bf16.mxu0 0
  %2135 = vmatpush1.bf16.msra.mxu0 %v1885
  %2136 = vmatprep.subr.bf16.mxu0 0
  %2137 = vmatpush1.bf16.msra.mxu0 %v1884
  %2138 = vmatprep.subr.bf16.mxu0 0
  %2139 = vmatpush1.bf16.msra.mxu0 %v1883
  %2140 = vmatprep.subr.bf16.mxu0 0
  %2141 = vmatpush1.bf16.msra.mxu0 %v1882
  %2142 = vmatprep.subr.bf16.mxu0 0
  %2143 = vmatpush1.bf16.msra.mxu0 %v1881
  %2144 = vmatprep.subr.bf16.mxu0 0
  %2145 = vmatpush1.bf16.msra.mxu0 %v1880
  %2146 = vmatprep.subr.bf16.mxu0 0
  %2147 = vmatpush2.bf16.msra.mxu0 0
  %2148 = vmatprep.subr.bf16.mxu0 0
  %2149 = vmatpush2.bf16.msra.mxu0 0
  %2150 = vmatprep.subr.bf16.mxu0 0
  %2151 = vmatpush2.bf16.msra.mxu0 0
  %2152 = vmatprep.subr.bf16.mxu0 0
  %2153 = vmatpush2.bf16.msra.mxu0 0
  %2154 = vmatprep.subr.bf16.mxu0 0
  %2155 = vmatpush2.bf16.msra.mxu0 0
  %2156 = vmatprep.subr.bf16.mxu0 0
  %2157 = vmatpush2.bf16.msra.mxu0 0
  %2158 = vmatprep.subr.bf16.mxu0 0
  %2159 = vmatpush2.bf16.msra.mxu0 0
  %2160 = vmatprep.subr.bf16.mxu0 0
  %2161 = vmatpush2.bf16.msra.mxu0 0
  %2162 = vmatprep.mubr.bf16.mxu0 0
  %2163 = vmatmul.mubr.bf16.gmra.mxu0 %v2047
  %v2164 = vpop.f32.mrf.mxu0
  %v2165 = vadd.f32 %v172, %v2164
  %v2166 = vpop.f32.mrf.mxu0
  %v2167 = vpop.f32.mrf.mxu0
  %v2168 = vpop.f32.mrf.mxu0
  %2169 = vdwg.mxu0
  %s2170 = scalar_lea.vmem %s9, 8
  %2171 = vst [vmem:[%s2170] sm:$0xff] %v2165
  %2172 = vmatprep.subr.bf16.mxu0 %v1460
  %2173 = vmatpush1.bf16.msra.mxu0 %v1459
  %2174 = vmatprep.subr.bf16.mxu0 %v1456
  %2175 = vmatpush1.bf16.msra.mxu0 %v1455
  %2176 = vmatprep.subr.bf16.mxu0 %v1452
  %2177 = vmatpush1.bf16.msra.mxu0 %v1451
  %2178 = vmatprep.subr.bf16.mxu0 %v1448
  %2179 = vmatpush1.bf16.msra.mxu0 %v1447
  %2180 = vmatprep.subr.bf16.mxu0 %v1444
  %2181 = vmatpush1.bf16.msra.mxu0 %v1443
  %2182 = vmatprep.subr.bf16.mxu0 %v1440
  %2183 = vmatpush1.bf16.msra.mxu0 %v1439
  %2184 = vmatprep.subr.bf16.mxu0 %v1436
  %2185 = vmatpush1.bf16.msra.mxu0 %v1435
  %2186 = vmatprep.subr.bf16.mxu0 %v1432
  %2187 = vmatpush1.bf16.msra.mxu0 %v1431
  %2188 = vmatprep.subr.bf16.mxu0 0
  %2189 = vmatpush2.bf16.msra.mxu0 0
  %2190 = vmatprep.subr.bf16.mxu0 0
  %2191 = vmatpush2.bf16.msra.mxu0 0
  %2192 = vmatprep.subr.bf16.mxu0 0
  %2193 = vmatpush2.bf16.msra.mxu0 0
  %2194 = vmatprep.subr.bf16.mxu0 0
  %2195 = vmatpush2.bf16.msra.mxu0 0
  %2196 = vmatprep.subr.bf16.mxu0 0
  %2197 = vmatpush2.bf16.msra.mxu0 0
  %2198 = vmatprep.subr.bf16.mxu0 0
  %2199 = vmatpush2.bf16.msra.mxu0 0
  %2200 = vmatprep.subr.bf16.mxu0 0
  %2201 = vmatpush2.bf16.msra.mxu0 0
  %2202 = vmatprep.subr.bf16.mxu0 0
  %2203 = vmatpush2.bf16.msra.mxu0 0
  %2204 = vmatprep.mubr.bf16.mxu0 0
  %2205 = vmatmul.mubr.bf16.gmra.mxu0 %v2047
  %v2206 = vpop.f32.mrf.mxu0
  %v2207 = vadd.f32 0.0, %v2206
  %v2208 = vpop.f32.mrf.mxu0
  %v2209 = vadd.f32 0.0, %v2208
  %v2210 = vpop.f32.mrf.mxu0
  %v2211 = vpop.f32.mrf.mxu0
  %2212 = vdwg.mxu0
  %2213 = vmatprep.subr.bf16.mxu0 %v1462
  %2214 = vmatpush1.bf16.msra.mxu0 %v1461
  %2215 = vmatprep.subr.bf16.mxu0 %v1458
  %2216 = vmatpush1.bf16.msra.mxu0 %v1457
  %2217 = vmatprep.subr.bf16.mxu0 %v1454
  %2218 = vmatpush1.bf16.msra.mxu0 %v1453
  %2219 = vmatprep.subr.bf16.mxu0 %v1450
  %2220 = vmatpush1.bf16.msra.mxu0 %v1449
  %2221 = vmatprep.subr.bf16.mxu0 %v1446
  %2222 = vmatpush1.bf16.msra.mxu0 %v1445
  %2223 = vmatprep.subr.bf16.mxu0 %v1442
  %2224 = vmatpush1.bf16.msra.mxu0 %v1441
  %2225 = vmatprep.subr.bf16.mxu0 %v1438
  %2226 = vmatpush1.bf16.msra.mxu0 %v1437
  %2227 = vmatprep.subr.bf16.mxu0 %v1434
  %2228 = vmatpush1.bf16.msra.mxu0 %v1433
  %2229 = vmatprep.subr.bf16.mxu0 0
  %2230 = vmatpush2.bf16.msra.mxu0 0
  %2231 = vmatprep.subr.bf16.mxu0 0
  %2232 = vmatpush2.bf16.msra.mxu0 0
  %2233 = vmatprep.subr.bf16.mxu0 0
  %2234 = vmatpush2.bf16.msra.mxu0 0
  %2235 = vmatprep.subr.bf16.mxu0 0
  %2236 = vmatpush2.bf16.msra.mxu0 0
  %2237 = vmatprep.subr.bf16.mxu0 0
  %2238 = vmatpush2.bf16.msra.mxu0 0
  %2239 = vmatprep.subr.bf16.mxu0 0
  %2240 = vmatpush2.bf16.msra.mxu0 0
  %2241 = vmatprep.subr.bf16.mxu0 0
  %2242 = vmatpush2.bf16.msra.mxu0 0
  %2243 = vmatprep.subr.bf16.mxu0 0
  %2244 = vmatpush2.bf16.msra.mxu0 0
  %2245 = vmatprep.mubr.bf16.mxu0 0
  %2246 = vmatmul.mubr.bf16.gmra.mxu0 %v2047
  %v2247 = vpop.f32.mrf.mxu0
  %v2248 = vadd.f32 0.0, %v2247
  %v2249 = vpop.f32.mrf.mxu0
  %v2250 = vadd.f32 0.0, %v2249
  %v2251 = vpop.f32.mrf.mxu0
  %v2252 = vpop.f32.mrf.mxu0
  %2253 = vdwg.mxu0
  %v2254 = vadd.f32 %v2083, %v2207
  %v2255 = vadd.f32 %v2085, %v2209
  %v2256 = vadd.f32 %v2124, %v2248
  %v2257 = vadd.f32 %v2126, %v2250
  %v2258 = vxor.u32 %v2254, 2147483648
  %v2259 = vxor.u32 %v2255, 2147483648
  %v2260 = vxor.u32 %v2256, 2147483648
  %v2261 = vmul.f32 %v2258, 1.442695
  %v2262 = vpow.pop %v2261
  %v2263 = vmul.f32 %v2259, 1.442695
  %v2264 = vpow.pop %v2263
  %v2265 = vmul.f32 %v2260, 1.442695
  %v2266 = vpow.pop %v2265
  %v2267 = vadd.f32 %v2262, 1.0
  %v2268 = vadd.f32 %v2264, 1.0
  %v2269 = vadd.f32 %v2266, 1.0
  %v2270 = vrcp.pop %v2267
  %v2271 = vmul.f32 1.0, %v2270
  %v2272 = vrcp.pop %v2268
  %v2273 = vmul.f32 1.0, %v2272
  %v2274 = vrcp.pop %v2269
  %v2275 = vmul.f32 1.0, %v2274
  %v2276 = vtanh.pop %v2257
  %v2277 = vmul.f32 %v2273, %v2044
  %v2278 = vmul.f32 %v2271, %v2276
  %v2279 = vadd.f32 %v2277, %v2278
  %v2280 = vtanh.pop %v2279
  %v2281 = vmul.f32 %v2275, %v2280
  %v2282 = vpack.c.bf16 %v2281, %v2281
  %2283 = vmatprep.subr.bf16.mxu0 %v1731
  %2284 = vmatpush1.bf16.msra.mxu0 %v1730
  %2285 = vmatprep.subr.bf16.mxu0 %v1727
  %2286 = vmatpush1.bf16.msra.mxu0 %v1726
  %2287 = vmatprep.subr.bf16.mxu0 %v1723
  %2288 = vmatpush1.bf16.msra.mxu0 %v1722
  %2289 = vmatprep.subr.bf16.mxu0 %v1719
  %2290 = vmatpush1.bf16.msra.mxu0 %v1718
  %2291 = vmatprep.subr.bf16.mxu0 %v1715
  %2292 = vmatpush1.bf16.msra.mxu0 %v1714
  %2293 = vmatprep.subr.bf16.mxu0 %v1711
  %2294 = vmatpush1.bf16.msra.mxu0 %v1710
  %2295 = vmatprep.subr.bf16.mxu0 %v1707
  %2296 = vmatpush1.bf16.msra.mxu0 %v1706
  %2297 = vmatprep.subr.bf16.mxu0 %v1703
  %2298 = vmatpush1.bf16.msra.mxu0 %v1702
  %2299 = vmatprep.subr.bf16.mxu0 0
  %2300 = vmatpush2.bf16.msra.mxu0 0
  %2301 = vmatprep.subr.bf16.mxu0 0
  %2302 = vmatpush2.bf16.msra.mxu0 0
  %2303 = vmatprep.subr.bf16.mxu0 0
  %2304 = vmatpush2.bf16.msra.mxu0 0
  %2305 = vmatprep.subr.bf16.mxu0 0
  %2306 = vmatpush2.bf16.msra.mxu0 0
  %2307 = vmatprep.subr.bf16.mxu0 0
  %2308 = vmatpush2.bf16.msra.mxu0 0
  %2309 = vmatprep.subr.bf16.mxu0 0
  %2310 = vmatpush2.bf16.msra.mxu0 0
  %2311 = vmatprep.subr.bf16.mxu0 0
  %2312 = vmatpush2.bf16.msra.mxu0 0
  %2313 = vmatprep.subr.bf16.mxu0 0
  %2314 = vmatpush2.bf16.msra.mxu0 0
  %2315 = vmatprep.mubr.bf16.mxu0 0
  %2316 = vmatmul.mubr.bf16.gmra.mxu0 %v2282
  %v2317 = vpop.f32.mrf.mxu0
  %v2318 = vadd.f32 %v150, %v2317
  %v2319 = vpop.f32.mrf.mxu0
  %v2320 = vadd.f32 %v154, %v2319
  %v2321 = vpop.f32.mrf.mxu0
  %v2322 = vpop.f32.mrf.mxu0
  %2323 = vdwg.mxu0
  %2324 = vmatprep.subr.bf16.mxu0 %v1733
  %2325 = vmatpush1.bf16.msra.mxu0 %v1732
  %2326 = vmatprep.subr.bf16.mxu0 %v1729
  %2327 = vmatpush1.bf16.msra.mxu0 %v1728
  %2328 = vmatprep.subr.bf16.mxu0 %v1725
  %2329 = vmatpush1.bf16.msra.mxu0 %v1724
  %2330 = vmatprep.subr.bf16.mxu0 %v1721
  %2331 = vmatpush1.bf16.msra.mxu0 %v1720
  %2332 = vmatprep.subr.bf16.mxu0 %v1717
  %2333 = vmatpush1.bf16.msra.mxu0 %v1716
  %2334 = vmatprep.subr.bf16.mxu0 %v1713
  %2335 = vmatpush1.bf16.msra.mxu0 %v1712
  %2336 = vmatprep.subr.bf16.mxu0 %v1709
  %2337 = vmatpush1.bf16.msra.mxu0 %v1708
  %2338 = vmatprep.subr.bf16.mxu0 %v1705
  %2339 = vmatpush1.bf16.msra.mxu0 %v1704
  %2340 = vmatprep.subr.bf16.mxu0 0
  %2341 = vmatpush2.bf16.msra.mxu0 0
  %2342 = vmatprep.subr.bf16.mxu0 0
  %2343 = vmatpush2.bf16.msra.mxu0 0
  %2344 = vmatprep.subr.bf16.mxu0 0
  %2345 = vmatpush2.bf16.msra.mxu0 0
  %2346 = vmatprep.subr.bf16.mxu0 0
  %2347 = vmatpush2.bf16.msra.mxu0 0
  %2348 = vmatprep.subr.bf16.mxu0 0
  %2349 = vmatpush2.bf16.msra.mxu0 0
  %2350 = vmatprep.subr.bf16.mxu0 0
  %2351 = vmatpush2.bf16.msra.mxu0 0
  %2352 = vmatprep.subr.bf16.mxu0 0
  %2353 = vmatpush2.bf16.msra.mxu0 0
  %2354 = vmatprep.subr.bf16.mxu0 0
  %2355 = vmatpush2.bf16.msra.mxu0 0
  %2356 = vmatprep.mubr.bf16.mxu0 0
  %2357 = vmatmul.mubr.bf16.gmra.mxu0 %v2282
  %v2358 = vpop.f32.mrf.mxu0
  %v2359 = vadd.f32 %v158, %v2358
  %v2360 = vpop.f32.mrf.mxu0
  %v2361 = vadd.f32 %v162, %v2360
  %v2362 = vpop.f32.mrf.mxu0
  %v2363 = vpop.f32.mrf.mxu0
  %2364 = vdwg.mxu0
  %2365 = vmatprep.subr.bf16.mxu0 0
  %2366 = vmatpush1.bf16.msra.mxu0 %v1887
  %2367 = vmatprep.subr.bf16.mxu0 0
  %2368 = vmatpush1.bf16.msra.mxu0 %v1886
  %2369 = vmatprep.subr.bf16.mxu0 0
  %2370 = vmatpush1.bf16.msra.mxu0 %v1885
  %2371 = vmatprep.subr.bf16.mxu0 0
  %2372 = vmatpush1.bf16.msra.mxu0 %v1884
  %2373 = vmatprep.subr.bf16.mxu0 0
  %2374 = vmatpush1.bf16.msra.mxu0 %v1883
  %2375 = vmatprep.subr.bf16.mxu0 0
  %2376 = vmatpush1.bf16.msra.mxu0 %v1882
  %2377 = vmatprep.subr.bf16.mxu0 0
  %2378 = vmatpush1.bf16.msra.mxu0 %v1881
  %2379 = vmatprep.subr.bf16.mxu0 0
  %2380 = vmatpush1.bf16.msra.mxu0 %v1880
  %2381 = vmatprep.subr.bf16.mxu0 0
  %2382 = vmatpush2.bf16.msra.mxu0 0
  %2383 = vmatprep.subr.bf16.mxu0 0
  %2384 = vmatpush2.bf16.msra.mxu0 0
  %2385 = vmatprep.subr.bf16.mxu0 0
  %2386 = vmatpush2.bf16.msra.mxu0 0
  %2387 = vmatprep.subr.bf16.mxu0 0
  %2388 = vmatpush2.bf16.msra.mxu0 0
  %2389 = vmatprep.subr.bf16.mxu0 0
  %2390 = vmatpush2.bf16.msra.mxu0 0
  %2391 = vmatprep.subr.bf16.mxu0 0
  %2392 = vmatpush2.bf16.msra.mxu0 0
  %2393 = vmatprep.subr.bf16.mxu0 0
  %2394 = vmatpush2.bf16.msra.mxu0 0
  %2395 = vmatprep.subr.bf16.mxu0 0
  %2396 = vmatpush2.bf16.msra.mxu0 0
  %2397 = vmatprep.mubr.bf16.mxu0 0
  %2398 = vmatmul.mubr.bf16.gmra.mxu0 %v2282
  %v2399 = vpop.f32.mrf.mxu0
  %v2400 = vadd.f32 %v172, %v2399
  %v2401 = vpop.f32.mrf.mxu0
  %v2402 = vpop.f32.mrf.mxu0
  %v2403 = vpop.f32.mrf.mxu0
  %2404 = vdwg.mxu0
  %s2405 = scalar_lea.vmem %s9, 16
  %2406 = vst [vmem:[%s2405] sm:$0xff] %v2400
  %2407 = vmatprep.subr.bf16.mxu0 %v1460
  %2408 = vmatpush1.bf16.msra.mxu0 %v1459
  %2409 = vmatprep.subr.bf16.mxu0 %v1456
  %2410 = vmatpush1.bf16.msra.mxu0 %v1455
  %2411 = vmatprep.subr.bf16.mxu0 %v1452
  %2412 = vmatpush1.bf16.msra.mxu0 %v1451
  %2413 = vmatprep.subr.bf16.mxu0 %v1448
  %2414 = vmatpush1.bf16.msra.mxu0 %v1447
  %2415 = vmatprep.subr.bf16.mxu0 %v1444
  %2416 = vmatpush1.bf16.msra.mxu0 %v1443
  %2417 = vmatprep.subr.bf16.mxu0 %v1440
  %2418 = vmatpush1.bf16.msra.mxu0 %v1439
  %2419 = vmatprep.subr.bf16.mxu0 %v1436
  %2420 = vmatpush1.bf16.msra.mxu0 %v1435
  %2421 = vmatprep.subr.bf16.mxu0 %v1432
  %2422 = vmatpush1.bf16.msra.mxu0 %v1431
  %2423 = vmatprep.subr.bf16.mxu0 0
  %2424 = vmatpush2.bf16.msra.mxu0 0
  %2425 = vmatprep.subr.bf16.mxu0 0
  %2426 = vmatpush2.bf16.msra.mxu0 0
  %2427 = vmatprep.subr.bf16.mxu0 0
  %2428 = vmatpush2.bf16.msra.mxu0 0
  %2429 = vmatprep.subr.bf16.mxu0 0
  %2430 = vmatpush2.bf16.msra.mxu0 0
  %2431 = vmatprep.subr.bf16.mxu0 0
  %2432 = vmatpush2.bf16.msra.mxu0 0
  %2433 = vmatprep.subr.bf16.mxu0 0
  %2434 = vmatpush2.bf16.msra.mxu0 0
  %2435 = vmatprep.subr.bf16.mxu0 0
  %2436 = vmatpush2.bf16.msra.mxu0 0
  %2437 = vmatprep.subr.bf16.mxu0 0
  %2438 = vmatpush2.bf16.msra.mxu0 0
  %2439 = vmatprep.mubr.bf16.mxu0 0
  %2440 = vmatmul.mubr.bf16.gmra.mxu0 %v2282
  %v2441 = vpop.f32.mrf.mxu0
  %v2442 = vadd.f32 0.0, %v2441
  %v2443 = vpop.f32.mrf.mxu0
  %v2444 = vadd.f32 0.0, %v2443
  %v2445 = vpop.f32.mrf.mxu0
  %v2446 = vpop.f32.mrf.mxu0
  %2447 = vdwg.mxu0
  %2448 = vmatprep.subr.bf16.mxu0 %v1462
  %2449 = vmatpush1.bf16.msra.mxu0 %v1461
  %2450 = vmatprep.subr.bf16.mxu0 %v1458
  %2451 = vmatpush1.bf16.msra.mxu0 %v1457
  %2452 = vmatprep.subr.bf16.mxu0 %v1454
  %2453 = vmatpush1.bf16.msra.mxu0 %v1453
  %2454 = vmatprep.subr.bf16.mxu0 %v1450
  %2455 = vmatpush1.bf16.msra.mxu0 %v1449
  %2456 = vmatprep.subr.bf16.mxu0 %v1446
  %2457 = vmatpush1.bf16.msra.mxu0 %v1445
  %2458 = vmatprep.subr.bf16.mxu0 %v1442
  %2459 = vmatpush1.bf16.msra.mxu0 %v1441
  %2460 = vmatprep.subr.bf16.mxu0 %v1438
  %2461 = vmatpush1.bf16.msra.mxu0 %v1437
  %2462 = vmatprep.subr.bf16.mxu0 %v1434
  %2463 = vmatpush1.bf16.msra.mxu0 %v1433
  %2464 = vmatprep.subr.bf16.mxu0 0
  %2465 = vmatpush2.bf16.msra.mxu0 0
  %2466 = vmatprep.subr.bf16.mxu0 0
  %2467 = vmatpush2.bf16.msra.mxu0 0
  %2468 = vmatprep.subr.bf16.mxu0 0
  %2469 = vmatpush2.bf16.msra.mxu0 0
  %2470 = vmatprep.subr.bf16.mxu0 0
  %2471 = vmatpush2.bf16.msra.mxu0 0
  %2472 = vmatprep.subr.bf16.mxu0 0
  %2473 = vmatpush2.bf16.msra.mxu0 0
  %2474 = vmatprep.subr.bf16.mxu0 0
  %2475 = vmatpush2.bf16.msra.mxu0 0
  %2476 = vmatprep.subr.bf16.mxu0 0
  %2477 = vmatpush2.bf16.msra.mxu0 0
  %2478 = vmatprep.subr.bf16.mxu0 0
  %2479 = vmatpush2.bf16.msra.mxu0 0
  %2480 = vmatprep.mubr.bf16.mxu0 0
  %2481 = vmatmul.mubr.bf16.gmra.mxu0 %v2282
  %v2482 = vpop.f32.mrf.mxu0
  %v2483 = vadd.f32 0.0, %v2482
  %v2484 = vpop.f32.mrf.mxu0
  %v2485 = vadd.f32 0.0, %v2484
  %v2486 = vpop.f32.mrf.mxu0
  %v2487 = vpop.f32.mrf.mxu0
  %2488 = vdwg.mxu0
  %v2489 = vadd.f32 %v2318, %v2442
  %v2490 = vadd.f32 %v2320, %v2444
  %v2491 = vadd.f32 %v2359, %v2483
  %v2492 = vadd.f32 %v2361, %v2485
  %v2493 = vxor.u32 %v2489, 2147483648
  %v2494 = vxor.u32 %v2490, 2147483648
  %v2495 = vxor.u32 %v2491, 2147483648
  %v2496 = vmul.f32 %v2493, 1.442695
  %v2497 = vpow.pop %v2496
  %v2498 = vmul.f32 %v2494, 1.442695
  %v2499 = vpow.pop %v2498
  %v2500 = vmul.f32 %v2495, 1.442695
  %v2501 = vpow.pop %v2500
  %v2502 = vadd.f32 %v2497, 1.0
  %v2503 = vadd.f32 %v2499, 1.0
  %v2504 = vadd.f32 %v2501, 1.0
  %v2505 = vrcp.pop %v2502
  %v2506 = vmul.f32 1.0, %v2505
  %v2507 = vrcp.pop %v2503
  %v2508 = vmul.f32 1.0, %v2507
  %v2509 = vrcp.pop %v2504
  %v2510 = vmul.f32 1.0, %v2509
  %v2511 = vtanh.pop %v2492
  %v2512 = vmul.f32 %v2508, %v2279
  %v2513 = vmul.f32 %v2506, %v2511
  %v2514 = vadd.f32 %v2512, %v2513
  %v2515 = vtanh.pop %v2514
  %v2516 = vmul.f32 %v2510, %v2515
  %v2517 = vpack.c.bf16 %v2516, %v2516
  %2518 = vmatprep.subr.bf16.mxu0 %v1731
  %2519 = vmatpush1.bf16.msra.mxu0 %v1730
  %2520 = vmatprep.subr.bf16.mxu0 %v1727
  %2521 = vmatpush1.bf16.msra.mxu0 %v1726
  %2522 = vmatprep.subr.bf16.mxu0 %v1723
  %2523 = vmatpush1.bf16.msra.mxu0 %v1722
  %2524 = vmatprep.subr.bf16.mxu0 %v1719
  %2525 = vmatpush1.bf16.msra.mxu0 %v1718
  %2526 = vmatprep.subr.bf16.mxu0 %v1715
  %2527 = vmatpush1.bf16.msra.mxu0 %v1714
  %2528 = vmatprep.subr.bf16.mxu0 %v1711
  %2529 = vmatpush1.bf16.msra.mxu0 %v1710
  %2530 = vmatprep.subr.bf16.mxu0 %v1707
  %2531 = vmatpush1.bf16.msra.mxu0 %v1706
  %2532 = vmatprep.subr.bf16.mxu0 %v1703
  %2533 = vmatpush1.bf16.msra.mxu0 %v1702
  %2534 = vmatprep.subr.bf16.mxu0 0
  %2535 = vmatpush2.bf16.msra.mxu0 0
  %2536 = vmatprep.subr.bf16.mxu0 0
  %2537 = vmatpush2.bf16.msra.mxu0 0
  %2538 = vmatprep.subr.bf16.mxu0 0
  %2539 = vmatpush2.bf16.msra.mxu0 0
  %2540 = vmatprep.subr.bf16.mxu0 0
  %2541 = vmatpush2.bf16.msra.mxu0 0
  %2542 = vmatprep.subr.bf16.mxu0 0
  %2543 = vmatpush2.bf16.msra.mxu0 0
  %2544 = vmatprep.subr.bf16.mxu0 0
  %2545 = vmatpush2.bf16.msra.mxu0 0
  %2546 = vmatprep.subr.bf16.mxu0 0
  %2547 = vmatpush2.bf16.msra.mxu0 0
  %2548 = vmatprep.subr.bf16.mxu0 0
  %2549 = vmatpush2.bf16.msra.mxu0 0
  %2550 = vmatprep.mubr.bf16.mxu0 0
  %2551 = vmatmul.mubr.bf16.gmra.mxu0 %v2517
  %v2552 = vpop.f32.mrf.mxu0
  %v2553 = vadd.f32 %v150, %v2552
  %v2554 = vpop.f32.mrf.mxu0
  %v2555 = vadd.f32 %v154, %v2554
  %v2556 = vpop.f32.mrf.mxu0
  %v2557 = vpop.f32.mrf.mxu0
  %2558 = vdwg.mxu0
  %2559 = vmatprep.subr.bf16.mxu0 %v1733
  %2560 = vmatpush1.bf16.msra.mxu0 %v1732
  %2561 = vmatprep.subr.bf16.mxu0 %v1729
  %2562 = vmatpush1.bf16.msra.mxu0 %v1728
  %2563 = vmatprep.subr.bf16.mxu0 %v1725
  %2564 = vmatpush1.bf16.msra.mxu0 %v1724
  %2565 = vmatprep.subr.bf16.mxu0 %v1721
  %2566 = vmatpush1.bf16.msra.mxu0 %v1720
  %2567 = vmatprep.subr.bf16.mxu0 %v1717
  %2568 = vmatpush1.bf16.msra.mxu0 %v1716
  %2569 = vmatprep.subr.bf16.mxu0 %v1713
  %2570 = vmatpush1.bf16.msra.mxu0 %v1712
  %2571 = vmatprep.subr.bf16.mxu0 %v1709
  %2572 = vmatpush1.bf16.msra.mxu0 %v1708
  %2573 = vmatprep.subr.bf16.mxu0 %v1705
  %2574 = vmatpush1.bf16.msra.mxu0 %v1704
  %2575 = vmatprep.subr.bf16.mxu0 0
  %2576 = vmatpush2.bf16.msra.mxu0 0
  %2577 = vmatprep.subr.bf16.mxu0 0
  %2578 = vmatpush2.bf16.msra.mxu0 0
  %2579 = vmatprep.subr.bf16.mxu0 0
  %2580 = vmatpush2.bf16.msra.mxu0 0
  %2581 = vmatprep.subr.bf16.mxu0 0
  %2582 = vmatpush2.bf16.msra.mxu0 0
  %2583 = vmatprep.subr.bf16.mxu0 0
  %2584 = vmatpush2.bf16.msra.mxu0 0
  %2585 = vmatprep.subr.bf16.mxu0 0
  %2586 = vmatpush2.bf16.msra.mxu0 0
  %2587 = vmatprep.subr.bf16.mxu0 0
  %2588 = vmatpush2.bf16.msra.mxu0 0
  %2589 = vmatprep.subr.bf16.mxu0 0
  %2590 = vmatpush2.bf16.msra.mxu0 0
  %2591 = vmatprep.mubr.bf16.mxu0 0
  %2592 = vmatmul.mubr.bf16.gmra.mxu0 %v2517
  %v2593 = vpop.f32.mrf.mxu0
  %v2594 = vadd.f32 %v158, %v2593
  %v2595 = vpop.f32.mrf.mxu0
  %v2596 = vadd.f32 %v162, %v2595
  %v2597 = vpop.f32.mrf.mxu0
  %v2598 = vpop.f32.mrf.mxu0
  %2599 = vdwg.mxu0
  %2600 = vmatprep.subr.bf16.mxu0 0
  %2601 = vmatpush1.bf16.msra.mxu0 %v1887
  %2602 = vmatprep.subr.bf16.mxu0 0
  %2603 = vmatpush1.bf16.msra.mxu0 %v1886
  %2604 = vmatprep.subr.bf16.mxu0 0
  %2605 = vmatpush1.bf16.msra.mxu0 %v1885
  %2606 = vmatprep.subr.bf16.mxu0 0
  %2607 = vmatpush1.bf16.msra.mxu0 %v1884
  %2608 = vmatprep.subr.bf16.mxu0 0
  %2609 = vmatpush1.bf16.msra.mxu0 %v1883
  %2610 = vmatprep.subr.bf16.mxu0 0
  %2611 = vmatpush1.bf16.msra.mxu0 %v1882
  %2612 = vmatprep.subr.bf16.mxu0 0
  %2613 = vmatpush1.bf16.msra.mxu0 %v1881
  %2614 = vmatprep.subr.bf16.mxu0 0
  %2615 = vmatpush1.bf16.msra.mxu0 %v1880
  %2616 = vmatprep.subr.bf16.mxu0 0
  %2617 = vmatpush2.bf16.msra.mxu0 0
  %2618 = vmatprep.subr.bf16.mxu0 0
  %2619 = vmatpush2.bf16.msra.mxu0 0
  %2620 = vmatprep.subr.bf16.mxu0 0
  %2621 = vmatpush2.bf16.msra.mxu0 0
  %2622 = vmatprep.subr.bf16.mxu0 0
  %2623 = vmatpush2.bf16.msra.mxu0 0
  %2624 = vmatprep.subr.bf16.mxu0 0
  %2625 = vmatpush2.bf16.msra.mxu0 0
  %2626 = vmatprep.subr.bf16.mxu0 0
  %2627 = vmatpush2.bf16.msra.mxu0 0
  %2628 = vmatprep.subr.bf16.mxu0 0
  %2629 = vmatpush2.bf16.msra.mxu0 0
  %2630 = vmatprep.subr.bf16.mxu0 0
  %2631 = vmatpush2.bf16.msra.mxu0 0
  %2632 = vmatprep.mubr.bf16.mxu0 0
  %2633 = vmatmul.mubr.bf16.gmra.mxu0 %v2517
  %v2634 = vpop.f32.mrf.mxu0
  %v2635 = vadd.f32 %v172, %v2634
  %v2636 = vpop.f32.mrf.mxu0
  %v2637 = vpop.f32.mrf.mxu0
  %v2638 = vpop.f32.mrf.mxu0
  %2639 = vdwg.mxu0
  %s2640 = scalar_lea.vmem %s9, 24
  %2641 = vst [vmem:[%s2640] sm:$0xff] %v2635
  %2642 = vmatprep.subr.bf16.mxu0 %v1460
  %2643 = vmatpush1.bf16.msra.mxu0 %v1459
  %2644 = vmatprep.subr.bf16.mxu0 %v1456
  %2645 = vmatpush1.bf16.msra.mxu0 %v1455
  %2646 = vmatprep.subr.bf16.mxu0 %v1452
  %2647 = vmatpush1.bf16.msra.mxu0 %v1451
  %2648 = vmatprep.subr.bf16.mxu0 %v1448
  %2649 = vmatpush1.bf16.msra.mxu0 %v1447
  %2650 = vmatprep.subr.bf16.mxu0 %v1444
  %2651 = vmatpush1.bf16.msra.mxu0 %v1443
  %2652 = vmatprep.subr.bf16.mxu0 %v1440
  %2653 = vmatpush1.bf16.msra.mxu0 %v1439
  %2654 = vmatprep.subr.bf16.mxu0 %v1436
  %2655 = vmatpush1.bf16.msra.mxu0 %v1435
  %2656 = vmatprep.subr.bf16.mxu0 %v1432
  %2657 = vmatpush1.bf16.msra.mxu0 %v1431
  %2658 = vmatprep.subr.bf16.mxu0 0
  %2659 = vmatpush2.bf16.msra.mxu0 0
  %2660 = vmatprep.subr.bf16.mxu0 0
  %2661 = vmatpush2.bf16.msra.mxu0 0
  %2662 = vmatprep.subr.bf16.mxu0 0
  %2663 = vmatpush2.bf16.msra.mxu0 0
  %2664 = vmatprep.subr.bf16.mxu0 0
  %2665 = vmatpush2.bf16.msra.mxu0 0
  %2666 = vmatprep.subr.bf16.mxu0 0
  %2667 = vmatpush2.bf16.msra.mxu0 0
  %2668 = vmatprep.subr.bf16.mxu0 0
  %2669 = vmatpush2.bf16.msra.mxu0 0
  %2670 = vmatprep.subr.bf16.mxu0 0
  %2671 = vmatpush2.bf16.msra.mxu0 0
  %2672 = vmatprep.subr.bf16.mxu0 0
  %2673 = vmatpush2.bf16.msra.mxu0 0
  %2674 = vmatprep.mubr.bf16.mxu0 0
  %2675 = vmatmul.mubr.bf16.gmra.mxu0 %v2517
  %v2676 = vpop.f32.mrf.mxu0
  %v2677 = vadd.f32 0.0, %v2676
  %v2678 = vpop.f32.mrf.mxu0
  %v2679 = vadd.f32 0.0, %v2678
  %v2680 = vpop.f32.mrf.mxu0
  %v2681 = vpop.f32.mrf.mxu0
  %2682 = vdwg.mxu0
  %2683 = vmatprep.subr.bf16.mxu0 %v1462
  %2684 = vmatpush1.bf16.msra.mxu0 %v1461
  %2685 = vmatprep.subr.bf16.mxu0 %v1458
  %2686 = vmatpush1.bf16.msra.mxu0 %v1457
  %2687 = vmatprep.subr.bf16.mxu0 %v1454
  %2688 = vmatpush1.bf16.msra.mxu0 %v1453
  %2689 = vmatprep.subr.bf16.mxu0 %v1450
  %2690 = vmatpush1.bf16.msra.mxu0 %v1449
  %2691 = vmatprep.subr.bf16.mxu0 %v1446
  %2692 = vmatpush1.bf16.msra.mxu0 %v1445
  %2693 = vmatprep.subr.bf16.mxu0 %v1442
  %2694 = vmatpush1.bf16.msra.mxu0 %v1441
  %2695 = vmatprep.subr.bf16.mxu0 %v1438
  %2696 = vmatpush1.bf16.msra.mxu0 %v1437
  %2697 = vmatprep.subr.bf16.mxu0 %v1434
  %2698 = vmatpush1.bf16.msra.mxu0 %v1433
  %2699 = vmatprep.subr.bf16.mxu0 0
  %2700 = vmatpush2.bf16.msra.mxu0 0
  %2701 = vmatprep.subr.bf16.mxu0 0
  %2702 = vmatpush2.bf16.msra.mxu0 0
  %2703 = vmatprep.subr.bf16.mxu0 0
  %2704 = vmatpush2.bf16.msra.mxu0 0
  %2705 = vmatprep.subr.bf16.mxu0 0
  %2706 = vmatpush2.bf16.msra.mxu0 0
  %2707 = vmatprep.subr.bf16.mxu0 0
  %2708 = vmatpush2.bf16.msra.mxu0 0
  %2709 = vmatprep.subr.bf16.mxu0 0
  %2710 = vmatpush2.bf16.msra.mxu0 0
  %2711 = vmatprep.subr.bf16.mxu0 0
  %2712 = vmatpush2.bf16.msra.mxu0 0
  %2713 = vmatprep.subr.bf16.mxu0 0
  %2714 = vmatpush2.bf16.msra.mxu0 0
  %2715 = vmatprep.mubr.bf16.mxu0 0
  %2716 = vmatmul.mubr.bf16.gmra.mxu0 %v2517
  %v2717 = vpop.f32.mrf.mxu0
  %v2718 = vadd.f32 0.0, %v2717
  %v2719 = vpop.f32.mrf.mxu0
  %v2720 = vadd.f32 0.0, %v2719
  %v2721 = vpop.f32.mrf.mxu0
  %v2722 = vpop.f32.mrf.mxu0
  %2723 = vdwg.mxu0
  %v2724 = vadd.f32 %v2553, %v2677
  %v2725 = vadd.f32 %v2555, %v2679
  %v2726 = vadd.f32 %v2594, %v2718
  %v2727 = vadd.f32 %v2596, %v2720
  %v2728 = vxor.u32 %v2724, 2147483648
  %v2729 = vxor.u32 %v2725, 2147483648
  %v2730 = vxor.u32 %v2726, 2147483648
  %v2731 = vmul.f32 %v2728, 1.442695
  %v2732 = vpow.pop %v2731
  %v2733 = vmul.f32 %v2729, 1.442695
  %v2734 = vpow.pop %v2733
  %v2735 = vmul.f32 %v2730, 1.442695
  %v2736 = vpow.pop %v2735
  %v2737 = vadd.f32 %v2732, 1.0
  %v2738 = vadd.f32 %v2734, 1.0
  %v2739 = vadd.f32 %v2736, 1.0
  %v2740 = vrcp.pop %v2737
  %v2741 = vmul.f32 1.0, %v2740
  %v2742 = vrcp.pop %v2738
  %v2743 = vmul.f32 1.0, %v2742
  %v2744 = vrcp.pop %v2739
  %v2745 = vmul.f32 1.0, %v2744
  %v2746 = vtanh.pop %v2727
  %v2747 = vmul.f32 %v2743, %v2514
  %v2748 = vmul.f32 %v2741, %v2746
  %v2749 = vadd.f32 %v2747, %v2748
  %v2750 = vtanh.pop %v2749
  %v2751 = vmul.f32 %v2745, %v2750
  %v2752 = vpack.c.bf16 %v2751, %v2751
  %2753 = vmatprep.subr.bf16.mxu0 %v1731
  %2754 = vmatpush1.bf16.msra.mxu0 %v1730
  %2755 = vmatprep.subr.bf16.mxu0 %v1727
  %2756 = vmatpush1.bf16.msra.mxu0 %v1726
  %2757 = vmatprep.subr.bf16.mxu0 %v1723
  %2758 = vmatpush1.bf16.msra.mxu0 %v1722
  %2759 = vmatprep.subr.bf16.mxu0 %v1719
  %2760 = vmatpush1.bf16.msra.mxu0 %v1718
  %2761 = vmatprep.subr.bf16.mxu0 %v1715
  %2762 = vmatpush1.bf16.msra.mxu0 %v1714
  %2763 = vmatprep.subr.bf16.mxu0 %v1711
  %2764 = vmatpush1.bf16.msra.mxu0 %v1710
  %2765 = vmatprep.subr.bf16.mxu0 %v1707
  %2766 = vmatpush1.bf16.msra.mxu0 %v1706
  %2767 = vmatprep.subr.bf16.mxu0 %v1703
  %2768 = vmatpush1.bf16.msra.mxu0 %v1702
  %2769 = vmatprep.subr.bf16.mxu0 0
  %2770 = vmatpush2.bf16.msra.mxu0 0
  %2771 = vmatprep.subr.bf16.mxu0 0
  %2772 = vmatpush2.bf16.msra.mxu0 0
  %2773 = vmatprep.subr.bf16.mxu0 0
  %2774 = vmatpush2.bf16.msra.mxu0 0
  %2775 = vmatprep.subr.bf16.mxu0 0
  %2776 = vmatpush2.bf16.msra.mxu0 0
  %2777 = vmatprep.subr.bf16.mxu0 0
  %2778 = vmatpush2.bf16.msra.mxu0 0
  %2779 = vmatprep.subr.bf16.mxu0 0
  %2780 = vmatpush2.bf16.msra.mxu0 0
  %2781 = vmatprep.subr.bf16.mxu0 0
  %2782 = vmatpush2.bf16.msra.mxu0 0
  %2783 = vmatprep.subr.bf16.mxu0 0
  %2784 = vmatpush2.bf16.msra.mxu0 0
  %2785 = vmatprep.mubr.bf16.mxu0 0
  %2786 = vmatmul.mubr.bf16.gmra.mxu0 %v2752
  %v2787 = vpop.f32.mrf.mxu0
  %v2788 = vadd.f32 %v150, %v2787
  %v2789 = vpop.f32.mrf.mxu0
  %v2790 = vadd.f32 %v154, %v2789
  %v2791 = vpop.f32.mrf.mxu0
  %v2792 = vpop.f32.mrf.mxu0
  %2793 = vdwg.mxu0
  %2794 = vmatprep.subr.bf16.mxu0 %v1733
  %2795 = vmatpush1.bf16.msra.mxu0 %v1732
  %2796 = vmatprep.subr.bf16.mxu0 %v1729
  %2797 = vmatpush1.bf16.msra.mxu0 %v1728
  %2798 = vmatprep.subr.bf16.mxu0 %v1725
  %2799 = vmatpush1.bf16.msra.mxu0 %v1724
  %2800 = vmatprep.subr.bf16.mxu0 %v1721
  %2801 = vmatpush1.bf16.msra.mxu0 %v1720
  %2802 = vmatprep.subr.bf16.mxu0 %v1717
  %2803 = vmatpush1.bf16.msra.mxu0 %v1716
  %2804 = vmatprep.subr.bf16.mxu0 %v1713
  %2805 = vmatpush1.bf16.msra.mxu0 %v1712
  %2806 = vmatprep.subr.bf16.mxu0 %v1709
  %2807 = vmatpush1.bf16.msra.mxu0 %v1708
  %2808 = vmatprep.subr.bf16.mxu0 %v1705
  %2809 = vmatpush1.bf16.msra.mxu0 %v1704
  %2810 = vmatprep.subr.bf16.mxu0 0
  %2811 = vmatpush2.bf16.msra.mxu0 0
  %2812 = vmatprep.subr.bf16.mxu0 0
  %2813 = vmatpush2.bf16.msra.mxu0 0
  %2814 = vmatprep.subr.bf16.mxu0 0
  %2815 = vmatpush2.bf16.msra.mxu0 0
  %2816 = vmatprep.subr.bf16.mxu0 0
  %2817 = vmatpush2.bf16.msra.mxu0 0
  %2818 = vmatprep.subr.bf16.mxu0 0
  %2819 = vmatpush2.bf16.msra.mxu0 0
  %2820 = vmatprep.subr.bf16.mxu0 0
  %2821 = vmatpush2.bf16.msra.mxu0 0
  %2822 = vmatprep.subr.bf16.mxu0 0
  %2823 = vmatpush2.bf16.msra.mxu0 0
  %2824 = vmatprep.subr.bf16.mxu0 0
  %2825 = vmatpush2.bf16.msra.mxu0 0
  %2826 = vmatprep.mubr.bf16.mxu0 0
  %2827 = vmatmul.mubr.bf16.gmra.mxu0 %v2752
  %v2828 = vpop.f32.mrf.mxu0
  %v2829 = vadd.f32 %v158, %v2828
  %v2830 = vpop.f32.mrf.mxu0
  %v2831 = vadd.f32 %v162, %v2830
  %v2832 = vpop.f32.mrf.mxu0
  %v2833 = vpop.f32.mrf.mxu0
  %2834 = vdwg.mxu0
  %2835 = vmatprep.subr.bf16.mxu0 0
  %2836 = vmatpush1.bf16.msra.mxu0 %v1887
  %2837 = vmatprep.subr.bf16.mxu0 0
  %2838 = vmatpush1.bf16.msra.mxu0 %v1886
  %2839 = vmatprep.subr.bf16.mxu0 0
  %2840 = vmatpush1.bf16.msra.mxu0 %v1885
  %2841 = vmatprep.subr.bf16.mxu0 0
  %2842 = vmatpush1.bf16.msra.mxu0 %v1884
  %2843 = vmatprep.subr.bf16.mxu0 0
  %2844 = vmatpush1.bf16.msra.mxu0 %v1883
  %2845 = vmatprep.subr.bf16.mxu0 0
  %2846 = vmatpush1.bf16.msra.mxu0 %v1882
  %2847 = vmatprep.subr.bf16.mxu0 0
  %2848 = vmatpush1.bf16.msra.mxu0 %v1881
  %2849 = vmatprep.subr.bf16.mxu0 0
  %2850 = vmatpush1.bf16.msra.mxu0 %v1880
  %2851 = vmatprep.subr.bf16.mxu0 0
  %2852 = vmatpush2.bf16.msra.mxu0 0
  %2853 = vmatprep.subr.bf16.mxu0 0
  %2854 = vmatpush2.bf16.msra.mxu0 0
  %2855 = vmatprep.subr.bf16.mxu0 0
  %2856 = vmatpush2.bf16.msra.mxu0 0
  %2857 = vmatprep.subr.bf16.mxu0 0
  %2858 = vmatpush2.bf16.msra.mxu0 0
  %2859 = vmatprep.subr.bf16.mxu0 0
  %2860 = vmatpush2.bf16.msra.mxu0 0
  %2861 = vmatprep.subr.bf16.mxu0 0
  %2862 = vmatpush2.bf16.msra.mxu0 0
  %2863 = vmatprep.subr.bf16.mxu0 0
  %2864 = vmatpush2.bf16.msra.mxu0 0
  %2865 = vmatprep.subr.bf16.mxu0 0
  %2866 = vmatpush2.bf16.msra.mxu0 0
  %2867 = vmatprep.mubr.bf16.mxu0 0
  %2868 = vmatmul.mubr.bf16.gmra.mxu0 %v2752
  %v2869 = vpop.f32.mrf.mxu0
  %v2870 = vadd.f32 %v172, %v2869
  %v2871 = vpop.f32.mrf.mxu0
  %v2872 = vpop.f32.mrf.mxu0
  %v2873 = vpop.f32.mrf.mxu0
  %2874 = vdwg.mxu0
  %s2875 = scalar_lea.vmem %s9, 32
  %2876 = vst [vmem:[%s2875] sm:$0xff] %v2870
  %2877 = vmatprep.subr.bf16.mxu0 %v1460
  %2878 = vmatpush1.bf16.msra.mxu0 %v1459
  %2879 = vmatprep.subr.bf16.mxu0 %v1456
  %2880 = vmatpush1.bf16.msra.mxu0 %v1455
  %2881 = vmatprep.subr.bf16.mxu0 %v1452
  %2882 = vmatpush1.bf16.msra.mxu0 %v1451
  %2883 = vmatprep.subr.bf16.mxu0 %v1448
  %2884 = vmatpush1.bf16.msra.mxu0 %v1447
  %2885 = vmatprep.subr.bf16.mxu0 %v1444
  %2886 = vmatpush1.bf16.msra.mxu0 %v1443
  %2887 = vmatprep.subr.bf16.mxu0 %v1440
  %2888 = vmatpush1.bf16.msra.mxu0 %v1439
  %2889 = vmatprep.subr.bf16.mxu0 %v1436
  %2890 = vmatpush1.bf16.msra.mxu0 %v1435
  %2891 = vmatprep.subr.bf16.mxu0 %v1432
  %2892 = vmatpush1.bf16.msra.mxu0 %v1431
  %2893 = vmatprep.subr.bf16.mxu0 0
  %2894 = vmatpush2.bf16.msra.mxu0 0
  %2895 = vmatprep.subr.bf16.mxu0 0
  %2896 = vmatpush2.bf16.msra.mxu0 0
  %2897 = vmatprep.subr.bf16.mxu0 0
  %2898 = vmatpush2.bf16.msra.mxu0 0
  %2899 = vmatprep.subr.bf16.mxu0 0
  %2900 = vmatpush2.bf16.msra.mxu0 0
  %2901 = vmatprep.subr.bf16.mxu0 0
  %2902 = vmatpush2.bf16.msra.mxu0 0
  %2903 = vmatprep.subr.bf16.mxu0 0
  %2904 = vmatpush2.bf16.msra.mxu0 0
  %2905 = vmatprep.subr.bf16.mxu0 0
  %2906 = vmatpush2.bf16.msra.mxu0 0
  %2907 = vmatprep.subr.bf16.mxu0 0
  %2908 = vmatpush2.bf16.msra.mxu0 0
  %2909 = vmatprep.mubr.bf16.mxu0 0
  %2910 = vmatmul.mubr.bf16.gmra.mxu0 %v2752
  %v2911 = vpop.f32.mrf.mxu0
  %v2912 = vadd.f32 0.0, %v2911
  %v2913 = vpop.f32.mrf.mxu0
  %v2914 = vadd.f32 0.0, %v2913
  %v2915 = vpop.f32.mrf.mxu0
  %v2916 = vpop.f32.mrf.mxu0
  %2917 = vdwg.mxu0
  %2918 = vmatprep.subr.bf16.mxu0 %v1462
  %2919 = vmatpush1.bf16.msra.mxu0 %v1461
  %2920 = vmatprep.subr.bf16.mxu0 %v1458
  %2921 = vmatpush1.bf16.msra.mxu0 %v1457
  %2922 = vmatprep.subr.bf16.mxu0 %v1454
  %2923 = vmatpush1.bf16.msra.mxu0 %v1453
  %2924 = vmatprep.subr.bf16.mxu0 %v1450
  %2925 = vmatpush1.bf16.msra.mxu0 %v1449
  %2926 = vmatprep.subr.bf16.mxu0 %v1446
  %2927 = vmatpush1.bf16.msra.mxu0 %v1445
  %2928 = vmatprep.subr.bf16.mxu0 %v1442
  %2929 = vmatpush1.bf16.msra.mxu0 %v1441
  %2930 = vmatprep.subr.bf16.mxu0 %v1438
  %2931 = vmatpush1.bf16.msra.mxu0 %v1437
  %2932 = vmatprep.subr.bf16.mxu0 %v1434
  %2933 = vmatpush1.bf16.msra.mxu0 %v1433
  %2934 = vmatprep.subr.bf16.mxu0 0
  %2935 = vmatpush2.bf16.msra.mxu0 0
  %2936 = vmatprep.subr.bf16.mxu0 0
  %2937 = vmatpush2.bf16.msra.mxu0 0
  %2938 = vmatprep.subr.bf16.mxu0 0
  %2939 = vmatpush2.bf16.msra.mxu0 0
  %2940 = vmatprep.subr.bf16.mxu0 0
  %2941 = vmatpush2.bf16.msra.mxu0 0
  %2942 = vmatprep.subr.bf16.mxu0 0
  %2943 = vmatpush2.bf16.msra.mxu0 0
  %2944 = vmatprep.subr.bf16.mxu0 0
  %2945 = vmatpush2.bf16.msra.mxu0 0
  %2946 = vmatprep.subr.bf16.mxu0 0
  %2947 = vmatpush2.bf16.msra.mxu0 0
  %2948 = vmatprep.subr.bf16.mxu0 0
  %2949 = vmatpush2.bf16.msra.mxu0 0
  %2950 = vmatprep.mubr.bf16.mxu0 0
  %2951 = vmatmul.mubr.bf16.gmra.mxu0 %v2752
  %v2952 = vpop.f32.mrf.mxu0
  %v2953 = vadd.f32 0.0, %v2952
  %v2954 = vpop.f32.mrf.mxu0
  %v2955 = vadd.f32 0.0, %v2954
  %v2956 = vpop.f32.mrf.mxu0
  %v2957 = vpop.f32.mrf.mxu0
  %2958 = vdwg.mxu0
  %v2959 = vadd.f32 %v2788, %v2912
  %v2960 = vadd.f32 %v2790, %v2914
  %v2961 = vadd.f32 %v2829, %v2953
  %v2962 = vadd.f32 %v2831, %v2955
  %v2963 = vxor.u32 %v2959, 2147483648
  %v2964 = vxor.u32 %v2960, 2147483648
  %v2965 = vxor.u32 %v2961, 2147483648
  %v2966 = vmul.f32 %v2963, 1.442695
  %v2967 = vpow.pop %v2966
  %v2968 = vmul.f32 %v2964, 1.442695
  %v2969 = vpow.pop %v2968
  %v2970 = vmul.f32 %v2965, 1.442695
  %v2971 = vpow.pop %v2970
  %v2972 = vadd.f32 %v2967, 1.0
  %v2973 = vadd.f32 %v2969, 1.0
  %v2974 = vadd.f32 %v2971, 1.0
  %v2975 = vrcp.pop %v2972
  %v2976 = vmul.f32 1.0, %v2975
  %v2977 = vrcp.pop %v2973
  %v2978 = vmul.f32 1.0, %v2977
  %v2979 = vrcp.pop %v2974
  %v2980 = vmul.f32 1.0, %v2979
  %v2981 = vtanh.pop %v2962
  %v2982 = vmul.f32 %v2978, %v2749
  %v2983 = vmul.f32 %v2976, %v2981
  %v2984 = vadd.f32 %v2982, %v2983
  %v2985 = vtanh.pop %v2984
  %v2986 = vmul.f32 %v2980, %v2985
  %v2987 = vpack.c.bf16 %v2986, %v2986
  %2988 = vmatprep.subr.bf16.mxu0 0
  %2989 = vmatpush1.bf16.msra.mxu0 %v1887
  %2990 = vmatprep.subr.bf16.mxu0 0
  %2991 = vmatpush1.bf16.msra.mxu0 %v1886
  %2992 = vmatprep.subr.bf16.mxu0 0
  %2993 = vmatpush1.bf16.msra.mxu0 %v1885
  %2994 = vmatprep.subr.bf16.mxu0 0
  %2995 = vmatpush1.bf16.msra.mxu0 %v1884
  %2996 = vmatprep.subr.bf16.mxu0 0
  %2997 = vmatpush1.bf16.msra.mxu0 %v1883
  %2998 = vmatprep.subr.bf16.mxu0 0
  %2999 = vmatpush1.bf16.msra.mxu0 %v1882
  %3000 = vmatprep.subr.bf16.mxu0 0
  %3001 = vmatpush1.bf16.msra.mxu0 %v1881
  %3002 = vmatprep.subr.bf16.mxu0 0
  %3003 = vmatpush1.bf16.msra.mxu0 %v1880
  %3004 = vmatprep.subr.bf16.mxu0 0
  %3005 = vmatpush2.bf16.msra.mxu0 0
  %3006 = vmatprep.subr.bf16.mxu0 0
  %3007 = vmatpush2.bf16.msra.mxu0 0
  %3008 = vmatprep.subr.bf16.mxu0 0
  %3009 = vmatpush2.bf16.msra.mxu0 0
  %3010 = vmatprep.subr.bf16.mxu0 0
  %3011 = vmatpush2.bf16.msra.mxu0 0
  %3012 = vmatprep.subr.bf16.mxu0 0
  %3013 = vmatpush2.bf16.msra.mxu0 0
  %3014 = vmatprep.subr.bf16.mxu0 0
  %3015 = vmatpush2.bf16.msra.mxu0 0
  %3016 = vmatprep.subr.bf16.mxu0 0
  %3017 = vmatpush2.bf16.msra.mxu0 0
  %3018 = vmatprep.subr.bf16.mxu0 0
  %3019 = vmatpush2.bf16.msra.mxu0 0
  %3020 = vmatprep.mubr.bf16.mxu0 0
  %3021 = vmatmul.mubr.bf16.gmra.mxu0 %v2987
  %v3022 = vpop.f32.mrf.mxu0
  %v3023 = vadd.f32 %v172, %v3022
  %v3024 = vpop.f32.mrf.mxu0
  %v3025 = vpop.f32.mrf.mxu0
  %v3026 = vpop.f32.mrf.mxu0
  %3027 = vdwg.mxu0
  %s3028 = scalar_lea.vmem %s9, 40
  %3029 = vst [vmem:[%s3028] sm:$0xff] %v3023
  // Predicated region
  $region38: #{_lambda_.1} parent=0 // pred_check
    _
  $region39: #{_lambda_.1} parent=0 // pred_check_branch
    %3031 = sbr.rel (0) target = $region41
  $region40: #{_lambda_.1} parent=0 // pred_region
    _
  $region41: #{_lambda_.1} parent=0 // pred_fallthru
    _
  // Predicated region
  $region42: #{_lambda_.1} parent=0 // pred_check
    _
  $region43: #{_lambda_.1} parent=0 // pred_check_branch
    %3033 = sbr.rel (0) target = $region45
  $region44: #{_lambda_.1} parent=0 // pred_region
    _
  $region45: #{_lambda_.1} parent=0 // pred_fallthru
    _

</llo_original>
